<compile_context>
chip_gen: v6e
topology: v6e:2x2x1
jax: 0.10.0
libtpu: 0.0.40
codegen_flags: <defaults>
</compile_context>

<pallas_src>
import numpy as np
import jax
import jax.numpy as jnp
from jax import lax
from jax.experimental import pallas as pl
from jax.experimental.pallas import tpu as pltpu

F32 = jnp.float32
BF16 = jnp.bfloat16
SLOPE = 0.5  # LeakyReLU negative slope


# ----------------------------------------------------------------------------
# Small helpers
# ----------------------------------------------------------------------------
def _leaky(v):
    return jnp.where(v >= 0, v, SLOPE * v)


def _pool_matrix(L, bt):
    """(L*bt, L*bt//2) matrix averaging adjacent time steps in the time-major /
    batch-minor lane packing: out[:, l'*bt+b] = 0.5*(a[:, 2l'*bt+b] + a[:, (2l'+1)*bt+b])."""
    N = L * bt
    r = np.arange(N)
    c = (r // bt // 2) * bt + (r % bt)
    P = np.zeros((N, N // 2), np.float32)
    P[r, c] = 0.5
    return jnp.asarray(P, BF16)


def _interleave_matrices(L, bt):
    """0/1 matrices (L*bt, 2*L*bt) scattering the even/odd polyphase outputs to
    interleaved per-sample time positions in the packed layout."""
    N = L * bt
    r = np.arange(N)
    l, b = r // bt, r % bt
    pe = np.zeros((N, 2 * N), np.float32)
    po = np.zeros((N, 2 * N), np.float32)
    pe[r, (2 * l) * bt + b] = 1.0
    po[r, (2 * l + 1) * bt + b] = 1.0
    return jnp.asarray(pe, BF16), jnp.asarray(po, BF16)


def _prep_conv_w(w):
    """(C_out, C_in, 3) Conv1d weight -> (3, C_out, C_in) bf16 (one matrix per tap)."""
    return jnp.transpose(w, (2, 0, 1)).astype(BF16)


def _prep_convT_w(w):
    """(C_in, C_out, 4) ConvTranspose1d weight -> (4, C_out, C_in) bf16, dw[k][o,i]=w[i,o,k].

    Even output 2t   = W1 x[t] + W3 x[t-1];  Odd output 2t+1 = W2 x[t] + W0 x[t+1].
    """
    return jnp.transpose(w, (2, 1, 0)).astype(BF16)


# ----------------------------------------------------------------------------
# Fused forward kernel (one grid step == BT batch elements, packed along lanes)
# ----------------------------------------------------------------------------
def _make_kernel(bt, L3):
    def kernel(x_ref,
               ew1, eb1, pl1, ew2, eb2, pl2, ew3, eb3, pl3,
               efw, efb, dfw, dfb,
               dw1, db1, pe1, po1, dw2, db2, pe2, po2, dw3, db3, pe3, po3,
               o_ref):

        def shift(xb, d):
            # One time-step shift (d=+1 -> value at t-1, d=-1 -> value at t+1) in the
            # time-major / batch-minor lane packing; zero at the time boundary.
            # Pure in-vreg slice+concat (same effect as pltpu.roll(+/-bt) + lane mask),
            # so no cross-sample bleed and no VMEM staging.
            C, N = xb.shape
            z = jnp.zeros((C, bt), xb.dtype)
            if d > 0:
                return jnp.concatenate([z, xb[:, :N - bt]], axis=1)
            return jnp.concatenate([xb[:, bt:], z], axis=1)

        def conv3_lrelu_pool(x, w, b, pmat):
            # Conv1d(k=3, pad=1) + LeakyReLU(0.5) + AvgPool1d(2) on packed lanes.
            xb = x.astype(BF16)
            y = (jnp.dot(w[1], xb, preferred_element_type=F32)
                 + jnp.dot(w[0], shift(xb, +1), preferred_element_type=F32)
                 + jnp.dot(w[2], shift(xb, -1), preferred_element_type=F32)
                 + b[...])
            return jnp.dot(_leaky(y).astype(BF16), pmat[...],
                           preferred_element_type=F32)

        def convT4_lrelu(x, w, b, pe, po):
            # ConvTranspose1d(k=4, stride=2, pad=1) + LeakyReLU(0.5), polyphase form.
            xb = x.astype(BF16)
            bias = b[...]
            even = _leaky(jnp.dot(w[1], xb, preferred_element_type=F32)
                          + jnp.dot(w[3], shift(xb, +1), preferred_element_type=F32)
                          + bias)
            odd = _leaky(jnp.dot(w[2], xb, preferred_element_type=F32)
                         + jnp.dot(w[0], shift(xb, -1), preferred_element_type=F32)
                         + bias)
            return (jnp.dot(even.astype(BF16), pe[...], preferred_element_type=F32)
                    + jnp.dot(odd.astype(BF16), po[...], preferred_element_type=F32))

        x = x_ref[0]                                   # (ninputs, t_len*bt) f32

        # ---- encoder ----
        h = conv3_lrelu_pool(x, ew1, eb1, pl1)
        h = conv3_lrelu_pool(h, ew2, eb2, pl2)
        h = conv3_lrelu_pool(h, ew3, eb3, pl3)         # (c2, L3*bt)
        # TODO(synk): nn.Dropout(0.1) treated as identity (inference/eval semantics).

        # ---- Flatten + Linear, folded over the L3 lane-contiguous time slices ----
        zT = efb[...]                                  # (zdim, 1), broadcasts over bt
        for l in range(L3):
            zT = zT + jnp.dot(efw[l], h[:, l * bt:(l + 1) * bt].astype(BF16),
                              preferred_element_type=F32)           # (zdim, bt)

        # ---- Linear + Unflatten: emit each time slice straight into packed layout ----
        zb = zT.astype(BF16)
        g = jnp.concatenate(
            [jnp.dot(dfw[l], zb, preferred_element_type=F32) + dfb[l]
             for l in range(L3)], axis=1)              # (c2, L3*bt)

        # ---- decoder ----
        g = convT4_lrelu(g, dw1, db1, pe1, po1)
        g = convT4_lrelu(g, dw2, db2, pe2, po2)
        g = convT4_lrelu(g, dw3, db3, pe3, po3)        # (ninputs, t_len*bt)
        o_ref[0] = g

    return kernel


# ----------------------------------------------------------------------------
# Wrapper: layout plumbing + one-time weight re-layout + pallas_call setup
# ----------------------------------------------------------------------------
def autoencoder_forward(x, p, ch_list, t_len, bt=8):
    B, ninputs, L0 = x.shape
    assert L0 == t_len and t_len % (2 ** len(ch_list)) == 0
    c0, c1, c2 = ch_list
    L3 = t_len // (2 ** len(ch_list))
    zdim = p["efw"].shape[0]

    bt = max(1, min(bt, B))
    n_steps = pl.cdiv(B, bt)
    Bp = n_steps * bt
    Np = t_len * bt

    # Lane-dense, time-major / batch-minor input slab (pure layout plumbing).
    xw = x if Bp == B else jnp.concatenate(
        [x, jnp.zeros((Bp - B, ninputs, t_len), x.dtype)], axis=0)
    xw = xw.reshape(n_steps, bt, ninputs, t_len)
    xw = jnp.transpose(xw, (0, 2, 3, 1)).reshape(n_steps, ninputs, Np)

    # Dense-layer weights split per time step (folds Flatten/Unflatten into matmuls).
    efw_s = jnp.transpose(p["efw"].reshape(zdim, c2, L3), (2, 0, 1)).astype(BF16)
    dfw_s = jnp.transpose(p["dfw"].reshape(c2, L3, zdim), (1, 0, 2)).astype(BF16)
    dfb_s = jnp.transpose(p["dfb"].reshape(c2, L3), (1, 0)).reshape(L3, c2, 1).astype(F32)

    pe1, po1 = _interleave_matrices(L3, bt)
    pe2, po2 = _interleave_matrices(2 * L3, bt)
    pe3, po3 = _interleave_matrices(4 * L3, bt)

    operands = [
        _prep_conv_w(p["e1w"]), p["e1b"].reshape(c0, 1).astype(F32), _pool_matrix(t_len, bt),
        _prep_conv_w(p["e2w"]), p["e2b"].reshape(c1, 1).astype(F32), _pool_matrix(t_len // 2, bt),
        _prep_conv_w(p["e3w"]), p["e3b"].reshape(c2, 1).astype(F32), _pool_matrix(t_len // 4, bt),
        efw_s, p["efb"].reshape(zdim, 1).astype(F32), dfw_s, dfb_s,
        _prep_convT_w(p["d1w"]), p["d1b"].reshape(c1, 1).astype(F32), pe1, po1,
        _prep_convT_w(p["d2w"]), p["d2b"].reshape(c0, 1).astype(F32), pe2, po2,
        _prep_convT_w(p["d3w"]), p["d3b"].reshape(ninputs, 1).astype(F32), pe3, po3,
    ]

    def _const_spec(a):
        nd = a.ndim
        return pl.BlockSpec(a.shape, lambda g, _nd=nd: (0,) * _nd)

    in_specs = [pl.BlockSpec((1, ninputs, Np), lambda g: (g, 0, 0))]
    in_specs += [_const_spec(a) for a in operands]

    out = pl.pallas_call(
        _make_kernel(bt, L3),
        out_shape=jax.ShapeDtypeStruct((n_steps, ninputs, Np), F32),
        grid=(n_steps,),
        in_specs=in_specs,
        out_specs=pl.BlockSpec((1, ninputs, Np), lambda g: (g, 0, 0)),
        compiler_params=pltpu.CompilerParams(dimension_semantics=("parallel",)),
    )(xw, *operands)

    # Unpack the lane-dense output slab back to (B, ninputs, t_len).
    out = out.reshape(n_steps, ninputs, t_len, bt)
    out = jnp.transpose(out, (0, 3, 1, 2)).reshape(Bp, ninputs, t_len)
    return out[:B]


# ----------------------------------------------------------------------------
# Parameters
# ----------------------------------------------------------------------------
def init_params(key, ninputs, t_len, ch_list, zdim):
    c0, c1, c2 = ch_list
    flat = t_len * c2 // (2 ** len(ch_list))
    shapes = {
        "e1w": (c0, ninputs, 3), "e1b": (c0,),
        "e2w": (c1, c0, 3),      "e2b": (c1,),
        "e3w": (c2, c1, 3),      "e3b": (c2,),
        "efw": (zdim, flat),     "efb": (zdim,),
        "dfw": (flat, zdim),     "dfb": (flat,),
        "d1w": (c2, c1, 4),      "d1b": (c1,),   # ConvTranspose weights: (C_in, C_out, K)
        "d2w": (c1, c0, 4),      "d2b": (c0,),
        "d3w": (c0, ninputs, 4), "d3b": (ninputs,),
    }
    keys = jax.random.split(key, len(shapes))
    return {name: 0.2 * jax.random.normal(k, shp, F32)
            for (name, shp), k in zip(shapes.items(), keys)}


# ----------------------------------------------------------------------------
# Reference (lax.conv) at matching precision: bf16 matmul operands, f32 accumulation.
# ----------------------------------------------------------------------------
def ref_forward(x, p, ch_list, t_len):
    dn = ("NCH", "OIH", "NCH")
    HI = lax.Precision.HIGHEST
    rb = lambda t: t.astype(BF16).astype(F32)          # bf16 rounding, kept in f32
    lrelu = lambda v: jnp.where(v >= 0, v, SLOPE * v)
    pool = lambda v: v.reshape(v.shape[0], v.shape[1], -1, 2).mean(-1)

    def conv(v, w, b):
        y = lax.conv_general_dilated(rb(v), rb(w), (1,), [(1, 1)],
                                     dimension_numbers=dn, precision=HI)
        return y + b[None, :, None]

    def convT(v, w, b):  # w: (C_in, C_out, 4), stride 2, pad 1
        w_eq = jnp.transpose(jnp.flip(w, -1), (1, 0, 2))
        y = lax.conv_general_dilated(rb(v), rb(w_eq), (1,), [(2, 2)],
                                     lhs_dilation=(2,),
                                     dimension_numbers=dn, precision=HI)
        return y + b[None, :, None]

    h = pool(rb(lrelu(conv(x, p["e1w"], p["e1b"]))))
    h = pool(rb(lrelu(conv(h, p["e2w"], p["e2b"]))))
    h = pool(rb(lrelu(conv(h, p["e3w"], p["e3b"]))))
    B = h.shape[0]
    z = jnp.dot(rb(h.reshape(B, -1)), rb(p["efw"].T), precision=HI) + p["efb"]
    d = jnp.dot(rb(z), rb(p["dfw"].T), precision=HI) + p["dfb"]
    d = d.reshape(B, ch_list[-1], t_len // (2 ** len(ch_list)))
    d = rb(lrelu(convT(d, p["d1w"], p["d1b"])))
    d = rb(lrelu(convT(d, p["d2w"], p["d2b"])))
    d = rb(lrelu(convT(d, p["d3w"], p["d3b"])))
    return d


# ----------------------------------------------------------------------------
if __name__ == "__main__":
    # Small shapes consistent with the module (t_len divisible by 2**len(ch_list)).
    NINPUTS, T_LEN, CH_LIST, ZDIM = 4, 32, [8, 16, 32], 16
    BATCH, BT = 16, 8                     # grid = (2,) -> both v7x TensorCores busy

    key = jax.random.PRNGKey(0)
    kx, kp = jax.random.split(key)
    x = jax.random.normal(kx, (BATCH, NINPUTS, T_LEN), F32)
    params = init_params(kp, NINPUTS, T_LEN, CH_LIST, ZDIM)

    fwd = jax.jit(lambda xx, pp: autoencoder_forward(xx, pp, CH_LIST, T_LEN, bt=BT))
    out = jax.block_until_ready(fwd(x, params))
    assert out.shape == (BATCH, NINPUTS, T_LEN), out.shape

    ref = jax.block_until_ready(
        jax.jit(lambda xx, pp: ref_forward(xx, pp, CH_LIST, T_LEN))(x, params))
    np.testing.assert_allclose(np.asarray(out), np.asarray(ref),
                               rtol=2e-2, atol=1e-2)

    print("KERNEL_OK")
</pallas_src>

<mosaic_0001>
module attributes {stable_mosaic.version = 11 : i64} {
  func.func @kernel(%arg0: i32, %arg1: memref<1x4x256xf32, #tpu.memory_space<vmem>>, %arg2: memref<3x8x4xbf16, #tpu.memory_space<vmem>>, %arg3: memref<8x1xf32, #tpu.memory_space<vmem>>, %arg4: memref<256x128xbf16, #tpu.memory_space<vmem>>, %arg5: memref<3x16x8xbf16, #tpu.memory_space<vmem>>, %arg6: memref<16x1xf32, #tpu.memory_space<vmem>>, %arg7: memref<128x64xbf16, #tpu.memory_space<vmem>>, %arg8: memref<3x32x16xbf16, #tpu.memory_space<vmem>>, %arg9: memref<32x1xf32, #tpu.memory_space<vmem>>, %arg10: memref<64x32xbf16, #tpu.memory_space<vmem>>, %arg11: memref<4x16x32xbf16, #tpu.memory_space<vmem>>, %arg12: memref<16x1xf32, #tpu.memory_space<vmem>>, %arg13: memref<4x32x16xbf16, #tpu.memory_space<vmem>>, %arg14: memref<4x32x1xf32, #tpu.memory_space<vmem>>, %arg15: memref<4x16x32xbf16, #tpu.memory_space<vmem>>, %arg16: memref<16x1xf32, #tpu.memory_space<vmem>>, %arg17: memref<32x64xbf16, #tpu.memory_space<vmem>>, %arg18: memref<32x64xbf16, #tpu.memory_space<vmem>>, %arg19: memref<4x8x16xbf16, #tpu.memory_space<vmem>>, %arg20: memref<8x1xf32, #tpu.memory_space<vmem>>, %arg21: memref<64x128xbf16, #tpu.memory_space<vmem>>, %arg22: memref<64x128xbf16, #tpu.memory_space<vmem>>, %arg23: memref<4x4x8xbf16, #tpu.memory_space<vmem>>, %arg24: memref<4x1xf32, #tpu.memory_space<vmem>>, %arg25: memref<128x256xbf16, #tpu.memory_space<vmem>>, %arg26: memref<128x256xbf16, #tpu.memory_space<vmem>>, %arg27: memref<1x4x256xf32, #tpu.memory_space<vmem>>) attributes {dimension_semantics = [#tpu.dimension_semantics<parallel>], iteration_bounds = array<i64: 2>, scalar_prefetch = 0 : i64, scratch_operands = 0 : i64, tpu.core_type = #tpu.core_type<tc>, window_params = [{transform_indices = @transform_0, window_bounds = array<i64: 1, 4, 256>}, {pipeline_mode = #tpu.pipeline_mode<synchronous>, transform_indices = @transform_1, window_bounds = array<i64: 3, 8, 4>}, {pipeline_mode = #tpu.pipeline_mode<synchronous>, transform_indices = @transform_2, window_bounds = array<i64: 8, 1>}, {pipeline_mode = #tpu.pipeline_mode<synchronous>, transform_indices = @transform_3, window_bounds = array<i64: 256, 128>}, {pipeline_mode = #tpu.pipeline_mode<synchronous>, transform_indices = @transform_4, window_bounds = array<i64: 3, 16, 8>}, {pipeline_mode = #tpu.pipeline_mode<synchronous>, transform_indices = @transform_5, window_bounds = array<i64: 16, 1>}, {pipeline_mode = #tpu.pipeline_mode<synchronous>, transform_indices = @transform_6, window_bounds = array<i64: 128, 64>}, {pipeline_mode = #tpu.pipeline_mode<synchronous>, transform_indices = @transform_7, window_bounds = array<i64: 3, 32, 16>}, {pipeline_mode = #tpu.pipeline_mode<synchronous>, transform_indices = @transform_8, window_bounds = array<i64: 32, 1>}, {pipeline_mode = #tpu.pipeline_mode<synchronous>, transform_indices = @transform_9, window_bounds = array<i64: 64, 32>}, {pipeline_mode = #tpu.pipeline_mode<synchronous>, transform_indices = @transform_10, window_bounds = array<i64: 4, 16, 32>}, {pipeline_mode = #tpu.pipeline_mode<synchronous>, transform_indices = @transform_11, window_bounds = array<i64: 16, 1>}, {pipeline_mode = #tpu.pipeline_mode<synchronous>, transform_indices = @transform_12, window_bounds = array<i64: 4, 32, 16>}, {pipeline_mode = #tpu.pipeline_mode<synchronous>, transform_indices = @transform_13, window_bounds = array<i64: 4, 32, 1>}, {pipeline_mode = #tpu.pipeline_mode<synchronous>, transform_indices = @transform_14, window_bounds = array<i64: 4, 16, 32>}, {pipeline_mode = #tpu.pipeline_mode<synchronous>, transform_indices = @transform_15, window_bounds = array<i64: 16, 1>}, {pipeline_mode = #tpu.pipeline_mode<synchronous>, transform_indices = @transform_16, window_bounds = array<i64: 32, 64>}, {pipeline_mode = #tpu.pipeline_mode<synchronous>, transform_indices = @transform_17, window_bounds = array<i64: 32, 64>}, {pipeline_mode = #tpu.pipeline_mode<synchronous>, transform_indices = @transform_18, window_bounds = array<i64: 4, 8, 16>}, {pipeline_mode = #tpu.pipeline_mode<synchronous>, transform_indices = @transform_19, window_bounds = array<i64: 8, 1>}, {pipeline_mode = #tpu.pipeline_mode<synchronous>, transform_indices = @transform_20, window_bounds = array<i64: 64, 128>}, {pipeline_mode = #tpu.pipeline_mode<synchronous>, transform_indices = @transform_21, window_bounds = array<i64: 64, 128>}, {pipeline_mode = #tpu.pipeline_mode<synchronous>, transform_indices = @transform_22, window_bounds = array<i64: 4, 4, 8>}, {pipeline_mode = #tpu.pipeline_mode<synchronous>, transform_indices = @transform_23, window_bounds = array<i64: 4, 1>}, {pipeline_mode = #tpu.pipeline_mode<synchronous>, transform_indices = @transform_24, window_bounds = array<i64: 128, 256>}, {pipeline_mode = #tpu.pipeline_mode<synchronous>, transform_indices = @transform_25, window_bounds = array<i64: 128, 256>}, {transform_indices = @transform_26, window_bounds = array<i64: 1, 4, 256>}]} {
    %c0 = arith.constant 0 : index
    %c0_0 = arith.constant 0 : index
    %c0_1 = arith.constant 0 : index
    %0 = vector.load %arg1[%c0, %c0_0, %c0_1] : memref<1x4x256xf32, #tpu.memory_space<vmem>>, vector<1x4x256xf32>
    %1 = vector.shape_cast %0 : vector<1x4x256xf32> to vector<4x256xf32>
    %2 = arith.truncf %1 : vector<4x256xf32> to vector<4x256xbf16>
    %c1 = arith.constant 1 : index
    %c0_2 = arith.constant 0 : index
    %c0_3 = arith.constant 0 : index
    %3 = vector.load %arg2[%c1, %c0_2, %c0_3] : memref<3x8x4xbf16, #tpu.memory_space<vmem>>, vector<1x8x4xbf16>
    %4 = vector.shape_cast %3 : vector<1x8x4xbf16> to vector<8x4xbf16>
    %cst = arith.constant dense<0.000000e+00> : vector<8x256xf32>
    %5 = tpu.matmul %4, %2, %cst {dimension_numbers = #tpu.dot_dimension_numbers<[1], [0], [0], [1], [0, 0, 1, 1], [], []>} : vector<8x4xbf16>, vector<4x256xbf16>, vector<8x256xf32> -> vector<8x256xf32>
    %c0_4 = arith.constant 0 : index
    %c0_5 = arith.constant 0 : index
    %c0_6 = arith.constant 0 : index
    %6 = vector.load %arg2[%c0_4, %c0_5, %c0_6] : memref<3x8x4xbf16, #tpu.memory_space<vmem>>, vector<1x8x4xbf16>
    %7 = vector.shape_cast %6 : vector<1x8x4xbf16> to vector<8x4xbf16>
    %cst_7 = arith.constant 0.000000e+00 : bf16
    %8 = vector.broadcast %cst_7 : bf16 to vector<4x8xbf16>
    %9 = vector.extract_strided_slice %2 {offsets = [0, 0], sizes = [4, 248], strides = [1, 1]} : vector<4x256xbf16> to vector<4x248xbf16>
    %10 = tpu.concatenate %8, %9 in 1 : vector<4x8xbf16>, vector<4x248xbf16> -> vector<4x256xbf16>
    %cst_8 = arith.constant dense<0.000000e+00> : vector<8x256xf32>
    %11 = tpu.matmul %7, %10, %cst_8 {dimension_numbers = #tpu.dot_dimension_numbers<[1], [0], [0], [1], [0, 0, 1, 1], [], []>} : vector<8x4xbf16>, vector<4x256xbf16>, vector<8x256xf32> -> vector<8x256xf32>
    %12 = arith.addf %5, %11 : vector<8x256xf32>
    %c2 = arith.constant 2 : index
    %c0_9 = arith.constant 0 : index
    %c0_10 = arith.constant 0 : index
    %13 = vector.load %arg2[%c2, %c0_9, %c0_10] : memref<3x8x4xbf16, #tpu.memory_space<vmem>>, vector<1x8x4xbf16>
    %14 = vector.shape_cast %13 : vector<1x8x4xbf16> to vector<8x4xbf16>
    %cst_11 = arith.constant 0.000000e+00 : bf16
    %15 = vector.broadcast %cst_11 : bf16 to vector<4x8xbf16>
    %16 = vector.extract_strided_slice %2 {offsets = [0, 8], sizes = [4, 248], strides = [1, 1]} : vector<4x256xbf16> to vector<4x248xbf16>
    %17 = tpu.concatenate %16, %15 in 1 : vector<4x248xbf16>, vector<4x8xbf16> -> vector<4x256xbf16>
    %cst_12 = arith.constant dense<0.000000e+00> : vector<8x256xf32>
    %18 = tpu.matmul %14, %17, %cst_12 {dimension_numbers = #tpu.dot_dimension_numbers<[1], [0], [0], [1], [0, 0, 1, 1], [], []>} : vector<8x4xbf16>, vector<4x256xbf16>, vector<8x256xf32> -> vector<8x256xf32>
    %19 = arith.addf %12, %18 : vector<8x256xf32>
    %c0_13 = arith.constant 0 : index
    %c0_14 = arith.constant 0 : index
    %20 = vector.load %arg3[%c0_13, %c0_14] : memref<8x1xf32, #tpu.memory_space<vmem>>, vector<8x1xf32>
    %21 = vector.broadcast %20 : vector<8x1xf32> to vector<8x256xf32>
    %22 = arith.addf %19, %21 : vector<8x256xf32>
    %cst_15 = arith.constant 0.000000e+00 : f32
    %23 = vector.broadcast %cst_15 : f32 to vector<8x256xf32>
    %24 = arith.cmpf oge, %22, %23 : vector<8x256xf32>
    %cst_16 = arith.constant 5.000000e-01 : f32
    %25 = vector.broadcast %cst_16 : f32 to vector<8x256xf32>
    %26 = arith.mulf %25, %22 : vector<8x256xf32>
    %27 = arith.select %24, %22, %26 : vector<8x256xi1>, vector<8x256xf32>
    %28 = arith.truncf %27 : vector<8x256xf32> to vector<8x256xbf16>
    %c0_17 = arith.constant 0 : index
    %c0_18 = arith.constant 0 : index
    %29 = vector.load %arg4[%c0_17, %c0_18] : memref<256x128xbf16, #tpu.memory_space<vmem>>, vector<256x128xbf16>
    %cst_19 = arith.constant dense<0.000000e+00> : vector<8x128xf32>
    %30 = tpu.matmul %28, %29, %cst_19 {dimension_numbers = #tpu.dot_dimension_numbers<[1], [0], [0], [1], [0, 0, 1, 1], [], []>} : vector<8x256xbf16>, vector<256x128xbf16>, vector<8x128xf32> -> vector<8x128xf32>
    %31 = arith.truncf %30 : vector<8x128xf32> to vector<8x128xbf16>
    %c1_20 = arith.constant 1 : index
    %c0_21 = arith.constant 0 : index
    %c0_22 = arith.constant 0 : index
    %32 = vector.load %arg5[%c1_20, %c0_21, %c0_22] : memref<3x16x8xbf16, #tpu.memory_space<vmem>>, vector<1x16x8xbf16>
    %33 = vector.shape_cast %32 : vector<1x16x8xbf16> to vector<16x8xbf16>
    %cst_23 = arith.constant dense<0.000000e+00> : vector<16x128xf32>
    %34 = tpu.matmul %33, %31, %cst_23 {dimension_numbers = #tpu.dot_dimension_numbers<[1], [0], [0], [1], [0, 0, 1, 1], [], []>} : vector<16x8xbf16>, vector<8x128xbf16>, vector<16x128xf32> -> vector<16x128xf32>
    %c0_24 = arith.constant 0 : index
    %c0_25 = arith.constant 0 : index
    %c0_26 = arith.constant 0 : index
    %35 = vector.load %arg5[%c0_24, %c0_25, %c0_26] : memref<3x16x8xbf16, #tpu.memory_space<vmem>>, vector<1x16x8xbf16>
    %36 = vector.shape_cast %35 : vector<1x16x8xbf16> to vector<16x8xbf16>
    %cst_27 = arith.constant 0.000000e+00 : bf16
    %37 = vector.broadcast %cst_27 : bf16 to vector<8x8xbf16>
    %38 = vector.extract_strided_slice %31 {offsets = [0, 0], sizes = [8, 120], strides = [1, 1]} : vector<8x128xbf16> to vector<8x120xbf16>
    %39 = tpu.concatenate %37, %38 in 1 : vector<8x8xbf16>, vector<8x120xbf16> -> vector<8x128xbf16>
    %cst_28 = arith.constant dense<0.000000e+00> : vector<16x128xf32>
    %40 = tpu.matmul %36, %39, %cst_28 {dimension_numbers = #tpu.dot_dimension_numbers<[1], [0], [0], [1], [0, 0, 1, 1], [], []>} : vector<16x8xbf16>, vector<8x128xbf16>, vector<16x128xf32> -> vector<16x128xf32>
    %41 = arith.addf %34, %40 : vector<16x128xf32>
    %c2_29 = arith.constant 2 : index
    %c0_30 = arith.constant 0 : index
    %c0_31 = arith.constant 0 : index
    %42 = vector.load %arg5[%c2_29, %c0_30, %c0_31] : memref<3x16x8xbf16, #tpu.memory_space<vmem>>, vector<1x16x8xbf16>
    %43 = vector.shape_cast %42 : vector<1x16x8xbf16> to vector<16x8xbf16>
    %cst_32 = arith.constant 0.000000e+00 : bf16
    %44 = vector.broadcast %cst_32 : bf16 to vector<8x8xbf16>
    %45 = vector.extract_strided_slice %31 {offsets = [0, 8], sizes = [8, 120], strides = [1, 1]} : vector<8x128xbf16> to vector<8x120xbf16>
    %46 = tpu.concatenate %45, %44 in 1 : vector<8x120xbf16>, vector<8x8xbf16> -> vector<8x128xbf16>
    %cst_33 = arith.constant dense<0.000000e+00> : vector<16x128xf32>
    %47 = tpu.matmul %43, %46, %cst_33 {dimension_numbers = #tpu.dot_dimension_numbers<[1], [0], [0], [1], [0, 0, 1, 1], [], []>} : vector<16x8xbf16>, vector<8x128xbf16>, vector<16x128xf32> -> vector<16x128xf32>
    %48 = arith.addf %41, %47 : vector<16x128xf32>
    %c0_34 = arith.constant 0 : index
    %c0_35 = arith.constant 0 : index
    %49 = vector.load %arg6[%c0_34, %c0_35] : memref<16x1xf32, #tpu.memory_space<vmem>>, vector<16x1xf32>
    %50 = vector.broadcast %49 : vector<16x1xf32> to vector<16x128xf32>
    %51 = arith.addf %48, %50 : vector<16x128xf32>
    %cst_36 = arith.constant 0.000000e+00 : f32
    %52 = vector.broadcast %cst_36 : f32 to vector<16x128xf32>
    %53 = arith.cmpf oge, %51, %52 : vector<16x128xf32>
    %cst_37 = arith.constant 5.000000e-01 : f32
    %54 = vector.broadcast %cst_37 : f32 to vector<16x128xf32>
    %55 = arith.mulf %54, %51 : vector<16x128xf32>
    %56 = arith.select %53, %51, %55 : vector<16x128xi1>, vector<16x128xf32>
    %57 = arith.truncf %56 : vector<16x128xf32> to vector<16x128xbf16>
    %c0_38 = arith.constant 0 : index
    %c0_39 = arith.constant 0 : index
    %58 = vector.load %arg7[%c0_38, %c0_39] : memref<128x64xbf16, #tpu.memory_space<vmem>>, vector<128x64xbf16>
    %cst_40 = arith.constant dense<0.000000e+00> : vector<16x64xf32>
    %59 = tpu.matmul %57, %58, %cst_40 {dimension_numbers = #tpu.dot_dimension_numbers<[1], [0], [0], [1], [0, 0, 1, 1], [], []>} : vector<16x128xbf16>, vector<128x64xbf16>, vector<16x64xf32> -> vector<16x64xf32>
    %60 = arith.truncf %59 : vector<16x64xf32> to vector<16x64xbf16>
    %c1_41 = arith.constant 1 : index
    %c0_42 = arith.constant 0 : index
    %c0_43 = arith.constant 0 : index
    %61 = vector.load %arg8[%c1_41, %c0_42, %c0_43] : memref<3x32x16xbf16, #tpu.memory_space<vmem>>, vector<1x32x16xbf16>
    %62 = vector.shape_cast %61 : vector<1x32x16xbf16> to vector<32x16xbf16>
    %cst_44 = arith.constant dense<0.000000e+00> : vector<32x64xf32>
    %63 = tpu.matmul %62, %60, %cst_44 {dimension_numbers = #tpu.dot_dimension_numbers<[1], [0], [0], [1], [0, 0, 1, 1], [], []>} : vector<32x16xbf16>, vector<16x64xbf16>, vector<32x64xf32> -> vector<32x64xf32>
    %c0_45 = arith.constant 0 : index
    %c0_46 = arith.constant 0 : index
    %c0_47 = arith.constant 0 : index
    %64 = vector.load %arg8[%c0_45, %c0_46, %c0_47] : memref<3x32x16xbf16, #tpu.memory_space<vmem>>, vector<1x32x16xbf16>
    %65 = vector.shape_cast %64 : vector<1x32x16xbf16> to vector<32x16xbf16>
    %cst_48 = arith.constant 0.000000e+00 : bf16
    %66 = vector.broadcast %cst_48 : bf16 to vector<16x8xbf16>
    %67 = vector.extract_strided_slice %60 {offsets = [0, 0], sizes = [16, 56], strides = [1, 1]} : vector<16x64xbf16> to vector<16x56xbf16>
    %68 = tpu.concatenate %66, %67 in 1 : vector<16x8xbf16>, vector<16x56xbf16> -> vector<16x64xbf16>
    %cst_49 = arith.constant dense<0.000000e+00> : vector<32x64xf32>
    %69 = tpu.matmul %65, %68, %cst_49 {dimension_numbers = #tpu.dot_dimension_numbers<[1], [0], [0], [1], [0, 0, 1, 1], [], []>} : vector<32x16xbf16>, vector<16x64xbf16>, vector<32x64xf32> -> vector<32x64xf32>
    %70 = arith.addf %63, %69 : vector<32x64xf32>
    %c2_50 = arith.constant 2 : index
    %c0_51 = arith.constant 0 : index
    %c0_52 = arith.constant 0 : index
    %71 = vector.load %arg8[%c2_50, %c0_51, %c0_52] : memref<3x32x16xbf16, #tpu.memory_space<vmem>>, vector<1x32x16xbf16>
    %72 = vector.shape_cast %71 : vector<1x32x16xbf16> to vector<32x16xbf16>
    %cst_53 = arith.constant 0.000000e+00 : bf16
    %73 = vector.broadcast %cst_53 : bf16 to vector<16x8xbf16>
    %74 = vector.extract_strided_slice %60 {offsets = [0, 8], sizes = [16, 56], strides = [1, 1]} : vector<16x64xbf16> to vector<16x56xbf16>
    %75 = tpu.concatenate %74, %73 in 1 : vector<16x56xbf16>, vector<16x8xbf16> -> vector<16x64xbf16>
    %cst_54 = arith.constant dense<0.000000e+00> : vector<32x64xf32>
    %76 = tpu.matmul %72, %75, %cst_54 {dimension_numbers = #tpu.dot_dimension_numbers<[1], [0], [0], [1], [0, 0, 1, 1], [], []>} : vector<32x16xbf16>, vector<16x64xbf16>, vector<32x64xf32> -> vector<32x64xf32>
    %77 = arith.addf %70, %76 : vector<32x64xf32>
    %c0_55 = arith.constant 0 : index
    %c0_56 = arith.constant 0 : index
    %78 = vector.load %arg9[%c0_55, %c0_56] : memref<32x1xf32, #tpu.memory_space<vmem>>, vector<32x1xf32>
    %79 = vector.broadcast %78 : vector<32x1xf32> to vector<32x64xf32>
    %80 = arith.addf %77, %79 : vector<32x64xf32>
    %cst_57 = arith.constant 0.000000e+00 : f32
    %81 = vector.broadcast %cst_57 : f32 to vector<32x64xf32>
    %82 = arith.cmpf oge, %80, %81 : vector<32x64xf32>
    %cst_58 = arith.constant 5.000000e-01 : f32
    %83 = vector.broadcast %cst_58 : f32 to vector<32x64xf32>
    %84 = arith.mulf %83, %80 : vector<32x64xf32>
    %85 = arith.select %82, %80, %84 : vector<32x64xi1>, vector<32x64xf32>
    %86 = arith.truncf %85 : vector<32x64xf32> to vector<32x64xbf16>
    %c0_59 = arith.constant 0 : index
    %c0_60 = arith.constant 0 : index
    %87 = vector.load %arg10[%c0_59, %c0_60] : memref<64x32xbf16, #tpu.memory_space<vmem>>, vector<64x32xbf16>
    %cst_61 = arith.constant dense<0.000000e+00> : vector<32x32xf32>
    %88 = tpu.matmul %86, %87, %cst_61 {dimension_numbers = #tpu.dot_dimension_numbers<[1], [0], [0], [1], [0, 0, 1, 1], [], []>} : vector<32x64xbf16>, vector<64x32xbf16>, vector<32x32xf32> -> vector<32x32xf32>
    %c0_62 = arith.constant 0 : index
    %c0_63 = arith.constant 0 : index
    %89 = vector.load %arg12[%c0_62, %c0_63] : memref<16x1xf32, #tpu.memory_space<vmem>>, vector<16x1xf32>
    %c0_64 = arith.constant 0 : index
    %c0_65 = arith.constant 0 : index
    %c0_66 = arith.constant 0 : index
    %90 = vector.load %arg11[%c0_64, %c0_65, %c0_66] : memref<4x16x32xbf16, #tpu.memory_space<vmem>>, vector<1x16x32xbf16>
    %91 = vector.shape_cast %90 : vector<1x16x32xbf16> to vector<16x32xbf16>
    %92 = vector.extract_strided_slice %88 {offsets = [0, 0], sizes = [32, 8], strides = [1, 1]} : vector<32x32xf32> to vector<32x8xf32>
    %93 = arith.truncf %92 : vector<32x8xf32> to vector<32x8xbf16>
    %cst_67 = arith.constant dense<0.000000e+00> : vector<16x8xf32>
    %94 = tpu.matmul %91, %93, %cst_67 {dimension_numbers = #tpu.dot_dimension_numbers<[1], [0], [0], [1], [0, 0, 1, 1], [], []>} : vector<16x32xbf16>, vector<32x8xbf16>, vector<16x8xf32> -> vector<16x8xf32>
    %95 = vector.broadcast %89 : vector<16x1xf32> to vector<16x8xf32>
    %96 = arith.addf %95, %94 : vector<16x8xf32>
    %c1_68 = arith.constant 1 : index
    %c0_69 = arith.constant 0 : index
    %c0_70 = arith.constant 0 : index
    %97 = vector.load %arg11[%c1_68, %c0_69, %c0_70] : memref<4x16x32xbf16, #tpu.memory_space<vmem>>, vector<1x16x32xbf16>
    %98 = vector.shape_cast %97 : vector<1x16x32xbf16> to vector<16x32xbf16>
    %99 = vector.extract_strided_slice %88 {offsets = [0, 8], sizes = [32, 8], strides = [1, 1]} : vector<32x32xf32> to vector<32x8xf32>
    %100 = arith.truncf %99 : vector<32x8xf32> to vector<32x8xbf16>
    %cst_71 = arith.constant dense<0.000000e+00> : vector<16x8xf32>
    %101 = tpu.matmul %98, %100, %cst_71 {dimension_numbers = #tpu.dot_dimension_numbers<[1], [0], [0], [1], [0, 0, 1, 1], [], []>} : vector<16x32xbf16>, vector<32x8xbf16>, vector<16x8xf32> -> vector<16x8xf32>
    %102 = arith.addf %96, %101 : vector<16x8xf32>
    %c2_72 = arith.constant 2 : index
    %c0_73 = arith.constant 0 : index
    %c0_74 = arith.constant 0 : index
    %103 = vector.load %arg11[%c2_72, %c0_73, %c0_74] : memref<4x16x32xbf16, #tpu.memory_space<vmem>>, vector<1x16x32xbf16>
    %104 = vector.shape_cast %103 : vector<1x16x32xbf16> to vector<16x32xbf16>
    %105 = vector.extract_strided_slice %88 {offsets = [0, 16], sizes = [32, 8], strides = [1, 1]} : vector<32x32xf32> to vector<32x8xf32>
    %106 = arith.truncf %105 : vector<32x8xf32> to vector<32x8xbf16>
    %cst_75 = arith.constant dense<0.000000e+00> : vector<16x8xf32>
    %107 = tpu.matmul %104, %106, %cst_75 {dimension_numbers = #tpu.dot_dimension_numbers<[1], [0], [0], [1], [0, 0, 1, 1], [], []>} : vector<16x32xbf16>, vector<32x8xbf16>, vector<16x8xf32> -> vector<16x8xf32>
    %108 = arith.addf %102, %107 : vector<16x8xf32>
    %c3 = arith.constant 3 : index
    %c0_76 = arith.constant 0 : index
    %c0_77 = arith.constant 0 : index
    %109 = vector.load %arg11[%c3, %c0_76, %c0_77] : memref<4x16x32xbf16, #tpu.memory_space<vmem>>, vector<1x16x32xbf16>
    %110 = vector.shape_cast %109 : vector<1x16x32xbf16> to vector<16x32xbf16>
    %111 = vector.extract_strided_slice %88 {offsets = [0, 24], sizes = [32, 8], strides = [1, 1]} : vector<32x32xf32> to vector<32x8xf32>
    %112 = arith.truncf %111 : vector<32x8xf32> to vector<32x8xbf16>
    %cst_78 = arith.constant dense<0.000000e+00> : vector<16x8xf32>
    %113 = tpu.matmul %110, %112, %cst_78 {dimension_numbers = #tpu.dot_dimension_numbers<[1], [0], [0], [1], [0, 0, 1, 1], [], []>} : vector<16x32xbf16>, vector<32x8xbf16>, vector<16x8xf32> -> vector<16x8xf32>
    %114 = arith.addf %108, %113 : vector<16x8xf32>
    %115 = arith.truncf %114 : vector<16x8xf32> to vector<16x8xbf16>
    %c0_79 = arith.constant 0 : index
    %c0_80 = arith.constant 0 : index
    %c0_81 = arith.constant 0 : index
    %116 = vector.load %arg13[%c0_79, %c0_80, %c0_81] : memref<4x32x16xbf16, #tpu.memory_space<vmem>>, vector<1x32x16xbf16>
    %117 = vector.shape_cast %116 : vector<1x32x16xbf16> to vector<32x16xbf16>
    %cst_82 = arith.constant dense<0.000000e+00> : vector<32x8xf32>
    %118 = tpu.matmul %117, %115, %cst_82 {dimension_numbers = #tpu.dot_dimension_numbers<[1], [0], [0], [1], [0, 0, 1, 1], [], []>} : vector<32x16xbf16>, vector<16x8xbf16>, vector<32x8xf32> -> vector<32x8xf32>
    %c0_83 = arith.constant 0 : index
    %c0_84 = arith.constant 0 : index
    %c0_85 = arith.constant 0 : index
    %119 = vector.load %arg14[%c0_83, %c0_84, %c0_85] : memref<4x32x1xf32, #tpu.memory_space<vmem>>, vector<1x32x1xf32>
    %120 = vector.shape_cast %119 : vector<1x32x1xf32> to vector<32x1xf32>
    %121 = vector.broadcast %120 : vector<32x1xf32> to vector<32x8xf32>
    %122 = arith.addf %118, %121 : vector<32x8xf32>
    %c1_86 = arith.constant 1 : index
    %c0_87 = arith.constant 0 : index
    %c0_88 = arith.constant 0 : index
    %123 = vector.load %arg13[%c1_86, %c0_87, %c0_88] : memref<4x32x16xbf16, #tpu.memory_space<vmem>>, vector<1x32x16xbf16>
    %124 = vector.shape_cast %123 : vector<1x32x16xbf16> to vector<32x16xbf16>
    %cst_89 = arith.constant dense<0.000000e+00> : vector<32x8xf32>
    %125 = tpu.matmul %124, %115, %cst_89 {dimension_numbers = #tpu.dot_dimension_numbers<[1], [0], [0], [1], [0, 0, 1, 1], [], []>} : vector<32x16xbf16>, vector<16x8xbf16>, vector<32x8xf32> -> vector<32x8xf32>
    %c1_90 = arith.constant 1 : index
    %c0_91 = arith.constant 0 : index
    %c0_92 = arith.constant 0 : index
    %126 = vector.load %arg14[%c1_90, %c0_91, %c0_92] : memref<4x32x1xf32, #tpu.memory_space<vmem>>, vector<1x32x1xf32>
    %127 = vector.shape_cast %126 : vector<1x32x1xf32> to vector<32x1xf32>
    %128 = vector.broadcast %127 : vector<32x1xf32> to vector<32x8xf32>
    %129 = arith.addf %125, %128 : vector<32x8xf32>
    %c2_93 = arith.constant 2 : index
    %c0_94 = arith.constant 0 : index
    %c0_95 = arith.constant 0 : index
    %130 = vector.load %arg13[%c2_93, %c0_94, %c0_95] : memref<4x32x16xbf16, #tpu.memory_space<vmem>>, vector<1x32x16xbf16>
    %131 = vector.shape_cast %130 : vector<1x32x16xbf16> to vector<32x16xbf16>
    %cst_96 = arith.constant dense<0.000000e+00> : vector<32x8xf32>
    %132 = tpu.matmul %131, %115, %cst_96 {dimension_numbers = #tpu.dot_dimension_numbers<[1], [0], [0], [1], [0, 0, 1, 1], [], []>} : vector<32x16xbf16>, vector<16x8xbf16>, vector<32x8xf32> -> vector<32x8xf32>
    %c2_97 = arith.constant 2 : index
    %c0_98 = arith.constant 0 : index
    %c0_99 = arith.constant 0 : index
    %133 = vector.load %arg14[%c2_97, %c0_98, %c0_99] : memref<4x32x1xf32, #tpu.memory_space<vmem>>, vector<1x32x1xf32>
    %134 = vector.shape_cast %133 : vector<1x32x1xf32> to vector<32x1xf32>
    %135 = vector.broadcast %134 : vector<32x1xf32> to vector<32x8xf32>
    %136 = arith.addf %132, %135 : vector<32x8xf32>
    %c3_100 = arith.constant 3 : index
    %c0_101 = arith.constant 0 : index
    %c0_102 = arith.constant 0 : index
    %137 = vector.load %arg13[%c3_100, %c0_101, %c0_102] : memref<4x32x16xbf16, #tpu.memory_space<vmem>>, vector<1x32x16xbf16>
    %138 = vector.shape_cast %137 : vector<1x32x16xbf16> to vector<32x16xbf16>
    %cst_103 = arith.constant dense<0.000000e+00> : vector<32x8xf32>
    %139 = tpu.matmul %138, %115, %cst_103 {dimension_numbers = #tpu.dot_dimension_numbers<[1], [0], [0], [1], [0, 0, 1, 1], [], []>} : vector<32x16xbf16>, vector<16x8xbf16>, vector<32x8xf32> -> vector<32x8xf32>
    %c3_104 = arith.constant 3 : index
    %c0_105 = arith.constant 0 : index
    %c0_106 = arith.constant 0 : index
    %140 = vector.load %arg14[%c3_104, %c0_105, %c0_106] : memref<4x32x1xf32, #tpu.memory_space<vmem>>, vector<1x32x1xf32>
    %141 = vector.shape_cast %140 : vector<1x32x1xf32> to vector<32x1xf32>
    %142 = vector.broadcast %141 : vector<32x1xf32> to vector<32x8xf32>
    %143 = arith.addf %139, %142 : vector<32x8xf32>
    %144 = tpu.concatenate %122, %129, %136, %143 in 1 : vector<32x8xf32>, vector<32x8xf32>, vector<32x8xf32>, vector<32x8xf32> -> vector<32x32xf32>
    %145 = arith.truncf %144 : vector<32x32xf32> to vector<32x32xbf16>
    %c0_107 = arith.constant 0 : index
    %c0_108 = arith.constant 0 : index
    %146 = vector.load %arg16[%c0_107, %c0_108] : memref<16x1xf32, #tpu.memory_space<vmem>>, vector<16x1xf32>
    %c1_109 = arith.constant 1 : index
    %c0_110 = arith.constant 0 : index
    %c0_111 = arith.constant 0 : index
    %147 = vector.load %arg15[%c1_109, %c0_110, %c0_111] : memref<4x16x32xbf16, #tpu.memory_space<vmem>>, vector<1x16x32xbf16>
    %148 = vector.shape_cast %147 : vector<1x16x32xbf16> to vector<16x32xbf16>
    %cst_112 = arith.constant dense<0.000000e+00> : vector<16x32xf32>
    %149 = tpu.matmul %148, %145, %cst_112 {dimension_numbers = #tpu.dot_dimension_numbers<[1], [0], [0], [1], [0, 0, 1, 1], [], []>} : vector<16x32xbf16>, vector<32x32xbf16>, vector<16x32xf32> -> vector<16x32xf32>
    %c3_113 = arith.constant 3 : index
    %c0_114 = arith.constant 0 : index
    %c0_115 = arith.constant 0 : index
    %150 = vector.load %arg15[%c3_113, %c0_114, %c0_115] : memref<4x16x32xbf16, #tpu.memory_space<vmem>>, vector<1x16x32xbf16>
    %151 = vector.shape_cast %150 : vector<1x16x32xbf16> to vector<16x32xbf16>
    %cst_116 = arith.constant 0.000000e+00 : bf16
    %152 = vector.broadcast %cst_116 : bf16 to vector<32x8xbf16>
    %153 = vector.extract_strided_slice %145 {offsets = [0, 0], sizes = [32, 24], strides = [1, 1]} : vector<32x32xbf16> to vector<32x24xbf16>
    %154 = tpu.concatenate %152, %153 in 1 : vector<32x8xbf16>, vector<32x24xbf16> -> vector<32x32xbf16>
    %cst_117 = arith.constant dense<0.000000e+00> : vector<16x32xf32>
    %155 = tpu.matmul %151, %154, %cst_117 {dimension_numbers = #tpu.dot_dimension_numbers<[1], [0], [0], [1], [0, 0, 1, 1], [], []>} : vector<16x32xbf16>, vector<32x32xbf16>, vector<16x32xf32> -> vector<16x32xf32>
    %156 = arith.addf %149, %155 : vector<16x32xf32>
    %157 = vector.broadcast %146 : vector<16x1xf32> to vector<16x32xf32>
    %158 = arith.addf %156, %157 : vector<16x32xf32>
    %cst_118 = arith.constant 0.000000e+00 : f32
    %159 = vector.broadcast %cst_118 : f32 to vector<16x32xf32>
    %160 = arith.cmpf oge, %158, %159 : vector<16x32xf32>
    %cst_119 = arith.constant 5.000000e-01 : f32
    %161 = vector.broadcast %cst_119 : f32 to vector<16x32xf32>
    %162 = arith.mulf %161, %158 : vector<16x32xf32>
    %163 = arith.select %160, %158, %162 : vector<16x32xi1>, vector<16x32xf32>
    %c2_120 = arith.constant 2 : index
    %c0_121 = arith.constant 0 : index
    %c0_122 = arith.constant 0 : index
    %164 = vector.load %arg15[%c2_120, %c0_121, %c0_122] : memref<4x16x32xbf16, #tpu.memory_space<vmem>>, vector<1x16x32xbf16>
    %165 = vector.shape_cast %164 : vector<1x16x32xbf16> to vector<16x32xbf16>
    %cst_123 = arith.constant dense<0.000000e+00> : vector<16x32xf32>
    %166 = tpu.matmul %165, %145, %cst_123 {dimension_numbers = #tpu.dot_dimension_numbers<[1], [0], [0], [1], [0, 0, 1, 1], [], []>} : vector<16x32xbf16>, vector<32x32xbf16>, vector<16x32xf32> -> vector<16x32xf32>
    %c0_124 = arith.constant 0 : index
    %c0_125 = arith.constant 0 : index
    %c0_126 = arith.constant 0 : index
    %167 = vector.load %arg15[%c0_124, %c0_125, %c0_126] : memref<4x16x32xbf16, #tpu.memory_space<vmem>>, vector<1x16x32xbf16>
    %168 = vector.shape_cast %167 : vector<1x16x32xbf16> to vector<16x32xbf16>
    %cst_127 = arith.constant 0.000000e+00 : bf16
    %169 = vector.broadcast %cst_127 : bf16 to vector<32x8xbf16>
    %170 = vector.extract_strided_slice %145 {offsets = [0, 8], sizes = [32, 24], strides = [1, 1]} : vector<32x32xbf16> to vector<32x24xbf16>
    %171 = tpu.concatenate %170, %169 in 1 : vector<32x24xbf16>, vector<32x8xbf16> -> vector<32x32xbf16>
    %cst_128 = arith.constant dense<0.000000e+00> : vector<16x32xf32>
    %172 = tpu.matmul %168, %171, %cst_128 {dimension_numbers = #tpu.dot_dimension_numbers<[1], [0], [0], [1], [0, 0, 1, 1], [], []>} : vector<16x32xbf16>, vector<32x32xbf16>, vector<16x32xf32> -> vector<16x32xf32>
    %173 = arith.addf %166, %172 : vector<16x32xf32>
    %174 = vector.broadcast %146 : vector<16x1xf32> to vector<16x32xf32>
    %175 = arith.addf %173, %174 : vector<16x32xf32>
    %cst_129 = arith.constant 0.000000e+00 : f32
    %176 = vector.broadcast %cst_129 : f32 to vector<16x32xf32>
    %177 = arith.cmpf oge, %175, %176 : vector<16x32xf32>
    %cst_130 = arith.constant 5.000000e-01 : f32
    %178 = vector.broadcast %cst_130 : f32 to vector<16x32xf32>
    %179 = arith.mulf %178, %175 : vector<16x32xf32>
    %180 = arith.select %177, %175, %179 : vector<16x32xi1>, vector<16x32xf32>
    %181 = arith.truncf %163 : vector<16x32xf32> to vector<16x32xbf16>
    %c0_131 = arith.constant 0 : index
    %c0_132 = arith.constant 0 : index
    %182 = vector.load %arg17[%c0_131, %c0_132] : memref<32x64xbf16, #tpu.memory_space<vmem>>, vector<32x64xbf16>
    %cst_133 = arith.constant dense<0.000000e+00> : vector<16x64xf32>
    %183 = tpu.matmul %181, %182, %cst_133 {dimension_numbers = #tpu.dot_dimension_numbers<[1], [0], [0], [1], [0, 0, 1, 1], [], []>} : vector<16x32xbf16>, vector<32x64xbf16>, vector<16x64xf32> -> vector<16x64xf32>
    %184 = arith.truncf %180 : vector<16x32xf32> to vector<16x32xbf16>
    %c0_134 = arith.constant 0 : index
    %c0_135 = arith.constant 0 : index
    %185 = vector.load %arg18[%c0_134, %c0_135] : memref<32x64xbf16, #tpu.memory_space<vmem>>, vector<32x64xbf16>
    %cst_136 = arith.constant dense<0.000000e+00> : vector<16x64xf32>
    %186 = tpu.matmul %184, %185, %cst_136 {dimension_numbers = #tpu.dot_dimension_numbers<[1], [0], [0], [1], [0, 0, 1, 1], [], []>} : vector<16x32xbf16>, vector<32x64xbf16>, vector<16x64xf32> -> vector<16x64xf32>
    %187 = arith.addf %183, %186 : vector<16x64xf32>
    %188 = arith.truncf %187 : vector<16x64xf32> to vector<16x64xbf16>
    %c0_137 = arith.constant 0 : index
    %c0_138 = arith.constant 0 : index
    %189 = vector.load %arg20[%c0_137, %c0_138] : memref<8x1xf32, #tpu.memory_space<vmem>>, vector<8x1xf32>
    %c1_139 = arith.constant 1 : index
    %c0_140 = arith.constant 0 : index
    %c0_141 = arith.constant 0 : index
    %190 = vector.load %arg19[%c1_139, %c0_140, %c0_141] : memref<4x8x16xbf16, #tpu.memory_space<vmem>>, vector<1x8x16xbf16>
    %191 = vector.shape_cast %190 : vector<1x8x16xbf16> to vector<8x16xbf16>
    %cst_142 = arith.constant dense<0.000000e+00> : vector<8x64xf32>
    %192 = tpu.matmul %191, %188, %cst_142 {dimension_numbers = #tpu.dot_dimension_numbers<[1], [0], [0], [1], [0, 0, 1, 1], [], []>} : vector<8x16xbf16>, vector<16x64xbf16>, vector<8x64xf32> -> vector<8x64xf32>
    %c3_143 = arith.constant 3 : index
    %c0_144 = arith.constant 0 : index
    %c0_145 = arith.constant 0 : index
    %193 = vector.load %arg19[%c3_143, %c0_144, %c0_145] : memref<4x8x16xbf16, #tpu.memory_space<vmem>>, vector<1x8x16xbf16>
    %194 = vector.shape_cast %193 : vector<1x8x16xbf16> to vector<8x16xbf16>
    %cst_146 = arith.constant 0.000000e+00 : bf16
    %195 = vector.broadcast %cst_146 : bf16 to vector<16x8xbf16>
    %196 = vector.extract_strided_slice %188 {offsets = [0, 0], sizes = [16, 56], strides = [1, 1]} : vector<16x64xbf16> to vector<16x56xbf16>
    %197 = tpu.concatenate %195, %196 in 1 : vector<16x8xbf16>, vector<16x56xbf16> -> vector<16x64xbf16>
    %cst_147 = arith.constant dense<0.000000e+00> : vector<8x64xf32>
    %198 = tpu.matmul %194, %197, %cst_147 {dimension_numbers = #tpu.dot_dimension_numbers<[1], [0], [0], [1], [0, 0, 1, 1], [], []>} : vector<8x16xbf16>, vector<16x64xbf16>, vector<8x64xf32> -> vector<8x64xf32>
    %199 = arith.addf %192, %198 : vector<8x64xf32>
    %200 = vector.broadcast %189 : vector<8x1xf32> to vector<8x64xf32>
    %201 = arith.addf %199, %200 : vector<8x64xf32>
    %cst_148 = arith.constant 0.000000e+00 : f32
    %202 = vector.broadcast %cst_148 : f32 to vector<8x64xf32>
    %203 = arith.cmpf oge, %201, %202 : vector<8x64xf32>
    %cst_149 = arith.constant 5.000000e-01 : f32
    %204 = vector.broadcast %cst_149 : f32 to vector<8x64xf32>
    %205 = arith.mulf %204, %201 : vector<8x64xf32>
    %206 = arith.select %203, %201, %205 : vector<8x64xi1>, vector<8x64xf32>
    %c2_150 = arith.constant 2 : index
    %c0_151 = arith.constant 0 : index
    %c0_152 = arith.constant 0 : index
    %207 = vector.load %arg19[%c2_150, %c0_151, %c0_152] : memref<4x8x16xbf16, #tpu.memory_space<vmem>>, vector<1x8x16xbf16>
    %208 = vector.shape_cast %207 : vector<1x8x16xbf16> to vector<8x16xbf16>
    %cst_153 = arith.constant dense<0.000000e+00> : vector<8x64xf32>
    %209 = tpu.matmul %208, %188, %cst_153 {dimension_numbers = #tpu.dot_dimension_numbers<[1], [0], [0], [1], [0, 0, 1, 1], [], []>} : vector<8x16xbf16>, vector<16x64xbf16>, vector<8x64xf32> -> vector<8x64xf32>
    %c0_154 = arith.constant 0 : index
    %c0_155 = arith.constant 0 : index
    %c0_156 = arith.constant 0 : index
    %210 = vector.load %arg19[%c0_154, %c0_155, %c0_156] : memref<4x8x16xbf16, #tpu.memory_space<vmem>>, vector<1x8x16xbf16>
    %211 = vector.shape_cast %210 : vector<1x8x16xbf16> to vector<8x16xbf16>
    %cst_157 = arith.constant 0.000000e+00 : bf16
    %212 = vector.broadcast %cst_157 : bf16 to vector<16x8xbf16>
    %213 = vector.extract_strided_slice %188 {offsets = [0, 8], sizes = [16, 56], strides = [1, 1]} : vector<16x64xbf16> to vector<16x56xbf16>
    %214 = tpu.concatenate %213, %212 in 1 : vector<16x56xbf16>, vector<16x8xbf16> -> vector<16x64xbf16>
    %cst_158 = arith.constant dense<0.000000e+00> : vector<8x64xf32>
    %215 = tpu.matmul %211, %214, %cst_158 {dimension_numbers = #tpu.dot_dimension_numbers<[1], [0], [0], [1], [0, 0, 1, 1], [], []>} : vector<8x16xbf16>, vector<16x64xbf16>, vector<8x64xf32> -> vector<8x64xf32>
    %216 = arith.addf %209, %215 : vector<8x64xf32>
    %217 = vector.broadcast %189 : vector<8x1xf32> to vector<8x64xf32>
    %218 = arith.addf %216, %217 : vector<8x64xf32>
    %cst_159 = arith.constant 0.000000e+00 : f32
    %219 = vector.broadcast %cst_159 : f32 to vector<8x64xf32>
    %220 = arith.cmpf oge, %218, %219 : vector<8x64xf32>
    %cst_160 = arith.constant 5.000000e-01 : f32
    %221 = vector.broadcast %cst_160 : f32 to vector<8x64xf32>
    %222 = arith.mulf %221, %218 : vector<8x64xf32>
    %223 = arith.select %220, %218, %222 : vector<8x64xi1>, vector<8x64xf32>
    %224 = arith.truncf %206 : vector<8x64xf32> to vector<8x64xbf16>
    %c0_161 = arith.constant 0 : index
    %c0_162 = arith.constant 0 : index
    %225 = vector.load %arg21[%c0_161, %c0_162] : memref<64x128xbf16, #tpu.memory_space<vmem>>, vector<64x128xbf16>
    %cst_163 = arith.constant dense<0.000000e+00> : vector<8x128xf32>
    %226 = tpu.matmul %224, %225, %cst_163 {dimension_numbers = #tpu.dot_dimension_numbers<[1], [0], [0], [1], [0, 0, 1, 1], [], []>} : vector<8x64xbf16>, vector<64x128xbf16>, vector<8x128xf32> -> vector<8x128xf32>
    %227 = arith.truncf %223 : vector<8x64xf32> to vector<8x64xbf16>
    %c0_164 = arith.constant 0 : index
    %c0_165 = arith.constant 0 : index
    %228 = vector.load %arg22[%c0_164, %c0_165] : memref<64x128xbf16, #tpu.memory_space<vmem>>, vector<64x128xbf16>
    %cst_166 = arith.constant dense<0.000000e+00> : vector<8x128xf32>
    %229 = tpu.matmul %227, %228, %cst_166 {dimension_numbers = #tpu.dot_dimension_numbers<[1], [0], [0], [1], [0, 0, 1, 1], [], []>} : vector<8x64xbf16>, vector<64x128xbf16>, vector<8x128xf32> -> vector<8x128xf32>
    %230 = arith.addf %226, %229 : vector<8x128xf32>
    %231 = arith.truncf %230 : vector<8x128xf32> to vector<8x128xbf16>
    %c0_167 = arith.constant 0 : index
    %c0_168 = arith.constant 0 : index
    %232 = vector.load %arg24[%c0_167, %c0_168] : memref<4x1xf32, #tpu.memory_space<vmem>>, vector<4x1xf32>
    %c1_169 = arith.constant 1 : index
    %c0_170 = arith.constant 0 : index
    %c0_171 = arith.constant 0 : index
    %233 = vector.load %arg23[%c1_169, %c0_170, %c0_171] : memref<4x4x8xbf16, #tpu.memory_space<vmem>>, vector<1x4x8xbf16>
    %234 = vector.shape_cast %233 : vector<1x4x8xbf16> to vector<4x8xbf16>
    %cst_172 = arith.constant dense<0.000000e+00> : vector<4x128xf32>
    %235 = tpu.matmul %234, %231, %cst_172 {dimension_numbers = #tpu.dot_dimension_numbers<[1], [0], [0], [1], [0, 0, 1, 1], [], []>} : vector<4x8xbf16>, vector<8x128xbf16>, vector<4x128xf32> -> vector<4x128xf32>
    %c3_173 = arith.constant 3 : index
    %c0_174 = arith.constant 0 : index
    %c0_175 = arith.constant 0 : index
    %236 = vector.load %arg23[%c3_173, %c0_174, %c0_175] : memref<4x4x8xbf16, #tpu.memory_space<vmem>>, vector<1x4x8xbf16>
    %237 = vector.shape_cast %236 : vector<1x4x8xbf16> to vector<4x8xbf16>
    %cst_176 = arith.constant 0.000000e+00 : bf16
    %238 = vector.broadcast %cst_176 : bf16 to vector<8x8xbf16>
    %239 = vector.extract_strided_slice %231 {offsets = [0, 0], sizes = [8, 120], strides = [1, 1]} : vector<8x128xbf16> to vector<8x120xbf16>
    %240 = tpu.concatenate %238, %239 in 1 : vector<8x8xbf16>, vector<8x120xbf16> -> vector<8x128xbf16>
    %cst_177 = arith.constant dense<0.000000e+00> : vector<4x128xf32>
    %241 = tpu.matmul %237, %240, %cst_177 {dimension_numbers = #tpu.dot_dimension_numbers<[1], [0], [0], [1], [0, 0, 1, 1], [], []>} : vector<4x8xbf16>, vector<8x128xbf16>, vector<4x128xf32> -> vector<4x128xf32>
    %242 = arith.addf %235, %241 : vector<4x128xf32>
    %243 = vector.broadcast %232 : vector<4x1xf32> to vector<4x128xf32>
    %244 = arith.addf %242, %243 : vector<4x128xf32>
    %cst_178 = arith.constant 0.000000e+00 : f32
    %245 = vector.broadcast %cst_178 : f32 to vector<4x128xf32>
    %246 = arith.cmpf oge, %244, %245 : vector<4x128xf32>
    %cst_179 = arith.constant 5.000000e-01 : f32
    %247 = vector.broadcast %cst_179 : f32 to vector<4x128xf32>
    %248 = arith.mulf %247, %244 : vector<4x128xf32>
    %249 = arith.select %246, %244, %248 : vector<4x128xi1>, vector<4x128xf32>
    %c2_180 = arith.constant 2 : index
    %c0_181 = arith.constant 0 : index
    %c0_182 = arith.constant 0 : index
    %250 = vector.load %arg23[%c2_180, %c0_181, %c0_182] : memref<4x4x8xbf16, #tpu.memory_space<vmem>>, vector<1x4x8xbf16>
    %251 = vector.shape_cast %250 : vector<1x4x8xbf16> to vector<4x8xbf16>
    %cst_183 = arith.constant dense<0.000000e+00> : vector<4x128xf32>
    %252 = tpu.matmul %251, %231, %cst_183 {dimension_numbers = #tpu.dot_dimension_numbers<[1], [0], [0], [1], [0, 0, 1, 1], [], []>} : vector<4x8xbf16>, vector<8x128xbf16>, vector<4x128xf32> -> vector<4x128xf32>
    %c0_184 = arith.constant 0 : index
    %c0_185 = arith.constant 0 : index
    %c0_186 = arith.constant 0 : index
    %253 = vector.load %arg23[%c0_184, %c0_185, %c0_186] : memref<4x4x8xbf16, #tpu.memory_space<vmem>>, vector<1x4x8xbf16>
    %254 = vector.shape_cast %253 : vector<1x4x8xbf16> to vector<4x8xbf16>
    %cst_187 = arith.constant 0.000000e+00 : bf16
    %255 = vector.broadcast %cst_187 : bf16 to vector<8x8xbf16>
    %256 = vector.extract_strided_slice %231 {offsets = [0, 8], sizes = [8, 120], strides = [1, 1]} : vector<8x128xbf16> to vector<8x120xbf16>
    %257 = tpu.concatenate %256, %255 in 1 : vector<8x120xbf16>, vector<8x8xbf16> -> vector<8x128xbf16>
    %cst_188 = arith.constant dense<0.000000e+00> : vector<4x128xf32>
    %258 = tpu.matmul %254, %257, %cst_188 {dimension_numbers = #tpu.dot_dimension_numbers<[1], [0], [0], [1], [0, 0, 1, 1], [], []>} : vector<4x8xbf16>, vector<8x128xbf16>, vector<4x128xf32> -> vector<4x128xf32>
    %259 = arith.addf %252, %258 : vector<4x128xf32>
    %260 = vector.broadcast %232 : vector<4x1xf32> to vector<4x128xf32>
    %261 = arith.addf %259, %260 : vector<4x128xf32>
    %cst_189 = arith.constant 0.000000e+00 : f32
    %262 = vector.broadcast %cst_189 : f32 to vector<4x128xf32>
    %263 = arith.cmpf oge, %261, %262 : vector<4x128xf32>
    %cst_190 = arith.constant 5.000000e-01 : f32
    %264 = vector.broadcast %cst_190 : f32 to vector<4x128xf32>
    %265 = arith.mulf %264, %261 : vector<4x128xf32>
    %266 = arith.select %263, %261, %265 : vector<4x128xi1>, vector<4x128xf32>
    %267 = arith.truncf %249 : vector<4x128xf32> to vector<4x128xbf16>
    %c0_191 = arith.constant 0 : index
    %c0_192 = arith.constant 0 : index
    %268 = vector.load %arg25[%c0_191, %c0_192] : memref<128x256xbf16, #tpu.memory_space<vmem>>, vector<128x256xbf16>
    %cst_193 = arith.constant dense<0.000000e+00> : vector<4x256xf32>
    %269 = tpu.matmul %267, %268, %cst_193 {dimension_numbers = #tpu.dot_dimension_numbers<[1], [0], [0], [1], [0, 0, 1, 1], [], []>} : vector<4x128xbf16>, vector<128x256xbf16>, vector<4x256xf32> -> vector<4x256xf32>
    %270 = arith.truncf %266 : vector<4x128xf32> to vector<4x128xbf16>
    %c0_194 = arith.constant 0 : index
    %c0_195 = arith.constant 0 : index
    %271 = vector.load %arg26[%c0_194, %c0_195] : memref<128x256xbf16, #tpu.memory_space<vmem>>, vector<128x256xbf16>
    %cst_196 = arith.constant dense<0.000000e+00> : vector<4x256xf32>
    %272 = tpu.matmul %270, %271, %cst_196 {dimension_numbers = #tpu.dot_dimension_numbers<[1], [0], [0], [1], [0, 0, 1, 1], [], []>} : vector<4x128xbf16>, vector<128x256xbf16>, vector<4x256xf32> -> vector<4x256xf32>
    %273 = arith.addf %269, %272 : vector<4x256xf32>
    %c0_197 = arith.constant 0 : index
    %c0_198 = arith.constant 0 : index
    %c0_199 = arith.constant 0 : index
    %274 = vector.load %arg27[%c0_197, %c0_198, %c0_199] : memref<1x4x256xf32, #tpu.memory_space<vmem>>, vector<1x4x256xf32>
    %275 = vector.shape_cast %274 : vector<1x4x256xf32> to vector<4x256xf32>
    %276 = vector.shape_cast %273 : vector<4x256xf32> to vector<1x4x256xf32>
    tpu.vector_store %arg27[%c0_197, %c0_198, %c0_199], %276 {strides = array<i32>} : memref<1x4x256xf32, #tpu.memory_space<vmem>>, vector<1x4x256xf32>,
    return
  }
  func.func @transform_0(%arg0: i32) -> (i32, i32, i32) {
    %c0_i32 = arith.constant 0 : i32
    %c0_i32_0 = arith.constant 0 : i32
    %c0_i32_1 = arith.constant 0 : i32
    return %arg0, %c0_i32, %c0_i32_0 : i32, i32, i32
  }
  func.func @transform_1(%arg0: i32) -> (i32, i32, i32) {
    %c0_i32 = arith.constant 0 : i32
    %c0_i32_0 = arith.constant 0 : i32
    %c0_i32_1 = arith.constant 0 : i32
    %c0_i32_2 = arith.constant 0 : i32
    return %c0_i32, %c0_i32_0, %c0_i32_1 : i32, i32, i32
  }
  func.func @transform_2(%arg0: i32) -> (i32, i32) {
    %c0_i32 = arith.constant 0 : i32
    %c0_i32_0 = arith.constant 0 : i32
    %c0_i32_1 = arith.constant 0 : i32
    return %c0_i32, %c0_i32_0 : i32, i32
  }
  func.func @transform_3(%arg0: i32) -> (i32, i32) {
    %c0_i32 = arith.constant 0 : i32
    %c0_i32_0 = arith.constant 0 : i32
    %c0_i32_1 = arith.constant 0 : i32
    return %c0_i32, %c0_i32_0 : i32, i32
  }
  func.func @transform_4(%arg0: i32) -> (i32, i32, i32) {
    %c0_i32 = arith.constant 0 : i32
    %c0_i32_0 = arith.constant 0 : i32
    %c0_i32_1 = arith.constant 0 : i32
    %c0_i32_2 = arith.constant 0 : i32
    return %c0_i32, %c0_i32_0, %c0_i32_1 : i32, i32, i32
  }
  func.func @transform_5(%arg0: i32) -> (i32, i32) {
    %c0_i32 = arith.constant 0 : i32
    %c0_i32_0 = arith.constant 0 : i32
    %c0_i32_1 = arith.constant 0 : i32
    return %c0_i32, %c0_i32_0 : i32, i32
  }
  func.func @transform_6(%arg0: i32) -> (i32, i32) {
    %c0_i32 = arith.constant 0 : i32
    %c0_i32_0 = arith.constant 0 : i32
    %c0_i32_1 = arith.constant 0 : i32
    return %c0_i32, %c0_i32_0 : i32, i32
  }
  func.func @transform_7(%arg0: i32) -> (i32, i32, i32) {
    %c0_i32 = arith.constant 0 : i32
    %c0_i32_0 = arith.constant 0 : i32
    %c0_i32_1 = arith.constant 0 : i32
    %c0_i32_2 = arith.constant 0 : i32
    return %c0_i32, %c0_i32_0, %c0_i32_1 : i32, i32, i32
  }
  func.func @transform_8(%arg0: i32) -> (i32, i32) {
    %c0_i32 = arith.constant 0 : i32
    %c0_i32_0 = arith.constant 0 : i32
    %c0_i32_1 = arith.constant 0 : i32
    return %c0_i32, %c0_i32_0 : i32, i32
  }
  func.func @transform_9(%arg0: i32) -> (i32, i32) {
    %c0_i32 = arith.constant 0 : i32
    %c0_i32_0 = arith.constant 0 : i32
    %c0_i32_1 = arith.constant 0 : i32
    return %c0_i32, %c0_i32_0 : i32, i32
  }
  func.func @transform_10(%arg0: i32) -> (i32, i32, i32) {
    %c0_i32 = arith.constant 0 : i32
    %c0_i32_0 = arith.constant 0 : i32
    %c0_i32_1 = arith.constant 0 : i32
    %c0_i32_2 = arith.constant 0 : i32
    return %c0_i32, %c0_i32_0, %c0_i32_1 : i32, i32, i32
  }
  func.func @transform_11(%arg0: i32) -> (i32, i32) {
    %c0_i32 = arith.constant 0 : i32
    %c0_i32_0 = arith.constant 0 : i32
    %c0_i32_1 = arith.constant 0 : i32
    return %c0_i32, %c0_i32_0 : i32, i32
  }
  func.func @transform_12(%arg0: i32) -> (i32, i32, i32) {
    %c0_i32 = arith.constant 0 : i32
    %c0_i32_0 = arith.constant 0 : i32
    %c0_i32_1 = arith.constant 0 : i32
    %c0_i32_2 = arith.constant 0 : i32
    return %c0_i32, %c0_i32_0, %c0_i32_1 : i32, i32, i32
  }
  func.func @transform_13(%arg0: i32) -> (i32, i32, i32) {
    %c0_i32 = arith.constant 0 : i32
    %c0_i32_0 = arith.constant 0 : i32
    %c0_i32_1 = arith.constant 0 : i32
    %c0_i32_2 = arith.constant 0 : i32
    return %c0_i32, %c0_i32_0, %c0_i32_1 : i32, i32, i32
  }
  func.func @transform_14(%arg0: i32) -> (i32, i32, i32) {
    %c0_i32 = arith.constant 0 : i32
    %c0_i32_0 = arith.constant 0 : i32
    %c0_i32_1 = arith.constant 0 : i32
    %c0_i32_2 = arith.constant 0 : i32
    return %c0_i32, %c0_i32_0, %c0_i32_1 : i32, i32, i32
  }
  func.func @transform_15(%arg0: i32) -> (i32, i32) {
    %c0_i32 = arith.constant 0 : i32
    %c0_i32_0 = arith.constant 0 : i32
    %c0_i32_1 = arith.constant 0 : i32
    return %c0_i32, %c0_i32_0 : i32, i32
  }
  func.func @transform_16(%arg0: i32) -> (i32, i32) {
    %c0_i32 = arith.constant 0 : i32
    %c0_i32_0 = arith.constant 0 : i32
    %c0_i32_1 = arith.constant 0 : i32
    return %c0_i32, %c0_i32_0 : i32, i32
  }
  func.func @transform_17(%arg0: i32) -> (i32, i32) {
    %c0_i32 = arith.constant 0 : i32
    %c0_i32_0 = arith.constant 0 : i32
    %c0_i32_1 = arith.constant 0 : i32
    return %c0_i32, %c0_i32_0 : i32, i32
  }
  func.func @transform_18(%arg0: i32) -> (i32, i32, i32) {
    %c0_i32 = arith.constant 0 : i32
    %c0_i32_0 = arith.constant 0 : i32
    %c0_i32_1 = arith.constant 0 : i32
    %c0_i32_2 = arith.constant 0 : i32
    return %c0_i32, %c0_i32_0, %c0_i32_1 : i32, i32, i32
  }
  func.func @transform_19(%arg0: i32) -> (i32, i32) {
    %c0_i32 = arith.constant 0 : i32
    %c0_i32_0 = arith.constant 0 : i32
    %c0_i32_1 = arith.constant 0 : i32
    return %c0_i32, %c0_i32_0 : i32, i32
  }
  func.func @transform_20(%arg0: i32) -> (i32, i32) {
    %c0_i32 = arith.constant 0 : i32
    %c0_i32_0 = arith.constant 0 : i32
    %c0_i32_1 = arith.constant 0 : i32
    return %c0_i32, %c0_i32_0 : i32, i32
  }
  func.func @transform_21(%arg0: i32) -> (i32, i32) {
    %c0_i32 = arith.constant 0 : i32
    %c0_i32_0 = arith.constant 0 : i32
    %c0_i32_1 = arith.constant 0 : i32
    return %c0_i32, %c0_i32_0 : i32, i32
  }
  func.func @transform_22(%arg0: i32) -> (i32, i32, i32) {
    %c0_i32 = arith.constant 0 : i32
    %c0_i32_0 = arith.constant 0 : i32
    %c0_i32_1 = arith.constant 0 : i32
    %c0_i32_2 = arith.constant 0 : i32
    return %c0_i32, %c0_i32_0, %c0_i32_1 : i32, i32, i32
  }
  func.func @transform_23(%arg0: i32) -> (i32, i32) {
    %c0_i32 = arith.constant 0 : i32
    %c0_i32_0 = arith.constant 0 : i32
    %c0_i32_1 = arith.constant 0 : i32
    return %c0_i32, %c0_i32_0 : i32, i32
  }
  func.func @transform_24(%arg0: i32) -> (i32, i32) {
    %c0_i32 = arith.constant 0 : i32
    %c0_i32_0 = arith.constant 0 : i32
    %c0_i32_1 = arith.constant 0 : i32
    return %c0_i32, %c0_i32_0 : i32, i32
  }
  func.func @transform_25(%arg0: i32) -> (i32, i32) {
    %c0_i32 = arith.constant 0 : i32
    %c0_i32_0 = arith.constant 0 : i32
    %c0_i32_1 = arith.constant 0 : i32
    return %c0_i32, %c0_i32_0 : i32, i32
  }
  func.func @transform_26(%arg0: i32) -> (i32, i32, i32) {
    %c0_i32 = arith.constant 0 : i32
    %c0_i32_0 = arith.constant 0 : i32
    %c0_i32_1 = arith.constant 0 : i32
    return %arg0, %c0_i32, %c0_i32_0 : i32, i32, i32
  }
}

</mosaic_0001>

<llo_original>
// kernel: _lambda_.1
$region0: #{_lambda_.1}
  #allocation0 [shape = 'u32[]', space=smem, size = 0x4, offset = 0x4, fixed_abs, tag = 'smem constant byte address 0x4 - core index']
  #allocation1 [shape = 'u32[144,128]{1,0:T(1,128)}', space=vmem, size = 0x12000, scoped, tag = 'internal scratch']
  %s0 = inlined_call_operand.vmem [shape: f32[2,4,256], index: 0, kind: input, shape index: {}]
  %s1 = inlined_call_operand.vmem [shape: bf16[3,8,4], index: 1, kind: input, shape index: {}]
  %s2 = inlined_call_operand.vmem [shape: f32[8,1], index: 2, kind: input, shape index: {}]
  %s3 = inlined_call_operand.vmem [shape: bf16[256,128], index: 3, kind: input, shape index: {}]
  %s4 = inlined_call_operand.vmem [shape: bf16[3,16,8], index: 4, kind: input, shape index: {}]
  %s5 = inlined_call_operand.vmem [shape: f32[16,1], index: 5, kind: input, shape index: {}]
  %s6 = inlined_call_operand.vmem [shape: bf16[128,64], index: 6, kind: input, shape index: {}]
  %s7 = inlined_call_operand.vmem [shape: bf16[3,32,16], index: 7, kind: input, shape index: {}]
  %s8 = inlined_call_operand.vmem [shape: f32[32,1], index: 8, kind: input, shape index: {}]
  %s9 = inlined_call_operand.vmem [shape: bf16[64,32], index: 9, kind: input, shape index: {}]
  %s10 = inlined_call_operand.vmem [shape: bf16[4,16,32], index: 10, kind: input, shape index: {}]
  %s11 = inlined_call_operand.vmem [shape: f32[16,1], index: 11, kind: input, shape index: {}]
  %s12 = inlined_call_operand.vmem [shape: bf16[4,32,16], index: 12, kind: input, shape index: {}]
  %s13 = inlined_call_operand.vmem [shape: f32[4,32,1], index: 13, kind: input, shape index: {}]
  %s14 = inlined_call_operand.vmem [shape: bf16[4,16,32], index: 14, kind: input, shape index: {}]
  %s15 = inlined_call_operand.vmem [shape: f32[16,1], index: 15, kind: input, shape index: {}]
  %s16 = inlined_call_operand.vmem [shape: bf16[32,64], index: 16, kind: input, shape index: {}]
  %s17 = inlined_call_operand.vmem [shape: bf16[32,64], index: 17, kind: input, shape index: {}]
  %s18 = inlined_call_operand.vmem [shape: bf16[4,8,16], index: 18, kind: input, shape index: {}]
  %s19 = inlined_call_operand.vmem [shape: f32[8,1], index: 19, kind: input, shape index: {}]
  %s20 = inlined_call_operand.vmem [shape: bf16[64,128], index: 20, kind: input, shape index: {}]
  %s21 = inlined_call_operand.vmem [shape: bf16[64,128], index: 21, kind: input, shape index: {}]
  %s22 = inlined_call_operand.vmem [shape: bf16[4,4,8], index: 22, kind: input, shape index: {}]
  %s23 = inlined_call_operand.vmem [shape: f32[4,1], index: 23, kind: input, shape index: {}]
  %s24 = inlined_call_operand.vmem [shape: bf16[128,256], index: 24, kind: input, shape index: {}]
  %s25 = inlined_call_operand.vmem [shape: bf16[128,256], index: 25, kind: input, shape index: {}]
  %s26 = inlined_call_operand.vmem [shape: f32[2,4,256], index: 26, kind: output, shape index: {}]
  %s27 = sld [smem:[#allocation0]]
  $region137: #{_lambda_.1} parent=0
    _
  %s29 = ssub.s32 1, %s27
  %s30 = scalar_select 0, %s29, %s27
  loop: start=0, step=1, limit=4
  $region2: #{_lambda_.1} parent=0 // loop_pre_header
    _
  $region3: #{_lambda_.1} parent=0 // loop_header
    %s32 = sphi 0, %s36
    %p33 = scmp.ge.s32.totalorder %s32, 4
    %s42 = sphi 0, %s44
    %s45 = sphi 0, %s42
    %s46 = sphi 0, %s45
    %s62 = sphi 0, %s46
    %s66 = sphi 0, %s66
    %s68 = sphi 0, %s66
    %s69 = sphi 0, %s68
    %s83 = sphi 0, %s69
    %s87 = sphi 0, %s87
    %s89 = sphi 0, %s87
    %s90 = sphi 0, %s89
    %s104 = sphi 0, %s90
    %s108 = sphi 0, %s108
    %s110 = sphi 0, %s108
    %s111 = sphi 0, %s110
    %s125 = sphi 0, %s111
    %s129 = sphi 0, %s129
    %s131 = sphi 0, %s129
    %s132 = sphi 0, %s131
    %s146 = sphi 0, %s132
    %s150 = sphi 0, %s150
    %s152 = sphi 0, %s150
    %s153 = sphi 0, %s152
    %s167 = sphi 0, %s153
    %s171 = sphi 0, %s171
    %s173 = sphi 0, %s171
    %s174 = sphi 0, %s173
    %s188 = sphi 0, %s174
    %s192 = sphi 0, %s192
    %s194 = sphi 0, %s192
    %s195 = sphi 0, %s194
    %s209 = sphi 0, %s195
    %s213 = sphi 0, %s213
    %s215 = sphi 0, %s213
    %s216 = sphi 0, %s215
    %s230 = sphi 0, %s216
    %s234 = sphi 0, %s234
    %s236 = sphi 0, %s234
    %s237 = sphi 0, %s236
    %s251 = sphi 0, %s237
    %s255 = sphi 0, %s255
    %s257 = sphi 0, %s255
    %s258 = sphi 0, %s257
    %s272 = sphi 0, %s258
    %s276 = sphi 0, %s276
    %s278 = sphi 0, %s276
    %s279 = sphi 0, %s278
    %s293 = sphi 0, %s279
    %s297 = sphi 0, %s297
    %s299 = sphi 0, %s297
    %s300 = sphi 0, %s299
    %s314 = sphi 0, %s300
    %s318 = sphi 0, %s318
    %s320 = sphi 0, %s318
    %s321 = sphi 0, %s320
    %s335 = sphi 0, %s321
    %s339 = sphi 0, %s339
    %s341 = sphi 0, %s339
    %s342 = sphi 0, %s341
    %s356 = sphi 0, %s342
    %s360 = sphi 0, %s360
    %s362 = sphi 0, %s360
    %s363 = sphi 0, %s362
    %s377 = sphi 0, %s363
    %s381 = sphi 0, %s381
    %s383 = sphi 0, %s381
    %s384 = sphi 0, %s383
    %s398 = sphi 0, %s384
    %s402 = sphi 0, %s402
    %s404 = sphi 0, %s402
    %s405 = sphi 0, %s404
    %s419 = sphi 0, %s405
    %s423 = sphi 0, %s423
    %s425 = sphi 0, %s423
    %s426 = sphi 0, %s425
    %s440 = sphi 0, %s426
    %s444 = sphi 0, %s444
    %s446 = sphi 0, %s444
    %s447 = sphi 0, %s446
    %s461 = sphi 0, %s447
    %s465 = sphi 0, %s465
    %s467 = sphi 0, %s465
    %s468 = sphi 0, %s467
    %s482 = sphi 0, %s468
    %s486 = sphi 0, %s486
    %s488 = sphi 0, %s486
    %s489 = sphi 0, %s488
    %s503 = sphi 0, %s489
    %s507 = sphi 0, %s507
    %s509 = sphi 0, %s507
    %s510 = sphi 0, %s509
    %s524 = sphi 0, %s510
    %s528 = sphi 0, %s528
    %s530 = sphi 0, %s528
    %s531 = sphi 0, %s530
    %s545 = sphi 0, %s531
    %s549 = sphi 0, %s549
    %s551 = sphi 0, %s549
    %s552 = sphi 0, %s551
    %s566 = sphi 0, %s552
    %s570 = sphi 0, %s570
    %s572 = sphi 0, %s570
    %s573 = sphi 0, %s572
    %s587 = sphi 0, %s573
    %s593 = sphi 0, %s595
    %s596 = sphi 0, %s593
    %s597 = sphi 0, %s596
    %s613 = sphi 0, %s597
  $region4: #{_lambda_.1} parent=0 // loop_header_branch
    %35 = sbr.rel (%p33) target = $region8
  $region5: #{_lambda_.1} parent=0 // loop_body
    %s37 = ssub.s32 %s32, 1
    %s38 = ssub.s32 %s32, 2
    %s39 = sadd.s32 %s32, 1
    %s40 = ssub.s32 %s32, %s39
    %p41 = scmp.eq.s32.totalorder %s40, 0
    %s43 = sadd.s32 %s42, 1
    %s44 = scalar_select %p41, %s42, %s43
    %p47 = pneg %p41
    %p48 = scmp.eq.s32.totalorder %s32, 1
    %p49 = por %p47, %p48
    %p50 = scmp.ne.s32.totalorder %s42, %s45
    %p51 = scmp.eq.s32.totalorder %s32, 0
    %p52 = por %p50, %p51
    %p53 = scmp.ne.s32.totalorder %s42, %s45
    %p54 = scmp.eq.s32.totalorder %s37, 1
    %p55 = por %p53, %p54
    %p56 = scmp.ne.s32.totalorder %s45, %s46
    %p57 = scmp.eq.s32.totalorder %s37, 0
    %p58 = por %p56, %p57
    %p59 = scmp.ne.s32.totalorder %s45, %s46
    %p60 = scmp.eq.s32.totalorder %s38, 1
    %p61 = por %p59, %p60
    %p63 = scmp.ne.s32.totalorder %s46, %s62
    %p64 = scmp.eq.s32.totalorder %s38, 0
    %p65 = por %p63, %p64
    %s67 = sadd.s32 %s66, 1
    %p70 = scmp.eq.s32.totalorder %s32, 1
    %p71 = scmp.ne.s32.totalorder %s66, %s68
    %p72 = scmp.eq.s32.totalorder %s32, 0
    %p73 = por %p71, %p72
    %p74 = scmp.ne.s32.totalorder %s66, %s68
    %p75 = scmp.eq.s32.totalorder %s37, 1
    %p76 = por %p74, %p75
    %p77 = scmp.ne.s32.totalorder %s68, %s69
    %p78 = scmp.eq.s32.totalorder %s37, 0
    %p79 = por %p77, %p78
    %p80 = scmp.ne.s32.totalorder %s68, %s69
    %p81 = scmp.eq.s32.totalorder %s38, 1
    %p82 = por %p80, %p81
    %p84 = scmp.ne.s32.totalorder %s69, %s83
    %p85 = scmp.eq.s32.totalorder %s38, 0
    %p86 = por %p84, %p85
    %s88 = sadd.s32 %s87, 1
    %p91 = scmp.eq.s32.totalorder %s32, 1
    %p92 = scmp.ne.s32.totalorder %s87, %s89
    %p93 = scmp.eq.s32.totalorder %s32, 0
    %p94 = por %p92, %p93
    %p95 = scmp.ne.s32.totalorder %s87, %s89
    %p96 = scmp.eq.s32.totalorder %s37, 1
    %p97 = por %p95, %p96
    %p98 = scmp.ne.s32.totalorder %s89, %s90
    %p99 = scmp.eq.s32.totalorder %s37, 0
    %p100 = por %p98, %p99
    %p101 = scmp.ne.s32.totalorder %s89, %s90
    %p102 = scmp.eq.s32.totalorder %s38, 1
    %p103 = por %p101, %p102
    %p105 = scmp.ne.s32.totalorder %s90, %s104
    %p106 = scmp.eq.s32.totalorder %s38, 0
    %p107 = por %p105, %p106
    %s109 = sadd.s32 %s108, 1
    %p112 = scmp.eq.s32.totalorder %s32, 1
    %p113 = scmp.ne.s32.totalorder %s108, %s110
    %p114 = scmp.eq.s32.totalorder %s32, 0
    %p115 = por %p113, %p114
    %p116 = scmp.ne.s32.totalorder %s108, %s110
    %p117 = scmp.eq.s32.totalorder %s37, 1
    %p118 = por %p116, %p117
    %p119 = scmp.ne.s32.totalorder %s110, %s111
    %p120 = scmp.eq.s32.totalorder %s37, 0
    %p121 = por %p119, %p120
    %p122 = scmp.ne.s32.totalorder %s110, %s111
    %p123 = scmp.eq.s32.totalorder %s38, 1
    %p124 = por %p122, %p123
    %p126 = scmp.ne.s32.totalorder %s111, %s125
    %p127 = scmp.eq.s32.totalorder %s38, 0
    %p128 = por %p126, %p127
    %s130 = sadd.s32 %s129, 1
    %p133 = scmp.eq.s32.totalorder %s32, 1
    %p134 = scmp.ne.s32.totalorder %s129, %s131
    %p135 = scmp.eq.s32.totalorder %s32, 0
    %p136 = por %p134, %p135
    %p137 = scmp.ne.s32.totalorder %s129, %s131
    %p138 = scmp.eq.s32.totalorder %s37, 1
    %p139 = por %p137, %p138
    %p140 = scmp.ne.s32.totalorder %s131, %s132
    %p141 = scmp.eq.s32.totalorder %s37, 0
    %p142 = por %p140, %p141
    %p143 = scmp.ne.s32.totalorder %s131, %s132
    %p144 = scmp.eq.s32.totalorder %s38, 1
    %p145 = por %p143, %p144
    %p147 = scmp.ne.s32.totalorder %s132, %s146
    %p148 = scmp.eq.s32.totalorder %s38, 0
    %p149 = por %p147, %p148
    %s151 = sadd.s32 %s150, 1
    %p154 = scmp.eq.s32.totalorder %s32, 1
    %p155 = scmp.ne.s32.totalorder %s150, %s152
    %p156 = scmp.eq.s32.totalorder %s32, 0
    %p157 = por %p155, %p156
    %p158 = scmp.ne.s32.totalorder %s150, %s152
    %p159 = scmp.eq.s32.totalorder %s37, 1
    %p160 = por %p158, %p159
    %p161 = scmp.ne.s32.totalorder %s152, %s153
    %p162 = scmp.eq.s32.totalorder %s37, 0
    %p163 = por %p161, %p162
    %p164 = scmp.ne.s32.totalorder %s152, %s153
    %p165 = scmp.eq.s32.totalorder %s38, 1
    %p166 = por %p164, %p165
    %p168 = scmp.ne.s32.totalorder %s153, %s167
    %p169 = scmp.eq.s32.totalorder %s38, 0
    %p170 = por %p168, %p169
    %s172 = sadd.s32 %s171, 1
    %p175 = scmp.eq.s32.totalorder %s32, 1
    %p176 = scmp.ne.s32.totalorder %s171, %s173
    %p177 = scmp.eq.s32.totalorder %s32, 0
    %p178 = por %p176, %p177
    %p179 = scmp.ne.s32.totalorder %s171, %s173
    %p180 = scmp.eq.s32.totalorder %s37, 1
    %p181 = por %p179, %p180
    %p182 = scmp.ne.s32.totalorder %s173, %s174
    %p183 = scmp.eq.s32.totalorder %s37, 0
    %p184 = por %p182, %p183
    %p185 = scmp.ne.s32.totalorder %s173, %s174
    %p186 = scmp.eq.s32.totalorder %s38, 1
    %p187 = por %p185, %p186
    %p189 = scmp.ne.s32.totalorder %s174, %s188
    %p190 = scmp.eq.s32.totalorder %s38, 0
    %p191 = por %p189, %p190
    %s193 = sadd.s32 %s192, 1
    %p196 = scmp.eq.s32.totalorder %s32, 1
    %p197 = scmp.ne.s32.totalorder %s192, %s194
    %p198 = scmp.eq.s32.totalorder %s32, 0
    %p199 = por %p197, %p198
    %p200 = scmp.ne.s32.totalorder %s192, %s194
    %p201 = scmp.eq.s32.totalorder %s37, 1
    %p202 = por %p200, %p201
    %p203 = scmp.ne.s32.totalorder %s194, %s195
    %p204 = scmp.eq.s32.totalorder %s37, 0
    %p205 = por %p203, %p204
    %p206 = scmp.ne.s32.totalorder %s194, %s195
    %p207 = scmp.eq.s32.totalorder %s38, 1
    %p208 = por %p206, %p207
    %p210 = scmp.ne.s32.totalorder %s195, %s209
    %p211 = scmp.eq.s32.totalorder %s38, 0
    %p212 = por %p210, %p211
    %s214 = sadd.s32 %s213, 1
    %p217 = scmp.eq.s32.totalorder %s32, 1
    %p218 = scmp.ne.s32.totalorder %s213, %s215
    %p219 = scmp.eq.s32.totalorder %s32, 0
    %p220 = por %p218, %p219
    %p221 = scmp.ne.s32.totalorder %s213, %s215
    %p222 = scmp.eq.s32.totalorder %s37, 1
    %p223 = por %p221, %p222
    %p224 = scmp.ne.s32.totalorder %s215, %s216
    %p225 = scmp.eq.s32.totalorder %s37, 0
    %p226 = por %p224, %p225
    %p227 = scmp.ne.s32.totalorder %s215, %s216
    %p228 = scmp.eq.s32.totalorder %s38, 1
    %p229 = por %p227, %p228
    %p231 = scmp.ne.s32.totalorder %s216, %s230
    %p232 = scmp.eq.s32.totalorder %s38, 0
    %p233 = por %p231, %p232
    %s235 = sadd.s32 %s234, 1
    %p238 = scmp.eq.s32.totalorder %s32, 1
    %p239 = scmp.ne.s32.totalorder %s234, %s236
    %p240 = scmp.eq.s32.totalorder %s32, 0
    %p241 = por %p239, %p240
    %p242 = scmp.ne.s32.totalorder %s234, %s236
    %p243 = scmp.eq.s32.totalorder %s37, 1
    %p244 = por %p242, %p243
    %p245 = scmp.ne.s32.totalorder %s236, %s237
    %p246 = scmp.eq.s32.totalorder %s37, 0
    %p247 = por %p245, %p246
    %p248 = scmp.ne.s32.totalorder %s236, %s237
    %p249 = scmp.eq.s32.totalorder %s38, 1
    %p250 = por %p248, %p249
    %p252 = scmp.ne.s32.totalorder %s237, %s251
    %p253 = scmp.eq.s32.totalorder %s38, 0
    %p254 = por %p252, %p253
    %s256 = sadd.s32 %s255, 1
    %p259 = scmp.eq.s32.totalorder %s32, 1
    %p260 = scmp.ne.s32.totalorder %s255, %s257
    %p261 = scmp.eq.s32.totalorder %s32, 0
    %p262 = por %p260, %p261
    %p263 = scmp.ne.s32.totalorder %s255, %s257
    %p264 = scmp.eq.s32.totalorder %s37, 1
    %p265 = por %p263, %p264
    %p266 = scmp.ne.s32.totalorder %s257, %s258
    %p267 = scmp.eq.s32.totalorder %s37, 0
    %p268 = por %p266, %p267
    %p269 = scmp.ne.s32.totalorder %s257, %s258
    %p270 = scmp.eq.s32.totalorder %s38, 1
    %p271 = por %p269, %p270
    %p273 = scmp.ne.s32.totalorder %s258, %s272
    %p274 = scmp.eq.s32.totalorder %s38, 0
    %p275 = por %p273, %p274
    %s277 = sadd.s32 %s276, 1
    %p280 = scmp.eq.s32.totalorder %s32, 1
    %p281 = scmp.ne.s32.totalorder %s276, %s278
    %p282 = scmp.eq.s32.totalorder %s32, 0
    %p283 = por %p281, %p282
    %p284 = scmp.ne.s32.totalorder %s276, %s278
    %p285 = scmp.eq.s32.totalorder %s37, 1
    %p286 = por %p284, %p285
    %p287 = scmp.ne.s32.totalorder %s278, %s279
    %p288 = scmp.eq.s32.totalorder %s37, 0
    %p289 = por %p287, %p288
    %p290 = scmp.ne.s32.totalorder %s278, %s279
    %p291 = scmp.eq.s32.totalorder %s38, 1
    %p292 = por %p290, %p291
    %p294 = scmp.ne.s32.totalorder %s279, %s293
    %p295 = scmp.eq.s32.totalorder %s38, 0
    %p296 = por %p294, %p295
    %s298 = sadd.s32 %s297, 1
    %p301 = scmp.eq.s32.totalorder %s32, 1
    %p302 = scmp.ne.s32.totalorder %s297, %s299
    %p303 = scmp.eq.s32.totalorder %s32, 0
    %p304 = por %p302, %p303
    %p305 = scmp.ne.s32.totalorder %s297, %s299
    %p306 = scmp.eq.s32.totalorder %s37, 1
    %p307 = por %p305, %p306
    %p308 = scmp.ne.s32.totalorder %s299, %s300
    %p309 = scmp.eq.s32.totalorder %s37, 0
    %p310 = por %p308, %p309
    %p311 = scmp.ne.s32.totalorder %s299, %s300
    %p312 = scmp.eq.s32.totalorder %s38, 1
    %p313 = por %p311, %p312
    %p315 = scmp.ne.s32.totalorder %s300, %s314
    %p316 = scmp.eq.s32.totalorder %s38, 0
    %p317 = por %p315, %p316
    %s319 = sadd.s32 %s318, 1
    %p322 = scmp.eq.s32.totalorder %s32, 1
    %p323 = scmp.ne.s32.totalorder %s318, %s320
    %p324 = scmp.eq.s32.totalorder %s32, 0
    %p325 = por %p323, %p324
    %p326 = scmp.ne.s32.totalorder %s318, %s320
    %p327 = scmp.eq.s32.totalorder %s37, 1
    %p328 = por %p326, %p327
    %p329 = scmp.ne.s32.totalorder %s320, %s321
    %p330 = scmp.eq.s32.totalorder %s37, 0
    %p331 = por %p329, %p330
    %p332 = scmp.ne.s32.totalorder %s320, %s321
    %p333 = scmp.eq.s32.totalorder %s38, 1
    %p334 = por %p332, %p333
    %p336 = scmp.ne.s32.totalorder %s321, %s335
    %p337 = scmp.eq.s32.totalorder %s38, 0
    %p338 = por %p336, %p337
    %s340 = sadd.s32 %s339, 1
    %p343 = scmp.eq.s32.totalorder %s32, 1
    %p344 = scmp.ne.s32.totalorder %s339, %s341
    %p345 = scmp.eq.s32.totalorder %s32, 0
    %p346 = por %p344, %p345
    %p347 = scmp.ne.s32.totalorder %s339, %s341
    %p348 = scmp.eq.s32.totalorder %s37, 1
    %p349 = por %p347, %p348
    %p350 = scmp.ne.s32.totalorder %s341, %s342
    %p351 = scmp.eq.s32.totalorder %s37, 0
    %p352 = por %p350, %p351
    %p353 = scmp.ne.s32.totalorder %s341, %s342
    %p354 = scmp.eq.s32.totalorder %s38, 1
    %p355 = por %p353, %p354
    %p357 = scmp.ne.s32.totalorder %s342, %s356
    %p358 = scmp.eq.s32.totalorder %s38, 0
    %p359 = por %p357, %p358
    %s361 = sadd.s32 %s360, 1
    %p364 = scmp.eq.s32.totalorder %s32, 1
    %p365 = scmp.ne.s32.totalorder %s360, %s362
    %p366 = scmp.eq.s32.totalorder %s32, 0
    %p367 = por %p365, %p366
    %p368 = scmp.ne.s32.totalorder %s360, %s362
    %p369 = scmp.eq.s32.totalorder %s37, 1
    %p370 = por %p368, %p369
    %p371 = scmp.ne.s32.totalorder %s362, %s363
    %p372 = scmp.eq.s32.totalorder %s37, 0
    %p373 = por %p371, %p372
    %p374 = scmp.ne.s32.totalorder %s362, %s363
    %p375 = scmp.eq.s32.totalorder %s38, 1
    %p376 = por %p374, %p375
    %p378 = scmp.ne.s32.totalorder %s363, %s377
    %p379 = scmp.eq.s32.totalorder %s38, 0
    %p380 = por %p378, %p379
    %s382 = sadd.s32 %s381, 1
    %p385 = scmp.eq.s32.totalorder %s32, 1
    %p386 = scmp.ne.s32.totalorder %s381, %s383
    %p387 = scmp.eq.s32.totalorder %s32, 0
    %p388 = por %p386, %p387
    %p389 = scmp.ne.s32.totalorder %s381, %s383
    %p390 = scmp.eq.s32.totalorder %s37, 1
    %p391 = por %p389, %p390
    %p392 = scmp.ne.s32.totalorder %s383, %s384
    %p393 = scmp.eq.s32.totalorder %s37, 0
    %p394 = por %p392, %p393
    %p395 = scmp.ne.s32.totalorder %s383, %s384
    %p396 = scmp.eq.s32.totalorder %s38, 1
    %p397 = por %p395, %p396
    %p399 = scmp.ne.s32.totalorder %s384, %s398
    %p400 = scmp.eq.s32.totalorder %s38, 0
    %p401 = por %p399, %p400
    %s403 = sadd.s32 %s402, 1
    %p406 = scmp.eq.s32.totalorder %s32, 1
    %p407 = scmp.ne.s32.totalorder %s402, %s404
    %p408 = scmp.eq.s32.totalorder %s32, 0
    %p409 = por %p407, %p408
    %p410 = scmp.ne.s32.totalorder %s402, %s404
    %p411 = scmp.eq.s32.totalorder %s37, 1
    %p412 = por %p410, %p411
    %p413 = scmp.ne.s32.totalorder %s404, %s405
    %p414 = scmp.eq.s32.totalorder %s37, 0
    %p415 = por %p413, %p414
    %p416 = scmp.ne.s32.totalorder %s404, %s405
    %p417 = scmp.eq.s32.totalorder %s38, 1
    %p418 = por %p416, %p417
    %p420 = scmp.ne.s32.totalorder %s405, %s419
    %p421 = scmp.eq.s32.totalorder %s38, 0
    %p422 = por %p420, %p421
    %s424 = sadd.s32 %s423, 1
    %p427 = scmp.eq.s32.totalorder %s32, 1
    %p428 = scmp.ne.s32.totalorder %s423, %s425
    %p429 = scmp.eq.s32.totalorder %s32, 0
    %p430 = por %p428, %p429
    %p431 = scmp.ne.s32.totalorder %s423, %s425
    %p432 = scmp.eq.s32.totalorder %s37, 1
    %p433 = por %p431, %p432
    %p434 = scmp.ne.s32.totalorder %s425, %s426
    %p435 = scmp.eq.s32.totalorder %s37, 0
    %p436 = por %p434, %p435
    %p437 = scmp.ne.s32.totalorder %s425, %s426
    %p438 = scmp.eq.s32.totalorder %s38, 1
    %p439 = por %p437, %p438
    %p441 = scmp.ne.s32.totalorder %s426, %s440
    %p442 = scmp.eq.s32.totalorder %s38, 0
    %p443 = por %p441, %p442
    %s445 = sadd.s32 %s444, 1
    %p448 = scmp.eq.s32.totalorder %s32, 1
    %p449 = scmp.ne.s32.totalorder %s444, %s446
    %p450 = scmp.eq.s32.totalorder %s32, 0
    %p451 = por %p449, %p450
    %p452 = scmp.ne.s32.totalorder %s444, %s446
    %p453 = scmp.eq.s32.totalorder %s37, 1
    %p454 = por %p452, %p453
    %p455 = scmp.ne.s32.totalorder %s446, %s447
    %p456 = scmp.eq.s32.totalorder %s37, 0
    %p457 = por %p455, %p456
    %p458 = scmp.ne.s32.totalorder %s446, %s447
    %p459 = scmp.eq.s32.totalorder %s38, 1
    %p460 = por %p458, %p459
    %p462 = scmp.ne.s32.totalorder %s447, %s461
    %p463 = scmp.eq.s32.totalorder %s38, 0
    %p464 = por %p462, %p463
    %s466 = sadd.s32 %s465, 1
    %p469 = scmp.eq.s32.totalorder %s32, 1
    %p470 = scmp.ne.s32.totalorder %s465, %s467
    %p471 = scmp.eq.s32.totalorder %s32, 0
    %p472 = por %p470, %p471
    %p473 = scmp.ne.s32.totalorder %s465, %s467
    %p474 = scmp.eq.s32.totalorder %s37, 1
    %p475 = por %p473, %p474
    %p476 = scmp.ne.s32.totalorder %s467, %s468
    %p477 = scmp.eq.s32.totalorder %s37, 0
    %p478 = por %p476, %p477
    %p479 = scmp.ne.s32.totalorder %s467, %s468
    %p480 = scmp.eq.s32.totalorder %s38, 1
    %p481 = por %p479, %p480
    %p483 = scmp.ne.s32.totalorder %s468, %s482
    %p484 = scmp.eq.s32.totalorder %s38, 0
    %p485 = por %p483, %p484
    %s487 = sadd.s32 %s486, 1
    %p490 = scmp.eq.s32.totalorder %s32, 1
    %p491 = scmp.ne.s32.totalorder %s486, %s488
    %p492 = scmp.eq.s32.totalorder %s32, 0
    %p493 = por %p491, %p492
    %p494 = scmp.ne.s32.totalorder %s486, %s488
    %p495 = scmp.eq.s32.totalorder %s37, 1
    %p496 = por %p494, %p495
    %p497 = scmp.ne.s32.totalorder %s488, %s489
    %p498 = scmp.eq.s32.totalorder %s37, 0
    %p499 = por %p497, %p498
    %p500 = scmp.ne.s32.totalorder %s488, %s489
    %p501 = scmp.eq.s32.totalorder %s38, 1
    %p502 = por %p500, %p501
    %p504 = scmp.ne.s32.totalorder %s489, %s503
    %p505 = scmp.eq.s32.totalorder %s38, 0
    %p506 = por %p504, %p505
    %s508 = sadd.s32 %s507, 1
    %p511 = scmp.eq.s32.totalorder %s32, 1
    %p512 = scmp.ne.s32.totalorder %s507, %s509
    %p513 = scmp.eq.s32.totalorder %s32, 0
    %p514 = por %p512, %p513
    %p515 = scmp.ne.s32.totalorder %s507, %s509
    %p516 = scmp.eq.s32.totalorder %s37, 1
    %p517 = por %p515, %p516
    %p518 = scmp.ne.s32.totalorder %s509, %s510
    %p519 = scmp.eq.s32.totalorder %s37, 0
    %p520 = por %p518, %p519
    %p521 = scmp.ne.s32.totalorder %s509, %s510
    %p522 = scmp.eq.s32.totalorder %s38, 1
    %p523 = por %p521, %p522
    %p525 = scmp.ne.s32.totalorder %s510, %s524
    %p526 = scmp.eq.s32.totalorder %s38, 0
    %p527 = por %p525, %p526
    %s529 = sadd.s32 %s528, 1
    %p532 = scmp.eq.s32.totalorder %s32, 1
    %p533 = scmp.ne.s32.totalorder %s528, %s530
    %p534 = scmp.eq.s32.totalorder %s32, 0
    %p535 = por %p533, %p534
    %p536 = scmp.ne.s32.totalorder %s528, %s530
    %p537 = scmp.eq.s32.totalorder %s37, 1
    %p538 = por %p536, %p537
    %p539 = scmp.ne.s32.totalorder %s530, %s531
    %p540 = scmp.eq.s32.totalorder %s37, 0
    %p541 = por %p539, %p540
    %p542 = scmp.ne.s32.totalorder %s530, %s531
    %p543 = scmp.eq.s32.totalorder %s38, 1
    %p544 = por %p542, %p543
    %p546 = scmp.ne.s32.totalorder %s531, %s545
    %p547 = scmp.eq.s32.totalorder %s38, 0
    %p548 = por %p546, %p547
    %s550 = sadd.s32 %s549, 1
    %p553 = scmp.eq.s32.totalorder %s32, 1
    %p554 = scmp.ne.s32.totalorder %s549, %s551
    %p555 = scmp.eq.s32.totalorder %s32, 0
    %p556 = por %p554, %p555
    %p557 = scmp.ne.s32.totalorder %s549, %s551
    %p558 = scmp.eq.s32.totalorder %s37, 1
    %p559 = por %p557, %p558
    %p560 = scmp.ne.s32.totalorder %s551, %s552
    %p561 = scmp.eq.s32.totalorder %s37, 0
    %p562 = por %p560, %p561
    %p563 = scmp.ne.s32.totalorder %s551, %s552
    %p564 = scmp.eq.s32.totalorder %s38, 1
    %p565 = por %p563, %p564
    %p567 = scmp.ne.s32.totalorder %s552, %s566
    %p568 = scmp.eq.s32.totalorder %s38, 0
    %p569 = por %p567, %p568
    %s571 = sadd.s32 %s570, 1
    %p574 = scmp.eq.s32.totalorder %s32, 1
    %p575 = scmp.ne.s32.totalorder %s570, %s572
    %p576 = scmp.eq.s32.totalorder %s32, 0
    %p577 = por %p575, %p576
    %p578 = scmp.ne.s32.totalorder %s570, %s572
    %p579 = scmp.eq.s32.totalorder %s37, 1
    %p580 = por %p578, %p579
    %p581 = scmp.ne.s32.totalorder %s572, %s573
    %p582 = scmp.eq.s32.totalorder %s37, 0
    %p583 = por %p581, %p582
    %p584 = scmp.ne.s32.totalorder %s572, %s573
    %p585 = scmp.eq.s32.totalorder %s38, 1
    %p586 = por %p584, %p585
    %p588 = scmp.ne.s32.totalorder %s573, %s587
    %p589 = scmp.eq.s32.totalorder %s38, 0
    %p590 = por %p588, %p589
    %s591 = ssub.s32 %s32, %s39
    %p592 = scmp.eq.s32.totalorder %s591, 0
    %s594 = sadd.s32 %s593, 1
    %s595 = scalar_select %p592, %s593, %s594
    %p598 = pneg %p592
    %p599 = scmp.eq.s32.totalorder %s32, 1
    %p600 = por %p598, %p599
    %p601 = scmp.ne.s32.totalorder %s593, %s596
    %p602 = scmp.eq.s32.totalorder %s32, 0
    %p603 = por %p601, %p602
    %p604 = scmp.ne.s32.totalorder %s593, %s596
    %p605 = scmp.eq.s32.totalorder %s37, 1
    %p606 = por %p604, %p605
    %p607 = scmp.ne.s32.totalorder %s596, %s597
    %p608 = scmp.eq.s32.totalorder %s37, 0
    %p609 = por %p607, %p608
    %p610 = scmp.ne.s32.totalorder %s596, %s597
    %p611 = scmp.eq.s32.totalorder %s38, 1
    %p612 = por %p610, %p611
    %p614 = scmp.ne.s32.totalorder %s597, %s613
    %p615 = scmp.eq.s32.totalorder %s38, 0
    %p616 = por %p614, %p615
    %p617 = scmp.le.s32.totalorder 1, %s32
    %p618 = scmp.lt.s32.totalorder %s32, 3
    %p619 = pnand %p617, %p618
    %p620 = pneg %p619
    // Predicated region
    $region9: #{_lambda_.1} parent=5 // pred_check
      _
    $region10: #{_lambda_.1} parent=5 // pred_check_branch
      %622 = sbr.rel (%p619) target = $region12
    $region11: #{_lambda_.1} parent=5 // pred_region
      %s623 = ssub.s32 %s32, 1
      // Predicated region
      $region13: #{_lambda_.1} parent=11 // pred_check
        %p624 = pneg %p79
      $region14: #{_lambda_.1} parent=11 // pred_check_branch
        %626 = sbr.rel (%p624) target = $region16
      $region15: #{_lambda_.1} parent=11 // pred_region
        _
      $region16: #{_lambda_.1} parent=11 // pred_fallthru
        _
      // Predicated region
      $region17: #{_lambda_.1} parent=11 // pred_check
        %p627 = pneg %p100
      $region18: #{_lambda_.1} parent=11 // pred_check_branch
        %629 = sbr.rel (%p627) target = $region20
      $region19: #{_lambda_.1} parent=11 // pred_region
        _
      $region20: #{_lambda_.1} parent=11 // pred_fallthru
        _
      // Predicated region
      $region21: #{_lambda_.1} parent=11 // pred_check
        %p630 = pneg %p121
      $region22: #{_lambda_.1} parent=11 // pred_check_branch
        %632 = sbr.rel (%p630) target = $region24
      $region23: #{_lambda_.1} parent=11 // pred_region
        _
      $region24: #{_lambda_.1} parent=11 // pred_fallthru
        _
      // Predicated region
      $region25: #{_lambda_.1} parent=11 // pred_check
        %p633 = pneg %p142
      $region26: #{_lambda_.1} parent=11 // pred_check_branch
        %635 = sbr.rel (%p633) target = $region28
      $region27: #{_lambda_.1} parent=11 // pred_region
        _
      $region28: #{_lambda_.1} parent=11 // pred_fallthru
        _
      // Predicated region
      $region29: #{_lambda_.1} parent=11 // pred_check
        %p636 = pneg %p163
      $region30: #{_lambda_.1} parent=11 // pred_check_branch
        %638 = sbr.rel (%p636) target = $region32
      $region31: #{_lambda_.1} parent=11 // pred_region
        _
      $region32: #{_lambda_.1} parent=11 // pred_fallthru
        _
      // Predicated region
      $region33: #{_lambda_.1} parent=11 // pred_check
        %p639 = pneg %p184
      $region34: #{_lambda_.1} parent=11 // pred_check_branch
        %641 = sbr.rel (%p639) target = $region36
      $region35: #{_lambda_.1} parent=11 // pred_region
        _
      $region36: #{_lambda_.1} parent=11 // pred_fallthru
        _
      // Predicated region
      $region37: #{_lambda_.1} parent=11 // pred_check
        %p642 = pneg %p205
      $region38: #{_lambda_.1} parent=11 // pred_check_branch
        %644 = sbr.rel (%p642) target = $region40
      $region39: #{_lambda_.1} parent=11 // pred_region
        _
      $region40: #{_lambda_.1} parent=11 // pred_fallthru
        _
      // Predicated region
      $region41: #{_lambda_.1} parent=11 // pred_check
        %p645 = pneg %p226
      $region42: #{_lambda_.1} parent=11 // pred_check_branch
        %647 = sbr.rel (%p645) target = $region44
      $region43: #{_lambda_.1} parent=11 // pred_region
        _
      $region44: #{_lambda_.1} parent=11 // pred_fallthru
        _
      // Predicated region
      $region45: #{_lambda_.1} parent=11 // pred_check
        %p648 = pneg %p247
      $region46: #{_lambda_.1} parent=11 // pred_check_branch
        %650 = sbr.rel (%p648) target = $region48
      $region47: #{_lambda_.1} parent=11 // pred_region
        _
      $region48: #{_lambda_.1} parent=11 // pred_fallthru
        _
      // Predicated region
      $region49: #{_lambda_.1} parent=11 // pred_check
        %p651 = pneg %p268
      $region50: #{_lambda_.1} parent=11 // pred_check_branch
        %653 = sbr.rel (%p651) target = $region52
      $region51: #{_lambda_.1} parent=11 // pred_region
        _
      $region52: #{_lambda_.1} parent=11 // pred_fallthru
        _
      // Predicated region
      $region53: #{_lambda_.1} parent=11 // pred_check
        %p654 = pneg %p289
      $region54: #{_lambda_.1} parent=11 // pred_check_branch
        %656 = sbr.rel (%p654) target = $region56
      $region55: #{_lambda_.1} parent=11 // pred_region
        _
      $region56: #{_lambda_.1} parent=11 // pred_fallthru
        _
      // Predicated region
      $region57: #{_lambda_.1} parent=11 // pred_check
        %p657 = pneg %p310
      $region58: #{_lambda_.1} parent=11 // pred_check_branch
        %659 = sbr.rel (%p657) target = $region60
      $region59: #{_lambda_.1} parent=11 // pred_region
        _
      $region60: #{_lambda_.1} parent=11 // pred_fallthru
        _
      // Predicated region
      $region61: #{_lambda_.1} parent=11 // pred_check
        %p660 = pneg %p331
      $region62: #{_lambda_.1} parent=11 // pred_check_branch
        %662 = sbr.rel (%p660) target = $region64
      $region63: #{_lambda_.1} parent=11 // pred_region
        _
      $region64: #{_lambda_.1} parent=11 // pred_fallthru
        _
      // Predicated region
      $region65: #{_lambda_.1} parent=11 // pred_check
        %p663 = pneg %p352
      $region66: #{_lambda_.1} parent=11 // pred_check_branch
        %665 = sbr.rel (%p663) target = $region68
      $region67: #{_lambda_.1} parent=11 // pred_region
        _
      $region68: #{_lambda_.1} parent=11 // pred_fallthru
        _
      // Predicated region
      $region69: #{_lambda_.1} parent=11 // pred_check
        %p666 = pneg %p373
      $region70: #{_lambda_.1} parent=11 // pred_check_branch
        %668 = sbr.rel (%p666) target = $region72
      $region71: #{_lambda_.1} parent=11 // pred_region
        _
      $region72: #{_lambda_.1} parent=11 // pred_fallthru
        _
      // Predicated region
      $region73: #{_lambda_.1} parent=11 // pred_check
        %p669 = pneg %p394
      $region74: #{_lambda_.1} parent=11 // pred_check_branch
        %671 = sbr.rel (%p669) target = $region76
      $region75: #{_lambda_.1} parent=11 // pred_region
        _
      $region76: #{_lambda_.1} parent=11 // pred_fallthru
        _
      // Predicated region
      $region77: #{_lambda_.1} parent=11 // pred_check
        %p672 = pneg %p415
      $region78: #{_lambda_.1} parent=11 // pred_check_branch
        %674 = sbr.rel (%p672) target = $region80
      $region79: #{_lambda_.1} parent=11 // pred_region
        _
      $region80: #{_lambda_.1} parent=11 // pred_fallthru
        _
      // Predicated region
      $region81: #{_lambda_.1} parent=11 // pred_check
        %p675 = pneg %p436
      $region82: #{_lambda_.1} parent=11 // pred_check_branch
        %677 = sbr.rel (%p675) target = $region84
      $region83: #{_lambda_.1} parent=11 // pred_region
        _
      $region84: #{_lambda_.1} parent=11 // pred_fallthru
        _
      // Predicated region
      $region85: #{_lambda_.1} parent=11 // pred_check
        %p678 = pneg %p457
      $region86: #{_lambda_.1} parent=11 // pred_check_branch
        %680 = sbr.rel (%p678) target = $region88
      $region87: #{_lambda_.1} parent=11 // pred_region
        _
      $region88: #{_lambda_.1} parent=11 // pred_fallthru
        _
      // Predicated region
      $region89: #{_lambda_.1} parent=11 // pred_check
        %p681 = pneg %p478
      $region90: #{_lambda_.1} parent=11 // pred_check_branch
        %683 = sbr.rel (%p681) target = $region92
      $region91: #{_lambda_.1} parent=11 // pred_region
        _
      $region92: #{_lambda_.1} parent=11 // pred_fallthru
        _
      // Predicated region
      $region93: #{_lambda_.1} parent=11 // pred_check
        %p684 = pneg %p499
      $region94: #{_lambda_.1} parent=11 // pred_check_branch
        %686 = sbr.rel (%p684) target = $region96
      $region95: #{_lambda_.1} parent=11 // pred_region
        _
      $region96: #{_lambda_.1} parent=11 // pred_fallthru
        _
      // Predicated region
      $region97: #{_lambda_.1} parent=11 // pred_check
        %p687 = pneg %p520
      $region98: #{_lambda_.1} parent=11 // pred_check_branch
        %689 = sbr.rel (%p687) target = $region100
      $region99: #{_lambda_.1} parent=11 // pred_region
        _
      $region100: #{_lambda_.1} parent=11 // pred_fallthru
        _
      // Predicated region
      $region101: #{_lambda_.1} parent=11 // pred_check
        %p690 = pneg %p541
      $region102: #{_lambda_.1} parent=11 // pred_check_branch
        %692 = sbr.rel (%p690) target = $region104
      $region103: #{_lambda_.1} parent=11 // pred_region
        _
      $region104: #{_lambda_.1} parent=11 // pred_fallthru
        _
      // Predicated region
      $region105: #{_lambda_.1} parent=11 // pred_check
        %p693 = pneg %p562
      $region106: #{_lambda_.1} parent=11 // pred_check_branch
        %695 = sbr.rel (%p693) target = $region108
      $region107: #{_lambda_.1} parent=11 // pred_region
        _
      $region108: #{_lambda_.1} parent=11 // pred_fallthru
        _
      // Predicated region
      $region109: #{_lambda_.1} parent=11 // pred_check
        %p696 = pneg %p583
      $region110: #{_lambda_.1} parent=11 // pred_check_branch
        %698 = sbr.rel (%p696) target = $region112
      $region111: #{_lambda_.1} parent=11 // pred_region
        _
      $region112: #{_lambda_.1} parent=11 // pred_fallthru
        _
    $region12: #{_lambda_.1} parent=5 // pred_fallthru
      _
    %p699 = scmp.lt.s32.totalorder %s32, 2
    // Predicated region
    $region113: #{_lambda_.1} parent=5 // pred_check
      %p700 = pneg %p699
    $region114: #{_lambda_.1} parent=5 // pred_check_branch
      %702 = sbr.rel (%p700) target = $region116
    $region115: #{_lambda_.1} parent=5 // pred_region
      // Predicated region
      $region117: #{_lambda_.1} parent=115 // pred_check
        %p703 = pneg %p52
      $region118: #{_lambda_.1} parent=115 // pred_check_branch
        %705 = sbr.rel (%p703) target = $region120
      $region119: #{_lambda_.1} parent=115 // pred_region
        %p706 = scmp.lt.s32.totalorder %s32, 1
        %s707 = scalar_select %p706, %s32, 1
        %s708 = smul.addr %s707, 2
        %s709 = smul.addr %s708, 4
        %s710 = scalar_lea.vmem %s0, %s709
      $region120: #{_lambda_.1} parent=115 // pred_fallthru
        _
    $region116: #{_lambda_.1} parent=5 // pred_fallthru
      _
    %p711 = scmp.le.s32.totalorder 1, %s32
    %p712 = scmp.lt.s32.totalorder %s32, 3
    %p713 = pnand %p711, %p712
    %p714 = pneg %p713
    // Predicated region
    $region121: #{_lambda_.1} parent=5 // pred_check
      _
    $region122: #{_lambda_.1} parent=5 // pred_check_branch
      %716 = sbr.rel (%p713) target = $region124
    $region123: #{_lambda_.1} parent=5 // pred_region
      %s717 = ssub.s32 %s32, 1
      %p718 = scmp.lt.s32.totalorder %s37, 1
      %s719 = scalar_select %p718, %s37, 1
      %s720 = smul.addr %s719, 2
      %s721 = smul.addr %s720, 4
      %s722 = scalar_lea.vmem %s0, %s721
      %p723 = pneg %p58
      %p724 = pneg %p55
      %p725 = pneg %p79
      %p726 = pneg %p76
      %p727 = pneg %p100
      %p728 = pneg %p97
      %p729 = pneg %p121
      %p730 = pneg %p118
      %p731 = pneg %p142
      %p732 = pneg %p139
      %p733 = pneg %p163
      %p734 = pneg %p160
      %p735 = pneg %p184
      %p736 = pneg %p181
      %p737 = pneg %p205
      %p738 = pneg %p202
      %p739 = pneg %p226
      %p740 = pneg %p223
      %p741 = pneg %p247
      %p742 = pneg %p244
      %p743 = pneg %p268
      %p744 = pneg %p265
      %p745 = pneg %p289
      %p746 = pneg %p286
      %p747 = pneg %p310
      %p748 = pneg %p307
      %p749 = pneg %p331
      %p750 = pneg %p328
      %p751 = pneg %p352
      %p752 = pneg %p349
      %p753 = pneg %p373
      %p754 = pneg %p370
      %p755 = pneg %p394
      %p756 = pneg %p391
      %p757 = pneg %p415
      %p758 = pneg %p412
      %p759 = pneg %p436
      %p760 = pneg %p433
      %p761 = pneg %p457
      %p762 = pneg %p454
      %p763 = pneg %p478
      %p764 = pneg %p475
      %p765 = pneg %p499
      %p766 = pneg %p496
      %p767 = pneg %p520
      %p768 = pneg %p517
      %p769 = pneg %p541
      %p770 = pneg %p538
      %p771 = pneg %p562
      %p772 = pneg %p559
      %p773 = pneg %p583
      %p774 = pneg %p580
      %p775 = pneg %p609
      %p776 = pneg %p606
      %p777 = scmp.lt.s32.totalorder %s37, 1
      %s778 = scalar_select %p777, %s37, 1
      %s779 = smul.addr %s778, 2
      %s780 = smul.addr %s779, 4
      %s781 = scalar_lea.vmem %s26, %s780
      %p782 = scmp.lt.s32.totalorder %s37, 1
      %s783 = scalar_select %p782, %s37, 1
      %s784 = smul.addr %s783, 2
      %s785 = smul.addr %s784, 4
      %s786 = scalar_lea.vmem %s0, %s785
      %p787 = scmp.lt.s32.totalorder %s37, 1
      %s788 = scalar_select %p787, %s37, 1
      %s789 = smul.addr %s788, 2
      %s790 = smul.addr %s789, 4
      %s791 = scalar_lea.vmem %s26, %s790
      %v793 = vld [vmem:[%s786] sm:$0xff]
      %v795 = vcombine.high %v793, %v793
      %v797 = vpack.c.bf16 %v793, %v793
      %v798 = vpack.c.bf16 %v795, %v795
      %s799 = scalar_lea.vmem %s1, 4
      %v800 = vld [vmem:[%s799] sm:$0xf]
      %v801 = vld [vmem:[%s1] sm:$0xf]
      %804 = vrot.lane.b32.xlu0 %v797, 8
      %v805 = vpop.permute.xlu0 %804
      %806 = vrot.lane.b32.xlu0 %v798, 8
      %v807 = vpop.permute.xlu0 %806
      %vm808 = vcmask 64512
      %v809 = vsel %vm808, %v805, %v807
      %vm810 = vcmask 64512
      %v813 = vsel %vm810, 0, %v805
      %vm814 = vcmask 31744
      %v816 = vsel %vm814, %v801, 0
      %vm818 = vcmask 1041408
      %v819 = vsel %vm818, %v813, 0
      %v822 = vsel %vm818, %v809, 0
      %824 = vmatprep.subr.bf16.mxu0 0
      %825 = vmatpush1.bf16.msra.mxu0 0
      %826 = vmatprep.subr.bf16.mxu0 0
      %827 = vmatpush1.bf16.msra.mxu0 0
      %828 = vmatprep.subr.bf16.mxu0 0
      %829 = vmatpush1.bf16.msra.mxu0 0
      %830 = vmatprep.subr.bf16.mxu0 0
      %831 = vmatpush1.bf16.msra.mxu0 0
      %832 = vmatprep.subr.bf16.mxu0 0
      %833 = vmatpush1.bf16.msra.mxu0 0
      %834 = vmatprep.subr.bf16.mxu0 0
      %835 = vmatpush1.bf16.msra.mxu0 0
      %836 = vmatprep.subr.bf16.mxu0 0
      %837 = vmatpush1.bf16.msra.mxu0 0
      %838 = vmatprep.subr.bf16.mxu0 %v822
      %839 = vmatpush1.bf16.msra.mxu0 %v819
      %840 = vmatprep.subr.bf16.mxu0 0
      %841 = vmatpush2.bf16.msra.mxu0 0
      %842 = vmatprep.subr.bf16.mxu0 0
      %843 = vmatpush2.bf16.msra.mxu0 0
      %844 = vmatprep.subr.bf16.mxu0 0
      %845 = vmatpush2.bf16.msra.mxu0 0
      %846 = vmatprep.subr.bf16.mxu0 0
      %847 = vmatpush2.bf16.msra.mxu0 0
      %848 = vmatprep.subr.bf16.mxu0 0
      %849 = vmatpush2.bf16.msra.mxu0 0
      %850 = vmatprep.subr.bf16.mxu0 0
      %851 = vmatpush2.bf16.msra.mxu0 0
      %852 = vmatprep.subr.bf16.mxu0 0
      %853 = vmatpush2.bf16.msra.mxu0 0
      %854 = vmatprep.subr.bf16.mxu0 0
      %855 = vmatpush2.bf16.msra.mxu0 0
      %856 = vmatprep.mubr.bf16.mxu0 0
      %857 = vmatmul.mubr.bf16.gmra.mxu0 %v816
      %v858 = vpop.f32.mrf.mxu0
      %v859 = vadd.f32 0.0, %v858
      %v860 = vpop.f32.mrf.mxu0
      %v861 = vadd.f32 0.0, %v860
      %v862 = vpop.f32.mrf.mxu0
      %v863 = vpop.f32.mrf.mxu0
      %864 = vdwg.mxu0
      %v866 = vsel %vm814, %v800, 0
      %v869 = vsel %vm818, %v797, 0
      %v872 = vsel %vm818, %v798, 0
      %874 = vmatprep.subr.bf16.mxu0 0
      %875 = vmatpush1.bf16.msra.mxu0 0
      %876 = vmatprep.subr.bf16.mxu0 0
      %877 = vmatpush1.bf16.msra.mxu0 0
      %878 = vmatprep.subr.bf16.mxu0 0
      %879 = vmatpush1.bf16.msra.mxu0 0
      %880 = vmatprep.subr.bf16.mxu0 0
      %881 = vmatpush1.bf16.msra.mxu0 0
      %882 = vmatprep.subr.bf16.mxu0 0
      %883 = vmatpush1.bf16.msra.mxu0 0
      %884 = vmatprep.subr.bf16.mxu0 0
      %885 = vmatpush1.bf16.msra.mxu0 0
      %886 = vmatprep.subr.bf16.mxu0 0
      %887 = vmatpush1.bf16.msra.mxu0 0
      %888 = vmatprep.subr.bf16.mxu0 %v872
      %889 = vmatpush1.bf16.msra.mxu0 %v869
      %890 = vmatprep.subr.bf16.mxu0 0
      %891 = vmatpush2.bf16.msra.mxu0 0
      %892 = vmatprep.subr.bf16.mxu0 0
      %893 = vmatpush2.bf16.msra.mxu0 0
      %894 = vmatprep.subr.bf16.mxu0 0
      %895 = vmatpush2.bf16.msra.mxu0 0
      %896 = vmatprep.subr.bf16.mxu0 0
      %897 = vmatpush2.bf16.msra.mxu0 0
      %898 = vmatprep.subr.bf16.mxu0 0
      %899 = vmatpush2.bf16.msra.mxu0 0
      %900 = vmatprep.subr.bf16.mxu0 0
      %901 = vmatpush2.bf16.msra.mxu0 0
      %902 = vmatprep.subr.bf16.mxu0 0
      %903 = vmatpush2.bf16.msra.mxu0 0
      %904 = vmatprep.subr.bf16.mxu0 0
      %905 = vmatpush2.bf16.msra.mxu0 0
      %906 = vmatprep.mubr.bf16.mxu0 0
      %907 = vmatmul.mubr.bf16.gmra.mxu0 %v866
      %v908 = vpop.f32.mrf.mxu0
      %v909 = vadd.f32 %v859, %v908
      %v910 = vpop.f32.mrf.mxu0
      %v911 = vadd.f32 %v861, %v910
      %v912 = vpop.f32.mrf.mxu0
      %v913 = vpop.f32.mrf.mxu0
      %914 = vdwg.mxu0
      %s915 = scalar_lea.vmem %s1, 8
      %v916 = vld [vmem:[%s915] sm:$0xf]
      %917 = vrot.lane.b32.xlu0 %v797, 120
      %v918 = vpop.permute.xlu0 %917
      %919 = vrot.lane.b32.xlu0 %v798, 120
      %v920 = vpop.permute.xlu0 %919
      %vm921 = vcmask 982016
      %v922 = vsel %vm921, %v918, %v920
      %vm923 = vcmask 982016
      %v925 = vsel %vm923, %v920, 0
      %v927 = vsel %vm814, %v916, 0
      %v930 = vsel %vm818, %v922, 0
      %v932 = vsel %vm818, %v925, 0
      %934 = vmatprep.subr.bf16.mxu0 0
      %935 = vmatpush1.bf16.msra.mxu0 0
      %936 = vmatprep.subr.bf16.mxu0 0
      %937 = vmatpush1.bf16.msra.mxu0 0
      %938 = vmatprep.subr.bf16.mxu0 0
      %939 = vmatpush1.bf16.msra.mxu0 0
      %940 = vmatprep.subr.bf16.mxu0 0
      %941 = vmatpush1.bf16.msra.mxu0 0
      %942 = vmatprep.subr.bf16.mxu0 0
      %943 = vmatpush1.bf16.msra.mxu0 0
      %944 = vmatprep.subr.bf16.mxu0 0
      %945 = vmatpush1.bf16.msra.mxu0 0
      %946 = vmatprep.subr.bf16.mxu0 0
      %947 = vmatpush1.bf16.msra.mxu0 0
      %948 = vmatprep.subr.bf16.mxu0 %v932
      %949 = vmatpush1.bf16.msra.mxu0 %v930
      %950 = vmatprep.subr.bf16.mxu0 0
      %951 = vmatpush2.bf16.msra.mxu0 0
      %952 = vmatprep.subr.bf16.mxu0 0
      %953 = vmatpush2.bf16.msra.mxu0 0
      %954 = vmatprep.subr.bf16.mxu0 0
      %955 = vmatpush2.bf16.msra.mxu0 0
      %956 = vmatprep.subr.bf16.mxu0 0
      %957 = vmatpush2.bf16.msra.mxu0 0
      %958 = vmatprep.subr.bf16.mxu0 0
      %959 = vmatpush2.bf16.msra.mxu0 0
      %960 = vmatprep.subr.bf16.mxu0 0
      %961 = vmatpush2.bf16.msra.mxu0 0
      %962 = vmatprep.subr.bf16.mxu0 0
      %963 = vmatpush2.bf16.msra.mxu0 0
      %964 = vmatprep.subr.bf16.mxu0 0
      %965 = vmatpush2.bf16.msra.mxu0 0
      %966 = vmatprep.mubr.bf16.mxu0 0
      %967 = vmatmul.mubr.bf16.gmra.mxu0 %v927
      %v968 = vpop.f32.mrf.mxu0
      %v969 = vadd.f32 0.0, %v968
      %v970 = vpop.f32.mrf.mxu0
      %v971 = vadd.f32 0.0, %v970
      %v972 = vpop.f32.mrf.mxu0
      %v973 = vpop.f32.mrf.mxu0
      %974 = vdwg.mxu0
      %v975 = vadd.f32 %v909, %v969
      %v976 = vadd.f32 %v911, %v971
      %v977 = vld [vmem:[%s2] sm:$0xff]
      %979 = vset.pattern.permute.xlu0 0
      %980 = vperm.xlu0 %979, %v977
      %v981 = vpop.permute.xlu0 %980
      %v983 = vadd.f32 %v975, %v981
      %v984 = vadd.f32 %v976, %v981
      %vm985 = vcmp.ge.f32.partialorder %v983, 0.0
      %vm986 = vcmp.ge.f32.partialorder %v984, 0.0
      %v987 = vmul.f32 %v983, 0.5
      %v988 = vmul.f32 %v984, 0.5
      %v989 = vsel %vm985, %v983, %v987
      %v990 = vsel %vm986, %v984, %v988
      %v991 = vpack.c.bf16 %v989, %v989
      %v992 = vpack.c.bf16 %v990, %v990
      %v993 = vld [vmem:[%s3] sm:$0xf]
      %v994 = vld [vmem:[%s3 + $0x4] sm:$0xf]
      %v995 = vld [vmem:[%s3 + $0x8] sm:$0xf]
      %v996 = vld [vmem:[%s3 + $0xc] sm:$0xf]
      %v997 = vld [vmem:[%s3 + $0x10] sm:$0xf]
      %v998 = vld [vmem:[%s3 + $0x14] sm:$0xf]
      %v999 = vld [vmem:[%s3 + $0x18] sm:$0xf]
      %v1000 = vld [vmem:[%s3 + $0x1c] sm:$0xf]
      %v1001 = vld [vmem:[%s3 + $0x20] sm:$0xf]
      %v1002 = vld [vmem:[%s3 + $0x24] sm:$0xf]
      %v1003 = vld [vmem:[%s3 + $0x28] sm:$0xf]
      %v1004 = vld [vmem:[%s3 + $0x2c] sm:$0xf]
      %v1005 = vld [vmem:[%s3 + $0x30] sm:$0xf]
      %v1006 = vld [vmem:[%s3 + $0x34] sm:$0xf]
      %v1007 = vld [vmem:[%s3 + $0x38] sm:$0xf]
      %v1008 = vld [vmem:[%s3 + $0x3c] sm:$0xf]
      %v1009 = vld [vmem:[%s3 + $0x40] sm:$0xf]
      %v1010 = vld [vmem:[%s3 + $0x44] sm:$0xf]
      %v1011 = vld [vmem:[%s3 + $0x48] sm:$0xf]
      %v1012 = vld [vmem:[%s3 + $0x4c] sm:$0xf]
      %v1013 = vld [vmem:[%s3 + $0x50] sm:$0xf]
      %v1014 = vld [vmem:[%s3 + $0x54] sm:$0xf]
      %v1015 = vld [vmem:[%s3 + $0x58] sm:$0xf]
      %v1016 = vld [vmem:[%s3 + $0x5c] sm:$0xf]
      %v1017 = vld [vmem:[%s3 + $0x60] sm:$0xf]
      %v1018 = vld [vmem:[%s3 + $0x64] sm:$0xf]
      %v1019 = vld [vmem:[%s3 + $0x68] sm:$0xf]
      %v1020 = vld [vmem:[%s3 + $0x6c] sm:$0xf]
      %v1021 = vld [vmem:[%s3 + $0x70] sm:$0xf]
      %v1022 = vld [vmem:[%s3 + $0x74] sm:$0xf]
      %v1023 = vld [vmem:[%s3 + $0x78] sm:$0xf]
      %v1024 = vld [vmem:[%s3 + $0x7c] sm:$0xf]
      %v1057 = vunpack.c.l.b16 %v993
      %v1058 = vunpack.c.l.b16 %v994
      %v1059 = vunpack.c.l.b16 %v995
      %v1060 = vunpack.c.l.b16 %v996
      %v1061 = vunpack.c.l.b16 %v997
      %v1062 = vunpack.c.l.b16 %v998
      %v1063 = vunpack.c.l.b16 %v999
      %v1064 = vunpack.c.l.b16 %v1000
      %v1065 = vunpack.c.l.b16 %v1001
      %v1066 = vunpack.c.l.b16 %v1002
      %v1067 = vunpack.c.l.b16 %v1003
      %v1068 = vunpack.c.l.b16 %v1004
      %v1069 = vunpack.c.l.b16 %v1005
      %v1070 = vunpack.c.l.b16 %v1006
      %v1071 = vunpack.c.l.b16 %v1007
      %v1072 = vunpack.c.l.b16 %v1008
      %v1073 = vunpack.c.l.b16 %v1009
      %v1074 = vunpack.c.l.b16 %v1010
      %v1075 = vunpack.c.l.b16 %v1011
      %v1076 = vunpack.c.l.b16 %v1012
      %v1077 = vunpack.c.l.b16 %v1013
      %v1078 = vunpack.c.l.b16 %v1014
      %v1079 = vunpack.c.l.b16 %v1015
      %v1080 = vunpack.c.l.b16 %v1016
      %v1081 = vunpack.c.l.b16 %v1017
      %v1082 = vunpack.c.l.b16 %v1018
      %v1083 = vunpack.c.l.b16 %v1019
      %v1084 = vunpack.c.l.b16 %v1020
      %v1085 = vunpack.c.l.b16 %v1021
      %v1086 = vunpack.c.l.b16 %v1022
      %v1087 = vunpack.c.l.b16 %v1023
      %v1088 = vunpack.c.l.b16 %v1024
      %v1089 = vpack.c.b16 %v1058, %v1057
      %v1090 = vpack.c.b16 %v1060, %v1059
      %v1091 = vpack.c.b16 %v1062, %v1061
      %v1092 = vpack.c.b16 %v1064, %v1063
      %v1093 = vpack.c.b16 %v1066, %v1065
      %v1094 = vpack.c.b16 %v1068, %v1067
      %v1095 = vpack.c.b16 %v1070, %v1069
      %v1096 = vpack.c.b16 %v1072, %v1071
      %v1097 = vpack.c.b16 %v1074, %v1073
      %v1098 = vpack.c.b16 %v1076, %v1075
      %v1099 = vpack.c.b16 %v1078, %v1077
      %v1100 = vpack.c.b16 %v1080, %v1079
      %v1101 = vpack.c.b16 %v1082, %v1081
      %v1102 = vpack.c.b16 %v1084, %v1083
      %v1103 = vpack.c.b16 %v1086, %v1085
      %v1104 = vpack.c.b16 %v1088, %v1087
      %1121 = vmatprep.subr.bf16.mxu0 0
      %1122 = vmatpush1.bf16.msra.mxu0 %v1096
      %1123 = vmatprep.subr.bf16.mxu0 0
      %1124 = vmatpush1.bf16.msra.mxu0 %v1095
      %1125 = vmatprep.subr.bf16.mxu0 0
      %1126 = vmatpush1.bf16.msra.mxu0 %v1094
      %1127 = vmatprep.subr.bf16.mxu0 0
      %1128 = vmatpush1.bf16.msra.mxu0 %v1093
      %1129 = vmatprep.subr.bf16.mxu0 0
      %1130 = vmatpush1.bf16.msra.mxu0 %v1092
      %1131 = vmatprep.subr.bf16.mxu0 0
      %1132 = vmatpush1.bf16.msra.mxu0 %v1091
      %1133 = vmatprep.subr.bf16.mxu0 0
      %1134 = vmatpush1.bf16.msra.mxu0 %v1090
      %1135 = vmatprep.subr.bf16.mxu0 0
      %1136 = vmatpush1.bf16.msra.mxu0 %v1089
      %1137 = vmatprep.subr.bf16.mxu0 0
      %1138 = vmatpush2.bf16.msra.mxu0 %v1104
      %1139 = vmatprep.subr.bf16.mxu0 0
      %1140 = vmatpush2.bf16.msra.mxu0 %v1103
      %1141 = vmatprep.subr.bf16.mxu0 0
      %1142 = vmatpush2.bf16.msra.mxu0 %v1102
      %1143 = vmatprep.subr.bf16.mxu0 0
      %1144 = vmatpush2.bf16.msra.mxu0 %v1101
      %1145 = vmatprep.subr.bf16.mxu0 0
      %1146 = vmatpush2.bf16.msra.mxu0 %v1100
      %1147 = vmatprep.subr.bf16.mxu0 0
      %1148 = vmatpush2.bf16.msra.mxu0 %v1099
      %1149 = vmatprep.subr.bf16.mxu0 0
      %1150 = vmatpush2.bf16.msra.mxu0 %v1098
      %1151 = vmatprep.subr.bf16.mxu0 0
      %1152 = vmatpush2.bf16.msra.mxu0 %v1097
      %1153 = vmatprep.mubr.bf16.mxu0 %v992
      %1154 = vmatmul.mubr.bf16.gmra.mxu0 %v991
      %v1155 = vpop.f32.mrf.mxu0
      %v1156 = vadd.f32 0.0, %v1155
      %v1157 = vpop.f32.mrf.mxu0
      %v1158 = vpop.f32.mrf.mxu0
      %v1159 = vpop.f32.mrf.mxu0
      %1160 = vdwg.mxu0
      %v1161 = vpack.c.bf16 %v1156, %v1156
      %s1162 = scalar_lea.vmem %s4, 8
      %v1163 = vld [vmem:[%s1162] sm:$0xf]
      %v1164 = vld [vmem:[%s1162 + $0x4] sm:$0xf]
      %v1165 = vld [vmem:[%s4] sm:$0xf]
      %v1166 = vld [vmem:[%s4 + $0x4] sm:$0xf]
      %1168 = vrot.lane.b32.xlu0 %v1161, 8
      %v1169 = vpop.permute.xlu0 %1168
      %v1171 = vsel %vm810, 0, %v1169
      %v1174 = vunpack.c.l.b16 %v1165
      %v1175 = vunpack.c.l.b16 %v1166
      %v1176 = vpack.c.b16 %v1175, %v1174
      %v1178 = vsel %vm810, %v1176, 0
      %vm1180 = vcmask 1043456
      %v1181 = vsel %vm1180, %v1171, 0
      %1183 = vmatprep.subr.bf16.mxu0 0
      %1184 = vmatpush1.bf16.msra.mxu0 0
      %1185 = vmatprep.subr.bf16.mxu0 0
      %1186 = vmatpush1.bf16.msra.mxu0 0
      %1187 = vmatprep.subr.bf16.mxu0 0
      %1188 = vmatpush1.bf16.msra.mxu0 0
      %1189 = vmatprep.subr.bf16.mxu0 0
      %1190 = vmatpush1.bf16.msra.mxu0 0
      %1191 = vmatprep.subr.bf16.mxu0 0
      %1192 = vmatpush1.bf16.msra.mxu0 0
      %1193 = vmatprep.subr.bf16.mxu0 0
      %1194 = vmatpush1.bf16.msra.mxu0 0
      %1195 = vmatprep.subr.bf16.mxu0 0
      %1196 = vmatpush1.bf16.msra.mxu0 0
      %1197 = vmatprep.subr.bf16.mxu0 0
      %1198 = vmatpush1.bf16.msra.mxu0 %v1181
      %1199 = vmatprep.subr.bf16.mxu0 0
      %1200 = vmatpush2.bf16.msra.mxu0 0
      %1201 = vmatprep.subr.bf16.mxu0 0
      %1202 = vmatpush2.bf16.msra.mxu0 0
      %1203 = vmatprep.subr.bf16.mxu0 0
      %1204 = vmatpush2.bf16.msra.mxu0 0
      %1205 = vmatprep.subr.bf16.mxu0 0
      %1206 = vmatpush2.bf16.msra.mxu0 0
      %1207 = vmatprep.subr.bf16.mxu0 0
      %1208 = vmatpush2.bf16.msra.mxu0 0
      %1209 = vmatprep.subr.bf16.mxu0 0
      %1210 = vmatpush2.bf16.msra.mxu0 0
      %1211 = vmatprep.subr.bf16.mxu0 0
      %1212 = vmatpush2.bf16.msra.mxu0 0
      %1213 = vmatprep.subr.bf16.mxu0 0
      %1214 = vmatpush2.bf16.msra.mxu0 0
      %1215 = vmatprep.mubr.bf16.mxu0 0
      %1216 = vmatmul.mubr.bf16.gmra.mxu0 %v1178
      %v1217 = vpop.f32.mrf.mxu0
      %v1218 = vadd.f32 0.0, %v1217
      %v1219 = vpop.f32.mrf.mxu0
      %v1220 = vpop.f32.mrf.mxu0
      %v1221 = vadd.f32 0.0, %v1220
      %v1222 = vpop.f32.mrf.mxu0
      %1223 = vdwg.mxu0
      %v1226 = vunpack.c.l.b16 %v1163
      %v1227 = vunpack.c.l.b16 %v1164
      %v1228 = vpack.c.b16 %v1227, %v1226
      %v1230 = vsel %vm810, %v1228, 0
      %v1233 = vsel %vm1180, %v1161, 0
      %1235 = vmatprep.subr.bf16.mxu0 0
      %1236 = vmatpush1.bf16.msra.mxu0 0
      %1237 = vmatprep.subr.bf16.mxu0 0
      %1238 = vmatpush1.bf16.msra.mxu0 0
      %1239 = vmatprep.subr.bf16.mxu0 0
      %1240 = vmatpush1.bf16.msra.mxu0 0
      %1241 = vmatprep.subr.bf16.mxu0 0
      %1242 = vmatpush1.bf16.msra.mxu0 0
      %1243 = vmatprep.subr.bf16.mxu0 0
      %1244 = vmatpush1.bf16.msra.mxu0 0
      %1245 = vmatprep.subr.bf16.mxu0 0
      %1246 = vmatpush1.bf16.msra.mxu0 0
      %1247 = vmatprep.subr.bf16.mxu0 0
      %1248 = vmatpush1.bf16.msra.mxu0 0
      %1249 = vmatprep.subr.bf16.mxu0 0
      %1250 = vmatpush1.bf16.msra.mxu0 %v1233
      %1251 = vmatprep.subr.bf16.mxu0 0
      %1252 = vmatpush2.bf16.msra.mxu0 0
      %1253 = vmatprep.subr.bf16.mxu0 0
      %1254 = vmatpush2.bf16.msra.mxu0 0
      %1255 = vmatprep.subr.bf16.mxu0 0
      %1256 = vmatpush2.bf16.msra.mxu0 0
      %1257 = vmatprep.subr.bf16.mxu0 0
      %1258 = vmatpush2.bf16.msra.mxu0 0
      %1259 = vmatprep.subr.bf16.mxu0 0
      %1260 = vmatpush2.bf16.msra.mxu0 0
      %1261 = vmatprep.subr.bf16.mxu0 0
      %1262 = vmatpush2.bf16.msra.mxu0 0
      %1263 = vmatprep.subr.bf16.mxu0 0
      %1264 = vmatpush2.bf16.msra.mxu0 0
      %1265 = vmatprep.subr.bf16.mxu0 0
      %1266 = vmatpush2.bf16.msra.mxu0 0
      %1267 = vmatprep.mubr.bf16.mxu0 0
      %1268 = vmatmul.mubr.bf16.gmra.mxu0 %v1230
      %v1269 = vpop.f32.mrf.mxu0
      %v1270 = vadd.f32 %v1218, %v1269
      %v1271 = vpop.f32.mrf.mxu0
      %v1272 = vpop.f32.mrf.mxu0
      %v1273 = vadd.f32 %v1221, %v1272
      %v1274 = vpop.f32.mrf.mxu0
      %1275 = vdwg.mxu0
      %s1276 = scalar_lea.vmem %s4, 16
      %v1277 = vld [vmem:[%s1276] sm:$0xf]
      %v1278 = vld [vmem:[%s1276 + $0x4] sm:$0xf]
      %1279 = vrot.lane.b32.xlu0 %v1161, 120
      %v1280 = vpop.permute.xlu0 %1279
      %v1282 = vsel %vm923, %v1280, 0
      %v1285 = vunpack.c.l.b16 %v1277
      %v1286 = vunpack.c.l.b16 %v1278
      %v1287 = vpack.c.b16 %v1286, %v1285
      %v1289 = vsel %vm810, %v1287, 0
      %v1291 = vsel %vm1180, %v1282, 0
      %1293 = vmatprep.subr.bf16.mxu0 0
      %1294 = vmatpush1.bf16.msra.mxu0 0
      %1295 = vmatprep.subr.bf16.mxu0 0
      %1296 = vmatpush1.bf16.msra.mxu0 0
      %1297 = vmatprep.subr.bf16.mxu0 0
      %1298 = vmatpush1.bf16.msra.mxu0 0
      %1299 = vmatprep.subr.bf16.mxu0 0
      %1300 = vmatpush1.bf16.msra.mxu0 0
      %1301 = vmatprep.subr.bf16.mxu0 0
      %1302 = vmatpush1.bf16.msra.mxu0 0
      %1303 = vmatprep.subr.bf16.mxu0 0
      %1304 = vmatpush1.bf16.msra.mxu0 0
      %1305 = vmatprep.subr.bf16.mxu0 0
      %1306 = vmatpush1.bf16.msra.mxu0 0
      %1307 = vmatprep.subr.bf16.mxu0 0
      %1308 = vmatpush1.bf16.msra.mxu0 %v1291
      %1309 = vmatprep.subr.bf16.mxu0 0
      %1310 = vmatpush2.bf16.msra.mxu0 0
      %1311 = vmatprep.subr.bf16.mxu0 0
      %1312 = vmatpush2.bf16.msra.mxu0 0
      %1313 = vmatprep.subr.bf16.mxu0 0
      %1314 = vmatpush2.bf16.msra.mxu0 0
      %1315 = vmatprep.subr.bf16.mxu0 0
      %1316 = vmatpush2.bf16.msra.mxu0 0
      %1317 = vmatprep.subr.bf16.mxu0 0
      %1318 = vmatpush2.bf16.msra.mxu0 0
      %1319 = vmatprep.subr.bf16.mxu0 0
      %1320 = vmatpush2.bf16.msra.mxu0 0
      %1321 = vmatprep.subr.bf16.mxu0 0
      %1322 = vmatpush2.bf16.msra.mxu0 0
      %1323 = vmatprep.subr.bf16.mxu0 0
      %1324 = vmatpush2.bf16.msra.mxu0 0
      %1325 = vmatprep.mubr.bf16.mxu0 0
      %1326 = vmatmul.mubr.bf16.gmra.mxu0 %v1289
      %v1327 = vpop.f32.mrf.mxu0
      %v1328 = vadd.f32 0.0, %v1327
      %v1329 = vpop.f32.mrf.mxu0
      %v1330 = vpop.f32.mrf.mxu0
      %v1331 = vadd.f32 0.0, %v1330
      %v1332 = vpop.f32.mrf.mxu0
      %1333 = vdwg.mxu0
      %v1334 = vadd.f32 %v1270, %v1328
      %v1335 = vadd.f32 %v1273, %v1331
      %v1336 = vld [vmem:[%s5] sm:$0xff]
      %v1337 = vld [vmem:[%s5 + $0x8] sm:$0xff]
      %1339 = vset.pattern.permute.xlu0 0
      %1340 = vperm.xlu0 %1339, %v1336
      %v1341 = vpop.permute.xlu0 %1340
      %1344 = vset.pattern.permute.xlu0 0
      %1345 = vperm.xlu0 %1344, %v1337
      %v1346 = vpop.permute.xlu0 %1345
      %v1348 = vadd.f32 %v1334, %v1341
      %v1349 = vadd.f32 %v1335, %v1346
      %vm1350 = vcmp.ge.f32.partialorder %v1348, 0.0
      %vm1351 = vcmp.ge.f32.partialorder %v1349, 0.0
      %v1352 = vmul.f32 %v1348, 0.5
      %v1353 = vmul.f32 %v1349, 0.5
      %v1354 = vsel %vm1350, %v1348, %v1352
      %v1355 = vsel %vm1351, %v1349, %v1353
      %v1356 = vpack.c.bf16 %v1355, %v1354
      %v1357 = vld [vmem:[%s6] sm:$0xf]
      %v1358 = vld [vmem:[%s6 + $0x4] sm:$0xf]
      %v1359 = vld [vmem:[%s6 + $0x8] sm:$0xf]
      %v1360 = vld [vmem:[%s6 + $0xc] sm:$0xf]
      %v1361 = vld [vmem:[%s6 + $0x10] sm:$0xf]
      %v1362 = vld [vmem:[%s6 + $0x14] sm:$0xf]
      %v1363 = vld [vmem:[%s6 + $0x18] sm:$0xf]
      %v1364 = vld [vmem:[%s6 + $0x1c] sm:$0xf]
      %v1365 = vld [vmem:[%s6 + $0x20] sm:$0xf]
      %v1366 = vld [vmem:[%s6 + $0x24] sm:$0xf]
      %v1367 = vld [vmem:[%s6 + $0x28] sm:$0xf]
      %v1368 = vld [vmem:[%s6 + $0x2c] sm:$0xf]
      %v1369 = vld [vmem:[%s6 + $0x30] sm:$0xf]
      %v1370 = vld [vmem:[%s6 + $0x34] sm:$0xf]
      %v1371 = vld [vmem:[%s6 + $0x38] sm:$0xf]
      %v1372 = vld [vmem:[%s6 + $0x3c] sm:$0xf]
      %v1389 = vunpack.c.l.b16 %v1357
      %v1390 = vunpack.c.l.b16 %v1358
      %v1391 = vunpack.c.l.b16 %v1359
      %v1392 = vunpack.c.l.b16 %v1360
      %v1393 = vunpack.c.l.b16 %v1361
      %v1394 = vunpack.c.l.b16 %v1362
      %v1395 = vunpack.c.l.b16 %v1363
      %v1396 = vunpack.c.l.b16 %v1364
      %v1397 = vunpack.c.l.b16 %v1365
      %v1398 = vunpack.c.l.b16 %v1366
      %v1399 = vunpack.c.l.b16 %v1367
      %v1400 = vunpack.c.l.b16 %v1368
      %v1401 = vunpack.c.l.b16 %v1369
      %v1402 = vunpack.c.l.b16 %v1370
      %v1403 = vunpack.c.l.b16 %v1371
      %v1404 = vunpack.c.l.b16 %v1372
      %v1405 = vpack.c.b16 %v1390, %v1389
      %v1406 = vpack.c.b16 %v1392, %v1391
      %v1407 = vpack.c.b16 %v1394, %v1393
      %v1408 = vpack.c.b16 %v1396, %v1395
      %v1409 = vpack.c.b16 %v1398, %v1397
      %v1410 = vpack.c.b16 %v1400, %v1399
      %v1411 = vpack.c.b16 %v1402, %v1401
      %v1412 = vpack.c.b16 %v1404, %v1403
      %1421 = vmatprep.subr.bf16.mxu0 0
      %1422 = vmatpush1.bf16.msra.mxu0 %v1412
      %1423 = vmatprep.subr.bf16.mxu0 0
      %1424 = vmatpush1.bf16.msra.mxu0 %v1411
      %1425 = vmatprep.subr.bf16.mxu0 0
      %1426 = vmatpush1.bf16.msra.mxu0 %v1410
      %1427 = vmatprep.subr.bf16.mxu0 0
      %1428 = vmatpush1.bf16.msra.mxu0 %v1409
      %1429 = vmatprep.subr.bf16.mxu0 0
      %1430 = vmatpush1.bf16.msra.mxu0 %v1408
      %1431 = vmatprep.subr.bf16.mxu0 0
      %1432 = vmatpush1.bf16.msra.mxu0 %v1407
      %1433 = vmatprep.subr.bf16.mxu0 0
      %1434 = vmatpush1.bf16.msra.mxu0 %v1406
      %1435 = vmatprep.subr.bf16.mxu0 0
      %1436 = vmatpush1.bf16.msra.mxu0 %v1405
      %1437 = vmatprep.subr.bf16.mxu0 0
      %1438 = vmatpush2.bf16.msra.mxu0 0
      %1439 = vmatprep.subr.bf16.mxu0 0
      %1440 = vmatpush2.bf16.msra.mxu0 0
      %1441 = vmatprep.subr.bf16.mxu0 0
      %1442 = vmatpush2.bf16.msra.mxu0 0
      %1443 = vmatprep.subr.bf16.mxu0 0
      %1444 = vmatpush2.bf16.msra.mxu0 0
      %1445 = vmatprep.subr.bf16.mxu0 0
      %1446 = vmatpush2.bf16.msra.mxu0 0
      %1447 = vmatprep.subr.bf16.mxu0 0
      %1448 = vmatpush2.bf16.msra.mxu0 0
      %1449 = vmatprep.subr.bf16.mxu0 0
      %1450 = vmatpush2.bf16.msra.mxu0 0
      %1451 = vmatprep.subr.bf16.mxu0 0
      %1452 = vmatpush2.bf16.msra.mxu0 0
      %1453 = vmatprep.mubr.bf16.mxu0 0
      %1454 = vmatmul.mubr.bf16.gmra.mxu0 %v1356
      %v1455 = vpop.f32.mrf.mxu0
      %v1456 = vadd.f32 0.0, %v1455
      %v1457 = vpop.f32.mrf.mxu0
      %v1458 = vpop.f32.mrf.mxu0
      %v1459 = vadd.f32 0.0, %v1458
      %v1460 = vpop.f32.mrf.mxu0
      %1461 = vdwg.mxu0
      %v1462 = vpack.c.bf16 %v1459, %v1456
      %s1463 = scalar_lea.vmem %s7, 16
      %v1464 = vld [vmem:[%s1463] sm:$0xf]
      %v1465 = vld [vmem:[%s1463 + $0x4] sm:$0xf]
      %v1466 = vld [vmem:[%s1463 + $0x8] sm:$0xf]
      %v1467 = vld [vmem:[%s1463 + $0xc] sm:$0xf]
      %v1468 = vld [vmem:[%s7] sm:$0xf]
      %v1469 = vld [vmem:[%s7 + $0x4] sm:$0xf]
      %v1470 = vld [vmem:[%s7 + $0x8] sm:$0xf]
      %v1471 = vld [vmem:[%s7 + $0xc] sm:$0xf]
      %1473 = vrot.lane.b32.xlu0 %v1462, 8
      %v1474 = vpop.permute.xlu0 %1473
      %v1476 = vsel %vm810, 0, %v1474
      %v1482 = vunpack.c.l.b16 %v1468
      %v1483 = vunpack.c.l.b16 %v1469
      %v1484 = vunpack.c.l.b16 %v1470
      %v1485 = vunpack.c.l.b16 %v1471
      %v1486 = vpack.c.b16 %v1483, %v1482
      %v1487 = vpack.c.b16 %v1485, %v1484
      %vm1488 = vcmask 130048
      %v1490 = vsel %vm1488, %v1486, 0
      %v1493 = vsel %vm1488, %v1487, 0
      %1495 = vmatprep.subr.bf16.mxu0 0
      %1496 = vmatpush1.bf16.msra.mxu0 0
      %1497 = vmatprep.subr.bf16.mxu0 0
      %1498 = vmatpush1.bf16.msra.mxu0 0
      %1499 = vmatprep.subr.bf16.mxu0 0
      %1500 = vmatpush1.bf16.msra.mxu0 0
      %1501 = vmatprep.subr.bf16.mxu0 0
      %1502 = vmatpush1.bf16.msra.mxu0 0
      %1503 = vmatprep.subr.bf16.mxu0 0
      %1504 = vmatpush1.bf16.msra.mxu0 0
      %1505 = vmatprep.subr.bf16.mxu0 0
      %1506 = vmatpush1.bf16.msra.mxu0 0
      %1507 = vmatprep.subr.bf16.mxu0 0
      %1508 = vmatpush1.bf16.msra.mxu0 0
      %1509 = vmatprep.subr.bf16.mxu0 0
      %1510 = vmatpush1.bf16.msra.mxu0 %v1476
      %1511 = vmatprep.subr.bf16.mxu0 0
      %1512 = vmatpush2.bf16.msra.mxu0 0
      %1513 = vmatprep.subr.bf16.mxu0 0
      %1514 = vmatpush2.bf16.msra.mxu0 0
      %1515 = vmatprep.subr.bf16.mxu0 0
      %1516 = vmatpush2.bf16.msra.mxu0 0
      %1517 = vmatprep.subr.bf16.mxu0 0
      %1518 = vmatpush2.bf16.msra.mxu0 0
      %1519 = vmatprep.subr.bf16.mxu0 0
      %1520 = vmatpush2.bf16.msra.mxu0 0
      %1521 = vmatprep.subr.bf16.mxu0 0
      %1522 = vmatpush2.bf16.msra.mxu0 0
      %1523 = vmatprep.subr.bf16.mxu0 0
      %1524 = vmatpush2.bf16.msra.mxu0 0
      %1525 = vmatprep.subr.bf16.mxu0 0
      %1526 = vmatpush2.bf16.msra.mxu0 0
      %1527 = vmatprep.mubr.bf16.mxu0 0
      %1528 = vmatmul.mubr.bf16.gmra.mxu0 %v1490
      %v1529 = vpop.f32.mrf.mxu0
      %v1530 = vadd.f32 0.0, %v1529
      %v1531 = vpop.f32.mrf.mxu0
      %v1532 = vpop.f32.mrf.mxu0
      %v1533 = vadd.f32 0.0, %v1532
      %v1534 = vpop.f32.mrf.mxu0
      %1535 = vmatprep.mubr.bf16.mxu0 0
      %1536 = vmatmul.mubr.bf16.gmra.mxu0 %v1493
      %v1537 = vpop.f32.mrf.mxu0
      %v1538 = vadd.f32 0.0, %v1537
      %v1539 = vpop.f32.mrf.mxu0
      %v1540 = vpop.f32.mrf.mxu0
      %v1541 = vadd.f32 0.0, %v1540
      %v1542 = vpop.f32.mrf.mxu0
      %1543 = vdwg.mxu0
      %v1548 = vunpack.c.l.b16 %v1464
      %v1549 = vunpack.c.l.b16 %v1465
      %v1550 = vunpack.c.l.b16 %v1466
      %v1551 = vunpack.c.l.b16 %v1467
      %v1552 = vpack.c.b16 %v1549, %v1548
      %v1553 = vpack.c.b16 %v1551, %v1550
      %v1555 = vsel %vm1488, %v1552, 0
      %v1558 = vsel %vm1488, %v1553, 0
      %1560 = vmatprep.subr.bf16.mxu0 0
      %1561 = vmatpush1.bf16.msra.mxu0 0
      %1562 = vmatprep.subr.bf16.mxu0 0
      %1563 = vmatpush1.bf16.msra.mxu0 0
      %1564 = vmatprep.subr.bf16.mxu0 0
      %1565 = vmatpush1.bf16.msra.mxu0 0
      %1566 = vmatprep.subr.bf16.mxu0 0
      %1567 = vmatpush1.bf16.msra.mxu0 0
      %1568 = vmatprep.subr.bf16.mxu0 0
      %1569 = vmatpush1.bf16.msra.mxu0 0
      %1570 = vmatprep.subr.bf16.mxu0 0
      %1571 = vmatpush1.bf16.msra.mxu0 0
      %1572 = vmatprep.subr.bf16.mxu0 0
      %1573 = vmatpush1.bf16.msra.mxu0 0
      %1574 = vmatprep.subr.bf16.mxu0 0
      %1575 = vmatpush1.bf16.msra.mxu0 %v1462
      %1576 = vmatprep.subr.bf16.mxu0 0
      %1577 = vmatpush2.bf16.msra.mxu0 0
      %1578 = vmatprep.subr.bf16.mxu0 0
      %1579 = vmatpush2.bf16.msra.mxu0 0
      %1580 = vmatprep.subr.bf16.mxu0 0
      %1581 = vmatpush2.bf16.msra.mxu0 0
      %1582 = vmatprep.subr.bf16.mxu0 0
      %1583 = vmatpush2.bf16.msra.mxu0 0
      %1584 = vmatprep.subr.bf16.mxu0 0
      %1585 = vmatpush2.bf16.msra.mxu0 0
      %1586 = vmatprep.subr.bf16.mxu0 0
      %1587 = vmatpush2.bf16.msra.mxu0 0
      %1588 = vmatprep.subr.bf16.mxu0 0
      %1589 = vmatpush2.bf16.msra.mxu0 0
      %1590 = vmatprep.subr.bf16.mxu0 0
      %1591 = vmatpush2.bf16.msra.mxu0 0
      %1592 = vmatprep.mubr.bf16.mxu0 0
      %1593 = vmatmul.mubr.bf16.gmra.mxu0 %v1555
      %v1594 = vpop.f32.mrf.mxu0
      %v1595 = vadd.f32 %v1530, %v1594
      %v1596 = vpop.f32.mrf.mxu0
      %v1597 = vpop.f32.mrf.mxu0
      %v1598 = vadd.f32 %v1533, %v1597
      %v1599 = vpop.f32.mrf.mxu0
      %1600 = vmatprep.mubr.bf16.mxu0 0
      %1601 = vmatmul.mubr.bf16.gmra.mxu0 %v1558
      %v1602 = vpop.f32.mrf.mxu0
      %v1603 = vadd.f32 %v1538, %v1602
      %v1604 = vpop.f32.mrf.mxu0
      %v1605 = vpop.f32.mrf.mxu0
      %v1606 = vadd.f32 %v1541, %v1605
      %v1607 = vpop.f32.mrf.mxu0
      %1608 = vdwg.mxu0
      %s1609 = scalar_lea.vmem %s7, 32
      %v1610 = vld [vmem:[%s1609] sm:$0xf]
      %v1611 = vld [vmem:[%s1609 + $0x4] sm:$0xf]
      %v1612 = vld [vmem:[%s1609 + $0x8] sm:$0xf]
      %v1613 = vld [vmem:[%s1609 + $0xc] sm:$0xf]
      %1614 = vrot.lane.b32.xlu0 %v1462, 120
      %v1615 = vpop.permute.xlu0 %1614
      %vm1616 = vcmask 457728
      %v1618 = vsel %vm1616, %v1615, 0
      %v1624 = vunpack.c.l.b16 %v1610
      %v1625 = vunpack.c.l.b16 %v1611
      %v1626 = vunpack.c.l.b16 %v1612
      %v1627 = vunpack.c.l.b16 %v1613
      %v1628 = vpack.c.b16 %v1625, %v1624
      %v1629 = vpack.c.b16 %v1627, %v1626
      %v1631 = vsel %vm1488, %v1628, 0
      %v1634 = vsel %vm1488, %v1629, 0
      %1636 = vmatprep.subr.bf16.mxu0 0
      %1637 = vmatpush1.bf16.msra.mxu0 0
      %1638 = vmatprep.subr.bf16.mxu0 0
      %1639 = vmatpush1.bf16.msra.mxu0 0
      %1640 = vmatprep.subr.bf16.mxu0 0
      %1641 = vmatpush1.bf16.msra.mxu0 0
      %1642 = vmatprep.subr.bf16.mxu0 0
      %1643 = vmatpush1.bf16.msra.mxu0 0
      %1644 = vmatprep.subr.bf16.mxu0 0
      %1645 = vmatpush1.bf16.msra.mxu0 0
      %1646 = vmatprep.subr.bf16.mxu0 0
      %1647 = vmatpush1.bf16.msra.mxu0 0
      %1648 = vmatprep.subr.bf16.mxu0 0
      %1649 = vmatpush1.bf16.msra.mxu0 0
      %1650 = vmatprep.subr.bf16.mxu0 0
      %1651 = vmatpush1.bf16.msra.mxu0 %v1618
      %1652 = vmatprep.subr.bf16.mxu0 0
      %1653 = vmatpush2.bf16.msra.mxu0 0
      %1654 = vmatprep.subr.bf16.mxu0 0
      %1655 = vmatpush2.bf16.msra.mxu0 0
      %1656 = vmatprep.subr.bf16.mxu0 0
      %1657 = vmatpush2.bf16.msra.mxu0 0
      %1658 = vmatprep.subr.bf16.mxu0 0
      %1659 = vmatpush2.bf16.msra.mxu0 0
      %1660 = vmatprep.subr.bf16.mxu0 0
      %1661 = vmatpush2.bf16.msra.mxu0 0
      %1662 = vmatprep.subr.bf16.mxu0 0
      %1663 = vmatpush2.bf16.msra.mxu0 0
      %1664 = vmatprep.subr.bf16.mxu0 0
      %1665 = vmatpush2.bf16.msra.mxu0 0
      %1666 = vmatprep.subr.bf16.mxu0 0
      %1667 = vmatpush2.bf16.msra.mxu0 0
      %1668 = vmatprep.mubr.bf16.mxu0 0
      %1669 = vmatmul.mubr.bf16.gmra.mxu0 %v1631
      %v1670 = vpop.f32.mrf.mxu0
      %v1671 = vadd.f32 0.0, %v1670
      %v1672 = vpop.f32.mrf.mxu0
      %v1673 = vpop.f32.mrf.mxu0
      %v1674 = vadd.f32 0.0, %v1673
      %v1675 = vpop.f32.mrf.mxu0
      %1676 = vmatprep.mubr.bf16.mxu0 0
      %1677 = vmatmul.mubr.bf16.gmra.mxu0 %v1634
      %v1678 = vpop.f32.mrf.mxu0
      %v1679 = vadd.f32 0.0, %v1678
      %v1680 = vpop.f32.mrf.mxu0
      %v1681 = vpop.f32.mrf.mxu0
      %v1682 = vadd.f32 0.0, %v1681
      %v1683 = vpop.f32.mrf.mxu0
      %1684 = vdwg.mxu0
      %v1685 = vadd.f32 %v1595, %v1671
      %v1686 = vadd.f32 %v1598, %v1674
      %v1687 = vadd.f32 %v1603, %v1679
      %v1688 = vadd.f32 %v1606, %v1682
      %v1689 = vld [vmem:[%s8] sm:$0xff]
      %v1690 = vld [vmem:[%s8 + $0x8] sm:$0xff]
      %v1691 = vld [vmem:[%s8 + $0x10] sm:$0xff]
      %v1692 = vld [vmem:[%s8 + $0x18] sm:$0xff]
      %1694 = vset.pattern.permute.xlu0 0
      %1695 = vperm.xlu0 %1694, %v1689
      %v1696 = vpop.permute.xlu0 %1695
      %1699 = vset.pattern.permute.xlu0 0
      %1700 = vperm.xlu0 %1699, %v1690
      %v1701 = vpop.permute.xlu0 %1700
      %1704 = vset.pattern.permute.xlu0 0
      %1705 = vperm.xlu0 %1704, %v1691
      %v1706 = vpop.permute.xlu0 %1705
      %1709 = vset.pattern.permute.xlu0 0
      %1710 = vperm.xlu0 %1709, %v1692
      %v1711 = vpop.permute.xlu0 %1710
      %v1713 = vadd.f32 %v1685, %v1696
      %v1714 = vadd.f32 %v1686, %v1701
      %v1715 = vadd.f32 %v1687, %v1706
      %v1716 = vadd.f32 %v1688, %v1711
      %vm1717 = vcmp.ge.f32.partialorder %v1713, 0.0
      %vm1718 = vcmp.ge.f32.partialorder %v1714, 0.0
      %vm1719 = vcmp.ge.f32.partialorder %v1715, 0.0
      %vm1720 = vcmp.ge.f32.partialorder %v1716, 0.0
      %v1721 = vmul.f32 %v1713, 0.5
      %v1722 = vmul.f32 %v1714, 0.5
      %v1723 = vmul.f32 %v1715, 0.5
      %v1724 = vmul.f32 %v1716, 0.5
      %v1725 = vsel %vm1717, %v1713, %v1721
      %v1726 = vsel %vm1718, %v1714, %v1722
      %v1727 = vsel %vm1719, %v1715, %v1723
      %v1728 = vsel %vm1720, %v1716, %v1724
      %v1729 = vpack.c.bf16 %v1726, %v1725
      %v1730 = vpack.c.bf16 %v1728, %v1727
      %v1731 = vld [vmem:[%s9] sm:$0xf]
      %v1732 = vld [vmem:[%s9 + $0x4] sm:$0xf]
      %v1733 = vld [vmem:[%s9 + $0x8] sm:$0xf]
      %v1734 = vld [vmem:[%s9 + $0xc] sm:$0xf]
      %v1735 = vld [vmem:[%s9 + $0x10] sm:$0xf]
      %v1736 = vld [vmem:[%s9 + $0x14] sm:$0xf]
      %v1737 = vld [vmem:[%s9 + $0x18] sm:$0xf]
      %v1738 = vld [vmem:[%s9 + $0x1c] sm:$0xf]
      %v1747 = vunpack.c.l.b16 %v1731
      %v1748 = vunpack.c.l.b16 %v1732
      %v1749 = vunpack.c.l.b16 %v1733
      %v1750 = vunpack.c.l.b16 %v1734
      %v1751 = vunpack.c.l.b16 %v1735
      %v1752 = vunpack.c.l.b16 %v1736
      %v1753 = vunpack.c.l.b16 %v1737
      %v1754 = vunpack.c.l.b16 %v1738
      %v1755 = vpack.c.b16 %v1748, %v1747
      %v1756 = vpack.c.b16 %v1750, %v1749
      %v1757 = vpack.c.b16 %v1752, %v1751
      %v1758 = vpack.c.b16 %v1754, %v1753
      %vm1763 = vcmask 523264
      %v1765 = vsel %vm1763, %v1729, 0
      %v1768 = vsel %vm1763, %v1730, 0
      %1770 = vmatprep.subr.bf16.mxu0 0
      %1771 = vmatpush1.bf16.msra.mxu0 0
      %1772 = vmatprep.subr.bf16.mxu0 0
      %1773 = vmatpush1.bf16.msra.mxu0 0
      %1774 = vmatprep.subr.bf16.mxu0 0
      %1775 = vmatpush1.bf16.msra.mxu0 0
      %1776 = vmatprep.subr.bf16.mxu0 0
      %1777 = vmatpush1.bf16.msra.mxu0 0
      %1778 = vmatprep.subr.bf16.mxu0 0
      %1779 = vmatpush1.bf16.msra.mxu0 %v1758
      %1780 = vmatprep.subr.bf16.mxu0 0
      %1781 = vmatpush1.bf16.msra.mxu0 %v1757
      %1782 = vmatprep.subr.bf16.mxu0 0
      %1783 = vmatpush1.bf16.msra.mxu0 %v1756
      %1784 = vmatprep.subr.bf16.mxu0 0
      %1785 = vmatpush1.bf16.msra.mxu0 %v1755
      %1786 = vmatprep.subr.bf16.mxu0 0
      %1787 = vmatpush2.bf16.msra.mxu0 0
      %1788 = vmatprep.subr.bf16.mxu0 0
      %1789 = vmatpush2.bf16.msra.mxu0 0
      %1790 = vmatprep.subr.bf16.mxu0 0
      %1791 = vmatpush2.bf16.msra.mxu0 0
      %1792 = vmatprep.subr.bf16.mxu0 0
      %1793 = vmatpush2.bf16.msra.mxu0 0
      %1794 = vmatprep.subr.bf16.mxu0 0
      %1795 = vmatpush2.bf16.msra.mxu0 0
      %1796 = vmatprep.subr.bf16.mxu0 0
      %1797 = vmatpush2.bf16.msra.mxu0 0
      %1798 = vmatprep.subr.bf16.mxu0 0
      %1799 = vmatpush2.bf16.msra.mxu0 0
      %1800 = vmatprep.subr.bf16.mxu0 0
      %1801 = vmatpush2.bf16.msra.mxu0 0
      %1802 = vmatprep.mubr.bf16.mxu0 0
      %1803 = vmatmul.mubr.bf16.gmra.mxu0 %v1765
      %v1804 = vpop.f32.mrf.mxu0
      %v1805 = vadd.f32 0.0, %v1804
      %v1806 = vpop.f32.mrf.mxu0
      %v1807 = vpop.f32.mrf.mxu0
      %v1808 = vadd.f32 0.0, %v1807
      %v1809 = vpop.f32.mrf.mxu0
      %1810 = vmatprep.mubr.bf16.mxu0 0
      %1811 = vmatmul.mubr.bf16.gmra.mxu0 %v1768
      %v1812 = vpop.f32.mrf.mxu0
      %v1813 = vadd.f32 0.0, %v1812
      %v1814 = vpop.f32.mrf.mxu0
      %v1815 = vpop.f32.mrf.mxu0
      %v1816 = vadd.f32 0.0, %v1815
      %v1817 = vpop.f32.mrf.mxu0
      %1818 = vdwg.mxu0
      %v1819 = vld [vmem:[%s11] sm:$0xff]
      %v1820 = vld [vmem:[%s11 + $0x8] sm:$0xff]
      %v1821 = vld [vmem:[%s10] sm:$0xf]
      %v1822 = vld [vmem:[%s10 + $0x4] sm:$0xf]
      %v1823 = vpack.c.bf16 %v1808, %v1805
      %v1824 = vpack.c.bf16 %v1816, %v1813
      %v1827 = vunpack.c.l.b16 %v1821
      %v1828 = vunpack.c.l.b16 %v1822
      %v1829 = vpack.c.b16 %v1828, %v1827
      %vm1830 = vcmask 261120
      %v1832 = vsel %vm1830, %v1829, 0
      %1834 = vmatprep.subr.bf16.mxu0 0
      %1835 = vmatpush1.bf16.msra.mxu0 0
      %1836 = vmatprep.subr.bf16.mxu0 0
      %1837 = vmatpush1.bf16.msra.mxu0 0
      %1838 = vmatprep.subr.bf16.mxu0 0
      %1839 = vmatpush1.bf16.msra.mxu0 0
      %1840 = vmatprep.subr.bf16.mxu0 0
      %1841 = vmatpush1.bf16.msra.mxu0 0
      %1842 = vmatprep.subr.bf16.mxu0 0
      %1843 = vmatpush1.bf16.msra.mxu0 0
      %1844 = vmatprep.subr.bf16.mxu0 0
      %1845 = vmatpush1.bf16.msra.mxu0 0
      %1846 = vmatprep.subr.bf16.mxu0 0
      %1847 = vmatpush1.bf16.msra.mxu0 %v1824
      %1848 = vmatprep.subr.bf16.mxu0 0
      %1849 = vmatpush1.bf16.msra.mxu0 %v1823
      %1850 = vmatprep.subr.bf16.mxu0 0
      %1851 = vmatpush2.bf16.msra.mxu0 0
      %1852 = vmatprep.subr.bf16.mxu0 0
      %1853 = vmatpush2.bf16.msra.mxu0 0
      %1854 = vmatprep.subr.bf16.mxu0 0
      %1855 = vmatpush2.bf16.msra.mxu0 0
      %1856 = vmatprep.subr.bf16.mxu0 0
      %1857 = vmatpush2.bf16.msra.mxu0 0
      %1858 = vmatprep.subr.bf16.mxu0 0
      %1859 = vmatpush2.bf16.msra.mxu0 0
      %1860 = vmatprep.subr.bf16.mxu0 0
      %1861 = vmatpush2.bf16.msra.mxu0 0
      %1862 = vmatprep.subr.bf16.mxu0 0
      %1863 = vmatpush2.bf16.msra.mxu0 0
      %1864 = vmatprep.subr.bf16.mxu0 0
      %1865 = vmatpush2.bf16.msra.mxu0 0
      %1866 = vmatprep.mubr.bf16.mxu0 0
      %1867 = vmatmul.mubr.bf16.gmra.mxu0 %v1832
      %v1868 = vpop.f32.mrf.mxu0
      %v1869 = vadd.f32 0.0, %v1868
      %v1870 = vpop.f32.mrf.mxu0
      %v1871 = vpop.f32.mrf.mxu0
      %v1872 = vadd.f32 0.0, %v1871
      %v1873 = vpop.f32.mrf.mxu0
      %1874 = vdwg.mxu0
      %1876 = vset.pattern.permute.xlu0 0
      %1877 = vperm.xlu0 %1876, %v1819
      %v1878 = vpop.permute.xlu0 %1877
      %1881 = vset.pattern.permute.xlu0 0
      %1882 = vperm.xlu0 %1881, %v1820
      %v1883 = vpop.permute.xlu0 %1882
      %v1885 = vadd.f32 %v1878, %v1869
      %v1886 = vadd.f32 %v1883, %v1872
      %s1887 = scalar_lea.vmem %s10, 8
      %v1888 = vld [vmem:[%s1887] sm:$0xf]
      %v1889 = vld [vmem:[%s1887 + $0x4] sm:$0xf]
      %v1892 = vunpack.c.l.b16 %v1888
      %v1893 = vunpack.c.l.b16 %v1889
      %v1894 = vpack.c.b16 %v1893, %v1892
      %1897 = vrot.lane.b32.xlu0 %v1823, 120
      %v1898 = vpop.permute.xlu0 %1897
      %1899 = vrot.lane.b32.xlu0 %v1824, 120
      %v1900 = vpop.permute.xlu0 %1899
      %v1904 = vsel %vm1830, %v1894, 0
      %1906 = vmatprep.subr.bf16.mxu0 0
      %1907 = vmatpush1.bf16.msra.mxu0 0
      %1908 = vmatprep.subr.bf16.mxu0 0
      %1909 = vmatpush1.bf16.msra.mxu0 0
      %1910 = vmatprep.subr.bf16.mxu0 0
      %1911 = vmatpush1.bf16.msra.mxu0 0
      %1912 = vmatprep.subr.bf16.mxu0 0
      %1913 = vmatpush1.bf16.msra.mxu0 0
      %1914 = vmatprep.subr.bf16.mxu0 0
      %1915 = vmatpush1.bf16.msra.mxu0 0
      %1916 = vmatprep.subr.bf16.mxu0 0
      %1917 = vmatpush1.bf16.msra.mxu0 0
      %1918 = vmatprep.subr.bf16.mxu0 0
      %1919 = vmatpush1.bf16.msra.mxu0 %v1900
      %1920 = vmatprep.subr.bf16.mxu0 0
      %1921 = vmatpush1.bf16.msra.mxu0 %v1898
      %1922 = vmatprep.subr.bf16.mxu0 0
      %1923 = vmatpush2.bf16.msra.mxu0 0
      %1924 = vmatprep.subr.bf16.mxu0 0
      %1925 = vmatpush2.bf16.msra.mxu0 0
      %1926 = vmatprep.subr.bf16.mxu0 0
      %1927 = vmatpush2.bf16.msra.mxu0 0
      %1928 = vmatprep.subr.bf16.mxu0 0
      %1929 = vmatpush2.bf16.msra.mxu0 0
      %1930 = vmatprep.subr.bf16.mxu0 0
      %1931 = vmatpush2.bf16.msra.mxu0 0
      %1932 = vmatprep.subr.bf16.mxu0 0
      %1933 = vmatpush2.bf16.msra.mxu0 0
      %1934 = vmatprep.subr.bf16.mxu0 0
      %1935 = vmatpush2.bf16.msra.mxu0 0
      %1936 = vmatprep.subr.bf16.mxu0 0
      %1937 = vmatpush2.bf16.msra.mxu0 0
      %1938 = vmatprep.mubr.bf16.mxu0 0
      %1939 = vmatmul.mubr.bf16.gmra.mxu0 %v1904
      %v1940 = vpop.f32.mrf.mxu0
      %v1941 = vadd.f32 0.0, %v1940
      %v1942 = vpop.f32.mrf.mxu0
      %v1943 = vpop.f32.mrf.mxu0
      %v1944 = vadd.f32 0.0, %v1943
      %v1945 = vpop.f32.mrf.mxu0
      %1946 = vdwg.mxu0
      %v1947 = vadd.f32 %v1885, %v1941
      %v1948 = vadd.f32 %v1886, %v1944
      %s1949 = scalar_lea.vmem %s10, 16
      %v1950 = vld [vmem:[%s1949] sm:$0xf]
      %v1951 = vld [vmem:[%s1949 + $0x4] sm:$0xf]
      %v1954 = vunpack.c.l.b16 %v1950
      %v1955 = vunpack.c.l.b16 %v1951
      %v1956 = vpack.c.b16 %v1955, %v1954
      %1957 = vrot.lane.b32.xlu0 %v1823, 112
      %v1958 = vpop.permute.xlu0 %1957
      %1959 = vrot.lane.b32.xlu0 %v1824, 112
      %v1960 = vpop.permute.xlu0 %1959
      %v1964 = vsel %vm1830, %v1956, 0
      %1966 = vmatprep.subr.bf16.mxu0 0
      %1967 = vmatpush1.bf16.msra.mxu0 0
      %1968 = vmatprep.subr.bf16.mxu0 0
      %1969 = vmatpush1.bf16.msra.mxu0 0
      %1970 = vmatprep.subr.bf16.mxu0 0
      %1971 = vmatpush1.bf16.msra.mxu0 0
      %1972 = vmatprep.subr.bf16.mxu0 0
      %1973 = vmatpush1.bf16.msra.mxu0 0
      %1974 = vmatprep.subr.bf16.mxu0 0
      %1975 = vmatpush1.bf16.msra.mxu0 0
      %1976 = vmatprep.subr.bf16.mxu0 0
      %1977 = vmatpush1.bf16.msra.mxu0 0
      %1978 = vmatprep.subr.bf16.mxu0 0
      %1979 = vmatpush1.bf16.msra.mxu0 %v1960
      %1980 = vmatprep.subr.bf16.mxu0 0
      %1981 = vmatpush1.bf16.msra.mxu0 %v1958
      %1982 = vmatprep.subr.bf16.mxu0 0
      %1983 = vmatpush2.bf16.msra.mxu0 0
      %1984 = vmatprep.subr.bf16.mxu0 0
      %1985 = vmatpush2.bf16.msra.mxu0 0
      %1986 = vmatprep.subr.bf16.mxu0 0
      %1987 = vmatpush2.bf16.msra.mxu0 0
      %1988 = vmatprep.subr.bf16.mxu0 0
      %1989 = vmatpush2.bf16.msra.mxu0 0
      %1990 = vmatprep.subr.bf16.mxu0 0
      %1991 = vmatpush2.bf16.msra.mxu0 0
      %1992 = vmatprep.subr.bf16.mxu0 0
      %1993 = vmatpush2.bf16.msra.mxu0 0
      %1994 = vmatprep.subr.bf16.mxu0 0
      %1995 = vmatpush2.bf16.msra.mxu0 0
      %1996 = vmatprep.subr.bf16.mxu0 0
      %1997 = vmatpush2.bf16.msra.mxu0 0
      %1998 = vmatprep.mubr.bf16.mxu0 0
      %1999 = vmatmul.mubr.bf16.gmra.mxu0 %v1964
      %v2000 = vpop.f32.mrf.mxu0
      %v2001 = vadd.f32 0.0, %v2000
      %v2002 = vpop.f32.mrf.mxu0
      %v2003 = vpop.f32.mrf.mxu0
      %v2004 = vadd.f32 0.0, %v2003
      %v2005 = vpop.f32.mrf.mxu0
      %2006 = vdwg.mxu0
      %v2007 = vadd.f32 %v1947, %v2001
      %v2008 = vadd.f32 %v1948, %v2004
      %s2009 = scalar_lea.vmem %s10, 24
      %v2010 = vld [vmem:[%s2009] sm:$0xf]
      %v2011 = vld [vmem:[%s2009 + $0x4] sm:$0xf]
      %v2014 = vunpack.c.l.b16 %v2010
      %v2015 = vunpack.c.l.b16 %v2011
      %v2016 = vpack.c.b16 %v2015, %v2014
      %2017 = vrot.lane.b32.xlu0 %v1823, 104
      %v2018 = vpop.permute.xlu0 %2017
      %2019 = vrot.lane.b32.xlu0 %v1824, 104
      %v2020 = vpop.permute.xlu0 %2019
      %v2024 = vsel %vm1830, %v2016, 0
      %2026 = vmatprep.subr.bf16.mxu0 0
      %2027 = vmatpush1.bf16.msra.mxu0 0
      %2028 = vmatprep.subr.bf16.mxu0 0
      %2029 = vmatpush1.bf16.msra.mxu0 0
      %2030 = vmatprep.subr.bf16.mxu0 0
      %2031 = vmatpush1.bf16.msra.mxu0 0
      %2032 = vmatprep.subr.bf16.mxu0 0
      %2033 = vmatpush1.bf16.msra.mxu0 0
      %2034 = vmatprep.subr.bf16.mxu0 0
      %2035 = vmatpush1.bf16.msra.mxu0 0
      %2036 = vmatprep.subr.bf16.mxu0 0
      %2037 = vmatpush1.bf16.msra.mxu0 0
      %2038 = vmatprep.subr.bf16.mxu0 0
      %2039 = vmatpush1.bf16.msra.mxu0 %v2020
      %2040 = vmatprep.subr.bf16.mxu0 0
      %2041 = vmatpush1.bf16.msra.mxu0 %v2018
      %2042 = vmatprep.subr.bf16.mxu0 0
      %2043 = vmatpush2.bf16.msra.mxu0 0
      %2044 = vmatprep.subr.bf16.mxu0 0
      %2045 = vmatpush2.bf16.msra.mxu0 0
      %2046 = vmatprep.subr.bf16.mxu0 0
      %2047 = vmatpush2.bf16.msra.mxu0 0
      %2048 = vmatprep.subr.bf16.mxu0 0
      %2049 = vmatpush2.bf16.msra.mxu0 0
      %2050 = vmatprep.subr.bf16.mxu0 0
      %2051 = vmatpush2.bf16.msra.mxu0 0
      %2052 = vmatprep.subr.bf16.mxu0 0
      %2053 = vmatpush2.bf16.msra.mxu0 0
      %2054 = vmatprep.subr.bf16.mxu0 0
      %2055 = vmatpush2.bf16.msra.mxu0 0
      %2056 = vmatprep.subr.bf16.mxu0 0
      %2057 = vmatpush2.bf16.msra.mxu0 0
      %2058 = vmatprep.mubr.bf16.mxu0 0
      %2059 = vmatmul.mubr.bf16.gmra.mxu0 %v2024
      %v2060 = vpop.f32.mrf.mxu0
      %v2061 = vadd.f32 0.0, %v2060
      %v2062 = vpop.f32.mrf.mxu0
      %v2063 = vpop.f32.mrf.mxu0
      %v2064 = vadd.f32 0.0, %v2063
      %v2065 = vpop.f32.mrf.mxu0
      %2066 = vdwg.mxu0
      %v2067 = vadd.f32 %v2007, %v2061
      %v2068 = vadd.f32 %v2008, %v2064
      %v2069 = vpack.c.bf16 %v2068, %v2067
      %v2070 = vld [vmem:[%s12] sm:$0xf]
      %v2071 = vld [vmem:[%s12 + $0x4] sm:$0xf]
      %v2072 = vld [vmem:[%s12 + $0x8] sm:$0xf]
      %v2073 = vld [vmem:[%s12 + $0xc] sm:$0xf]
      %v2074 = vld [vmem:[%s13] sm:$0xff]
      %v2075 = vld [vmem:[%s13 + $0x8] sm:$0xff]
      %v2076 = vld [vmem:[%s13 + $0x10] sm:$0xff]
      %v2077 = vld [vmem:[%s13 + $0x18] sm:$0xff]
      %2079 = vset.pattern.permute.xlu0 0
      %2080 = vperm.xlu0 %2079, %v2074
      %v2081 = vpop.permute.xlu0 %2080
      %2084 = vset.pattern.permute.xlu0 0
      %2085 = vperm.xlu0 %2084, %v2075
      %v2086 = vpop.permute.xlu0 %2085
      %2089 = vset.pattern.permute.xlu0 0
      %2090 = vperm.xlu0 %2089, %v2076
      %v2091 = vpop.permute.xlu0 %2090
      %2094 = vset.pattern.permute.xlu0 0
      %2095 = vperm.xlu0 %2094, %v2077
      %v2096 = vpop.permute.xlu0 %2095
      %v2102 = vunpack.c.l.b16 %v2070
      %v2103 = vunpack.c.l.b16 %v2071
      %v2104 = vunpack.c.l.b16 %v2072
      %v2105 = vunpack.c.l.b16 %v2073
      %v2106 = vpack.c.b16 %v2103, %v2102
      %v2107 = vpack.c.b16 %v2105, %v2104
      %v2109 = vsel %vm1488, %v2106, 0
      %v2112 = vsel %vm1488, %v2107, 0
      %2114 = vmatprep.subr.bf16.mxu0 0
      %2115 = vmatpush1.bf16.msra.mxu0 0
      %2116 = vmatprep.subr.bf16.mxu0 0
      %2117 = vmatpush1.bf16.msra.mxu0 0
      %2118 = vmatprep.subr.bf16.mxu0 0
      %2119 = vmatpush1.bf16.msra.mxu0 0
      %2120 = vmatprep.subr.bf16.mxu0 0
      %2121 = vmatpush1.bf16.msra.mxu0 0
      %2122 = vmatprep.subr.bf16.mxu0 0
      %2123 = vmatpush1.bf16.msra.mxu0 0
      %2124 = vmatprep.subr.bf16.mxu0 0
      %2125 = vmatpush1.bf16.msra.mxu0 0
      %2126 = vmatprep.subr.bf16.mxu0 0
      %2127 = vmatpush1.bf16.msra.mxu0 0
      %2128 = vmatprep.subr.bf16.mxu0 0
      %2129 = vmatpush1.bf16.msra.mxu0 %v2069
      %2130 = vmatprep.subr.bf16.mxu0 0
      %2131 = vmatpush2.bf16.msra.mxu0 0
      %2132 = vmatprep.subr.bf16.mxu0 0
      %2133 = vmatpush2.bf16.msra.mxu0 0
      %2134 = vmatprep.subr.bf16.mxu0 0
      %2135 = vmatpush2.bf16.msra.mxu0 0
      %2136 = vmatprep.subr.bf16.mxu0 0
      %2137 = vmatpush2.bf16.msra.mxu0 0
      %2138 = vmatprep.subr.bf16.mxu0 0
      %2139 = vmatpush2.bf16.msra.mxu0 0
      %2140 = vmatprep.subr.bf16.mxu0 0
      %2141 = vmatpush2.bf16.msra.mxu0 0
      %2142 = vmatprep.subr.bf16.mxu0 0
      %2143 = vmatpush2.bf16.msra.mxu0 0
      %2144 = vmatprep.subr.bf16.mxu0 0
      %2145 = vmatpush2.bf16.msra.mxu0 0
      %2146 = vmatprep.mubr.bf16.mxu0 0
      %2147 = vmatmul.mubr.bf16.gmra.mxu0 %v2109
      %v2148 = vpop.f32.mrf.mxu0
      %v2149 = vadd.f32 %v2081, %v2148
      %v2150 = vpop.f32.mrf.mxu0
      %v2151 = vpop.f32.mrf.mxu0
      %v2152 = vadd.f32 %v2086, %v2151
      %v2153 = vpop.f32.mrf.mxu0
      %2154 = vmatprep.mubr.bf16.mxu0 0
      %2155 = vmatmul.mubr.bf16.gmra.mxu0 %v2112
      %v2156 = vpop.f32.mrf.mxu0
      %v2157 = vadd.f32 %v2091, %v2156
      %v2158 = vpop.f32.mrf.mxu0
      %v2159 = vpop.f32.mrf.mxu0
      %v2160 = vadd.f32 %v2096, %v2159
      %v2161 = vpop.f32.mrf.mxu0
      %2162 = vdwg.mxu0
      %s2163 = scalar_lea.vmem %s12, 16
      %v2164 = vld [vmem:[%s2163] sm:$0xf]
      %v2165 = vld [vmem:[%s2163 + $0x4] sm:$0xf]
      %v2166 = vld [vmem:[%s2163 + $0x8] sm:$0xf]
      %v2167 = vld [vmem:[%s2163 + $0xc] sm:$0xf]
      %s2168 = scalar_lea.vmem %s13, 32
      %v2169 = vld [vmem:[%s2168] sm:$0xff]
      %v2170 = vld [vmem:[%s2168 + $0x8] sm:$0xff]
      %v2171 = vld [vmem:[%s2168 + $0x10] sm:$0xff]
      %v2172 = vld [vmem:[%s2168 + $0x18] sm:$0xff]
      %2174 = vset.pattern.permute.xlu0 0
      %2175 = vperm.xlu0 %2174, %v2169
      %v2176 = vpop.permute.xlu0 %2175
      %2179 = vset.pattern.permute.xlu0 0
      %2180 = vperm.xlu0 %2179, %v2170
      %v2181 = vpop.permute.xlu0 %2180
      %2184 = vset.pattern.permute.xlu0 0
      %2185 = vperm.xlu0 %2184, %v2171
      %v2186 = vpop.permute.xlu0 %2185
      %2189 = vset.pattern.permute.xlu0 0
      %2190 = vperm.xlu0 %2189, %v2172
      %v2191 = vpop.permute.xlu0 %2190
      %v2197 = vunpack.c.l.b16 %v2164
      %v2198 = vunpack.c.l.b16 %v2165
      %v2199 = vunpack.c.l.b16 %v2166
      %v2200 = vunpack.c.l.b16 %v2167
      %v2201 = vpack.c.b16 %v2198, %v2197
      %v2202 = vpack.c.b16 %v2200, %v2199
      %v2204 = vsel %vm1488, %v2201, 0
      %v2207 = vsel %vm1488, %v2202, 0
      %2209 = vmatprep.subr.bf16.mxu0 0
      %2210 = vmatpush1.bf16.msra.mxu0 0
      %2211 = vmatprep.subr.bf16.mxu0 0
      %2212 = vmatpush1.bf16.msra.mxu0 0
      %2213 = vmatprep.subr.bf16.mxu0 0
      %2214 = vmatpush1.bf16.msra.mxu0 0
      %2215 = vmatprep.subr.bf16.mxu0 0
      %2216 = vmatpush1.bf16.msra.mxu0 0
      %2217 = vmatprep.subr.bf16.mxu0 0
      %2218 = vmatpush1.bf16.msra.mxu0 0
      %2219 = vmatprep.subr.bf16.mxu0 0
      %2220 = vmatpush1.bf16.msra.mxu0 0
      %2221 = vmatprep.subr.bf16.mxu0 0
      %2222 = vmatpush1.bf16.msra.mxu0 0
      %2223 = vmatprep.subr.bf16.mxu0 0
      %2224 = vmatpush1.bf16.msra.mxu0 %v2069
      %2225 = vmatprep.subr.bf16.mxu0 0
      %2226 = vmatpush2.bf16.msra.mxu0 0
      %2227 = vmatprep.subr.bf16.mxu0 0
      %2228 = vmatpush2.bf16.msra.mxu0 0
      %2229 = vmatprep.subr.bf16.mxu0 0
      %2230 = vmatpush2.bf16.msra.mxu0 0
      %2231 = vmatprep.subr.bf16.mxu0 0
      %2232 = vmatpush2.bf16.msra.mxu0 0
      %2233 = vmatprep.subr.bf16.mxu0 0
      %2234 = vmatpush2.bf16.msra.mxu0 0
      %2235 = vmatprep.subr.bf16.mxu0 0
      %2236 = vmatpush2.bf16.msra.mxu0 0
      %2237 = vmatprep.subr.bf16.mxu0 0
      %2238 = vmatpush2.bf16.msra.mxu0 0
      %2239 = vmatprep.subr.bf16.mxu0 0
      %2240 = vmatpush2.bf16.msra.mxu0 0
      %2241 = vmatprep.mubr.bf16.mxu0 0
      %2242 = vmatmul.mubr.bf16.gmra.mxu0 %v2204
      %v2243 = vpop.f32.mrf.mxu0
      %v2244 = vadd.f32 %v2176, %v2243
      %v2245 = vpop.f32.mrf.mxu0
      %v2246 = vpop.f32.mrf.mxu0
      %v2247 = vadd.f32 %v2181, %v2246
      %v2248 = vpop.f32.mrf.mxu0
      %2249 = vmatprep.mubr.bf16.mxu0 0
      %2250 = vmatmul.mubr.bf16.gmra.mxu0 %v2207
      %v2251 = vpop.f32.mrf.mxu0
      %v2252 = vadd.f32 %v2186, %v2251
      %v2253 = vpop.f32.mrf.mxu0
      %v2254 = vpop.f32.mrf.mxu0
      %v2255 = vadd.f32 %v2191, %v2254
      %v2256 = vpop.f32.mrf.mxu0
      %2257 = vdwg.mxu0
      %s2258 = scalar_lea.vmem %s12, 32
      %v2259 = vld [vmem:[%s2258] sm:$0xf]
      %v2260 = vld [vmem:[%s2258 + $0x4] sm:$0xf]
      %v2261 = vld [vmem:[%s2258 + $0x8] sm:$0xf]
      %v2262 = vld [vmem:[%s2258 + $0xc] sm:$0xf]
      %s2263 = scalar_lea.vmem %s13, 64
      %v2264 = vld [vmem:[%s2263] sm:$0xff]
      %v2265 = vld [vmem:[%s2263 + $0x8] sm:$0xff]
      %v2266 = vld [vmem:[%s2263 + $0x10] sm:$0xff]
      %v2267 = vld [vmem:[%s2263 + $0x18] sm:$0xff]
      %2269 = vset.pattern.permute.xlu0 0
      %2270 = vperm.xlu0 %2269, %v2264
      %v2271 = vpop.permute.xlu0 %2270
      %2274 = vset.pattern.permute.xlu0 0
      %2275 = vperm.xlu0 %2274, %v2265
      %v2276 = vpop.permute.xlu0 %2275
      %2279 = vset.pattern.permute.xlu0 0
      %2280 = vperm.xlu0 %2279, %v2266
      %v2281 = vpop.permute.xlu0 %2280
      %2284 = vset.pattern.permute.xlu0 0
      %2285 = vperm.xlu0 %2284, %v2267
      %v2286 = vpop.permute.xlu0 %2285
      %v2292 = vunpack.c.l.b16 %v2259
      %v2293 = vunpack.c.l.b16 %v2260
      %v2294 = vunpack.c.l.b16 %v2261
      %v2295 = vunpack.c.l.b16 %v2262
      %v2296 = vpack.c.b16 %v2293, %v2292
      %v2297 = vpack.c.b16 %v2295, %v2294
      %v2299 = vsel %vm1488, %v2296, 0
      %v2302 = vsel %vm1488, %v2297, 0
      %2304 = vmatprep.subr.bf16.mxu0 0
      %2305 = vmatpush1.bf16.msra.mxu0 0
      %2306 = vmatprep.subr.bf16.mxu0 0
      %2307 = vmatpush1.bf16.msra.mxu0 0
      %2308 = vmatprep.subr.bf16.mxu0 0
      %2309 = vmatpush1.bf16.msra.mxu0 0
      %2310 = vmatprep.subr.bf16.mxu0 0
      %2311 = vmatpush1.bf16.msra.mxu0 0
      %2312 = vmatprep.subr.bf16.mxu0 0
      %2313 = vmatpush1.bf16.msra.mxu0 0
      %2314 = vmatprep.subr.bf16.mxu0 0
      %2315 = vmatpush1.bf16.msra.mxu0 0
      %2316 = vmatprep.subr.bf16.mxu0 0
      %2317 = vmatpush1.bf16.msra.mxu0 0
      %2318 = vmatprep.subr.bf16.mxu0 0
      %2319 = vmatpush1.bf16.msra.mxu0 %v2069
      %2320 = vmatprep.subr.bf16.mxu0 0
      %2321 = vmatpush2.bf16.msra.mxu0 0
      %2322 = vmatprep.subr.bf16.mxu0 0
      %2323 = vmatpush2.bf16.msra.mxu0 0
      %2324 = vmatprep.subr.bf16.mxu0 0
      %2325 = vmatpush2.bf16.msra.mxu0 0
      %2326 = vmatprep.subr.bf16.mxu0 0
      %2327 = vmatpush2.bf16.msra.mxu0 0
      %2328 = vmatprep.subr.bf16.mxu0 0
      %2329 = vmatpush2.bf16.msra.mxu0 0
      %2330 = vmatprep.subr.bf16.mxu0 0
      %2331 = vmatpush2.bf16.msra.mxu0 0
      %2332 = vmatprep.subr.bf16.mxu0 0
      %2333 = vmatpush2.bf16.msra.mxu0 0
      %2334 = vmatprep.subr.bf16.mxu0 0
      %2335 = vmatpush2.bf16.msra.mxu0 0
      %2336 = vmatprep.mubr.bf16.mxu0 0
      %2337 = vmatmul.mubr.bf16.gmra.mxu0 %v2299
      %v2338 = vpop.f32.mrf.mxu0
      %v2339 = vadd.f32 %v2271, %v2338
      %v2340 = vpop.f32.mrf.mxu0
      %v2341 = vpop.f32.mrf.mxu0
      %v2342 = vadd.f32 %v2276, %v2341
      %v2343 = vpop.f32.mrf.mxu0
      %2344 = vmatprep.mubr.bf16.mxu0 0
      %2345 = vmatmul.mubr.bf16.gmra.mxu0 %v2302
      %v2346 = vpop.f32.mrf.mxu0
      %v2347 = vadd.f32 %v2281, %v2346
      %v2348 = vpop.f32.mrf.mxu0
      %v2349 = vpop.f32.mrf.mxu0
      %v2350 = vadd.f32 %v2286, %v2349
      %v2351 = vpop.f32.mrf.mxu0
      %2352 = vdwg.mxu0
      %s2353 = scalar_lea.vmem %s12, 48
      %v2354 = vld [vmem:[%s2353] sm:$0xf]
      %v2355 = vld [vmem:[%s2353 + $0x4] sm:$0xf]
      %v2356 = vld [vmem:[%s2353 + $0x8] sm:$0xf]
      %v2357 = vld [vmem:[%s2353 + $0xc] sm:$0xf]
      %s2358 = scalar_lea.vmem %s13, 96
      %v2359 = vld [vmem:[%s2358] sm:$0xff]
      %v2360 = vld [vmem:[%s2358 + $0x8] sm:$0xff]
      %v2361 = vld [vmem:[%s2358 + $0x10] sm:$0xff]
      %v2362 = vld [vmem:[%s2358 + $0x18] sm:$0xff]
      %2364 = vset.pattern.permute.xlu0 0
      %2365 = vperm.xlu0 %2364, %v2359
      %v2366 = vpop.permute.xlu0 %2365
      %2369 = vset.pattern.permute.xlu0 0
      %2370 = vperm.xlu0 %2369, %v2360
      %v2371 = vpop.permute.xlu0 %2370
      %2374 = vset.pattern.permute.xlu0 0
      %2375 = vperm.xlu0 %2374, %v2361
      %v2376 = vpop.permute.xlu0 %2375
      %2379 = vset.pattern.permute.xlu0 0
      %2380 = vperm.xlu0 %2379, %v2362
      %v2381 = vpop.permute.xlu0 %2380
      %v2387 = vunpack.c.l.b16 %v2354
      %v2388 = vunpack.c.l.b16 %v2355
      %v2389 = vunpack.c.l.b16 %v2356
      %v2390 = vunpack.c.l.b16 %v2357
      %v2391 = vpack.c.b16 %v2388, %v2387
      %v2392 = vpack.c.b16 %v2390, %v2389
      %v2394 = vsel %vm1488, %v2391, 0
      %v2397 = vsel %vm1488, %v2392, 0
      %2399 = vmatprep.subr.bf16.mxu0 0
      %2400 = vmatpush1.bf16.msra.mxu0 0
      %2401 = vmatprep.subr.bf16.mxu0 0
      %2402 = vmatpush1.bf16.msra.mxu0 0
      %2403 = vmatprep.subr.bf16.mxu0 0
      %2404 = vmatpush1.bf16.msra.mxu0 0
      %2405 = vmatprep.subr.bf16.mxu0 0
      %2406 = vmatpush1.bf16.msra.mxu0 0
      %2407 = vmatprep.subr.bf16.mxu0 0
      %2408 = vmatpush1.bf16.msra.mxu0 0
      %2409 = vmatprep.subr.bf16.mxu0 0
      %2410 = vmatpush1.bf16.msra.mxu0 0
      %2411 = vmatprep.subr.bf16.mxu0 0
      %2412 = vmatpush1.bf16.msra.mxu0 0
      %2413 = vmatprep.subr.bf16.mxu0 0
      %2414 = vmatpush1.bf16.msra.mxu0 %v2069
      %2415 = vmatprep.subr.bf16.mxu0 0
      %2416 = vmatpush2.bf16.msra.mxu0 0
      %2417 = vmatprep.subr.bf16.mxu0 0
      %2418 = vmatpush2.bf16.msra.mxu0 0
      %2419 = vmatprep.subr.bf16.mxu0 0
      %2420 = vmatpush2.bf16.msra.mxu0 0
      %2421 = vmatprep.subr.bf16.mxu0 0
      %2422 = vmatpush2.bf16.msra.mxu0 0
      %2423 = vmatprep.subr.bf16.mxu0 0
      %2424 = vmatpush2.bf16.msra.mxu0 0
      %2425 = vmatprep.subr.bf16.mxu0 0
      %2426 = vmatpush2.bf16.msra.mxu0 0
      %2427 = vmatprep.subr.bf16.mxu0 0
      %2428 = vmatpush2.bf16.msra.mxu0 0
      %2429 = vmatprep.subr.bf16.mxu0 0
      %2430 = vmatpush2.bf16.msra.mxu0 0
      %2431 = vmatprep.mubr.bf16.mxu0 0
      %2432 = vmatmul.mubr.bf16.gmra.mxu0 %v2394
      %v2433 = vpop.f32.mrf.mxu0
      %v2434 = vadd.f32 %v2366, %v2433
      %v2435 = vpop.f32.mrf.mxu0
      %v2436 = vpop.f32.mrf.mxu0
      %v2437 = vadd.f32 %v2371, %v2436
      %v2438 = vpop.f32.mrf.mxu0
      %2439 = vmatprep.mubr.bf16.mxu0 0
      %2440 = vmatmul.mubr.bf16.gmra.mxu0 %v2397
      %v2441 = vpop.f32.mrf.mxu0
      %v2442 = vadd.f32 %v2376, %v2441
      %v2443 = vpop.f32.mrf.mxu0
      %v2444 = vpop.f32.mrf.mxu0
      %v2445 = vadd.f32 %v2381, %v2444
      %v2446 = vpop.f32.mrf.mxu0
      %2447 = vdwg.mxu0
      %2452 = vrot.lane.b32.xlu0 %v2244, 8
      %v2453 = vpop.permute.xlu0 %2452
      %2454 = vrot.lane.b32.xlu0 %v2247, 8
      %v2455 = vpop.permute.xlu0 %2454
      %2456 = vrot.lane.b32.xlu0 %v2252, 8
      %v2457 = vpop.permute.xlu0 %2456
      %2458 = vrot.lane.b32.xlu0 %v2255, 8
      %v2459 = vpop.permute.xlu0 %2458
      %2468 = vrot.lane.b32.xlu0 %v2339, 16
      %v2469 = vpop.permute.xlu0 %2468
      %2470 = vrot.lane.b32.xlu0 %v2342, 16
      %v2471 = vpop.permute.xlu0 %2470
      %2472 = vrot.lane.b32.xlu0 %v2347, 16
      %v2473 = vpop.permute.xlu0 %2472
      %2474 = vrot.lane.b32.xlu0 %v2350, 16
      %v2475 = vpop.permute.xlu0 %2474
      %2484 = vrot.lane.b32.xlu0 %v2434, 24
      %v2485 = vpop.permute.xlu0 %2484
      %2486 = vrot.lane.b32.xlu0 %v2437, 24
      %v2487 = vpop.permute.xlu0 %2486
      %2488 = vrot.lane.b32.xlu0 %v2442, 24
      %v2489 = vpop.permute.xlu0 %2488
      %2490 = vrot.lane.b32.xlu0 %v2445, 24
      %v2491 = vpop.permute.xlu0 %2490
      %v2496 = vsel %vm810, %v2149, %v2453
      %v2497 = vsel %vm810, %v2152, %v2455
      %v2498 = vsel %vm810, %v2157, %v2457
      %v2499 = vsel %vm810, %v2160, %v2459
      %v2500 = vsel %vm1488, %v2496, %v2469
      %v2501 = vsel %vm1488, %v2497, %v2471
      %v2502 = vsel %vm1488, %v2498, %v2473
      %v2503 = vsel %vm1488, %v2499, %v2475
      %vm2504 = vcmask 195584
      %v2505 = vsel %vm2504, %v2500, %v2485
      %v2506 = vsel %vm2504, %v2501, %v2487
      %v2507 = vsel %vm2504, %v2502, %v2489
      %v2508 = vsel %vm2504, %v2503, %v2491
      %v2509 = vpack.c.bf16 %v2506, %v2505
      %v2510 = vpack.c.bf16 %v2508, %v2507
      %v2511 = vld [vmem:[%s15] sm:$0xff]
      %v2512 = vld [vmem:[%s15 + $0x8] sm:$0xff]
      %s2513 = scalar_lea.vmem %s14, 8
      %v2514 = vld [vmem:[%s2513] sm:$0xf]
      %v2515 = vld [vmem:[%s2513 + $0x4] sm:$0xf]
      %s2516 = scalar_lea.vmem %s14, 24
      %v2517 = vld [vmem:[%s2516] sm:$0xf]
      %v2518 = vld [vmem:[%s2516 + $0x4] sm:$0xf]
      %2521 = vrot.lane.b32.xlu0 %v2509, 8
      %v2522 = vpop.permute.xlu0 %2521
      %2523 = vrot.lane.b32.xlu0 %v2510, 8
      %v2524 = vpop.permute.xlu0 %2523
      %v2526 = vsel %vm810, 0, %v2522
      %v2529 = vsel %vm810, 0, %v2524
      %v2533 = vunpack.c.l.b16 %v2517
      %v2534 = vunpack.c.l.b16 %v2518
      %v2535 = vpack.c.b16 %v2534, %v2533
      %v2537 = vsel %vm1830, %v2535, 0
      %2539 = vmatprep.subr.bf16.mxu0 0
      %2540 = vmatpush1.bf16.msra.mxu0 0
      %2541 = vmatprep.subr.bf16.mxu0 0
      %2542 = vmatpush1.bf16.msra.mxu0 0
      %2543 = vmatprep.subr.bf16.mxu0 0
      %2544 = vmatpush1.bf16.msra.mxu0 0
      %2545 = vmatprep.subr.bf16.mxu0 0
      %2546 = vmatpush1.bf16.msra.mxu0 0
      %2547 = vmatprep.subr.bf16.mxu0 0
      %2548 = vmatpush1.bf16.msra.mxu0 0
      %2549 = vmatprep.subr.bf16.mxu0 0
      %2550 = vmatpush1.bf16.msra.mxu0 0
      %2551 = vmatprep.subr.bf16.mxu0 0
      %2552 = vmatpush1.bf16.msra.mxu0 %v2529
      %2553 = vmatprep.subr.bf16.mxu0 0
      %2554 = vmatpush1.bf16.msra.mxu0 %v2526
      %2555 = vmatprep.subr.bf16.mxu0 0
      %2556 = vmatpush2.bf16.msra.mxu0 0
      %2557 = vmatprep.subr.bf16.mxu0 0
      %2558 = vmatpush2.bf16.msra.mxu0 0
      %2559 = vmatprep.subr.bf16.mxu0 0
      %2560 = vmatpush2.bf16.msra.mxu0 0
      %2561 = vmatprep.subr.bf16.mxu0 0
      %2562 = vmatpush2.bf16.msra.mxu0 0
      %2563 = vmatprep.subr.bf16.mxu0 0
      %2564 = vmatpush2.bf16.msra.mxu0 0
      %2565 = vmatprep.subr.bf16.mxu0 0
      %2566 = vmatpush2.bf16.msra.mxu0 0
      %2567 = vmatprep.subr.bf16.mxu0 0
      %2568 = vmatpush2.bf16.msra.mxu0 0
      %2569 = vmatprep.subr.bf16.mxu0 0
      %2570 = vmatpush2.bf16.msra.mxu0 0
      %2571 = vmatprep.mubr.bf16.mxu0 0
      %2572 = vmatmul.mubr.bf16.gmra.mxu0 %v2537
      %v2573 = vpop.f32.mrf.mxu0
      %v2574 = vadd.f32 0.0, %v2573
      %v2575 = vpop.f32.mrf.mxu0
      %v2576 = vpop.f32.mrf.mxu0
      %v2577 = vadd.f32 0.0, %v2576
      %v2578 = vpop.f32.mrf.mxu0
      %2579 = vdwg.mxu0
      %v2582 = vunpack.c.l.b16 %v2514
      %v2583 = vunpack.c.l.b16 %v2515
      %v2584 = vpack.c.b16 %v2583, %v2582
      %v2586 = vsel %vm1830, %v2584, 0
      %2588 = vmatprep.subr.bf16.mxu0 0
      %2589 = vmatpush1.bf16.msra.mxu0 0
      %2590 = vmatprep.subr.bf16.mxu0 0
      %2591 = vmatpush1.bf16.msra.mxu0 0
      %2592 = vmatprep.subr.bf16.mxu0 0
      %2593 = vmatpush1.bf16.msra.mxu0 0
      %2594 = vmatprep.subr.bf16.mxu0 0
      %2595 = vmatpush1.bf16.msra.mxu0 0
      %2596 = vmatprep.subr.bf16.mxu0 0
      %2597 = vmatpush1.bf16.msra.mxu0 0
      %2598 = vmatprep.subr.bf16.mxu0 0
      %2599 = vmatpush1.bf16.msra.mxu0 0
      %2600 = vmatprep.subr.bf16.mxu0 0
      %2601 = vmatpush1.bf16.msra.mxu0 %v2510
      %2602 = vmatprep.subr.bf16.mxu0 0
      %2603 = vmatpush1.bf16.msra.mxu0 %v2509
      %2604 = vmatprep.subr.bf16.mxu0 0
      %2605 = vmatpush2.bf16.msra.mxu0 0
      %2606 = vmatprep.subr.bf16.mxu0 0
      %2607 = vmatpush2.bf16.msra.mxu0 0
      %2608 = vmatprep.subr.bf16.mxu0 0
      %2609 = vmatpush2.bf16.msra.mxu0 0
      %2610 = vmatprep.subr.bf16.mxu0 0
      %2611 = vmatpush2.bf16.msra.mxu0 0
      %2612 = vmatprep.subr.bf16.mxu0 0
      %2613 = vmatpush2.bf16.msra.mxu0 0
      %2614 = vmatprep.subr.bf16.mxu0 0
      %2615 = vmatpush2.bf16.msra.mxu0 0
      %2616 = vmatprep.subr.bf16.mxu0 0
      %2617 = vmatpush2.bf16.msra.mxu0 0
      %2618 = vmatprep.subr.bf16.mxu0 0
      %2619 = vmatpush2.bf16.msra.mxu0 0
      %2620 = vmatprep.mubr.bf16.mxu0 0
      %2621 = vmatmul.mubr.bf16.gmra.mxu0 %v2586
      %v2622 = vpop.f32.mrf.mxu0
      %v2623 = vadd.f32 %v2574, %v2622
      %v2624 = vpop.f32.mrf.mxu0
      %v2625 = vpop.f32.mrf.mxu0
      %v2626 = vadd.f32 %v2577, %v2625
      %v2627 = vpop.f32.mrf.mxu0
      %2628 = vdwg.mxu0
      %2630 = vset.pattern.permute.xlu0 0
      %2631 = vperm.xlu0 %2630, %v2511
      %v2632 = vpop.permute.xlu0 %2631
      %2635 = vset.pattern.permute.xlu0 0
      %2636 = vperm.xlu0 %2635, %v2512
      %v2637 = vpop.permute.xlu0 %2636
      %v2639 = vadd.f32 %v2623, %v2632
      %v2640 = vadd.f32 %v2626, %v2637
      %vm2641 = vcmp.ge.f32.partialorder %v2639, 0.0
      %vm2642 = vcmp.ge.f32.partialorder %v2640, 0.0
      %v2643 = vmul.f32 %v2639, 0.5
      %v2644 = vmul.f32 %v2640, 0.5
      %v2645 = vsel %vm2641, %v2639, %v2643
      %v2646 = vsel %vm2642, %v2640, %v2644
      %s2647 = scalar_lea.vmem %s14, 16
      %v2648 = vld [vmem:[%s2647] sm:$0xf]
      %v2649 = vld [vmem:[%s2647 + $0x4] sm:$0xf]
      %v2650 = vld [vmem:[%s14] sm:$0xf]
      %v2651 = vld [vmem:[%s14 + $0x4] sm:$0xf]
      %2652 = vrot.lane.b32.xlu0 %v2509, 120
      %v2653 = vpop.permute.xlu0 %2652
      %2654 = vrot.lane.b32.xlu0 %v2510, 120
      %v2655 = vpop.permute.xlu0 %2654
      %v2657 = vsel %vm2504, %v2653, 0
      %v2660 = vsel %vm2504, %v2655, 0
      %v2664 = vunpack.c.l.b16 %v2650
      %v2665 = vunpack.c.l.b16 %v2651
      %v2666 = vpack.c.b16 %v2665, %v2664
      %v2668 = vsel %vm1830, %v2666, 0
      %2670 = vmatprep.subr.bf16.mxu0 0
      %2671 = vmatpush1.bf16.msra.mxu0 0
      %2672 = vmatprep.subr.bf16.mxu0 0
      %2673 = vmatpush1.bf16.msra.mxu0 0
      %2674 = vmatprep.subr.bf16.mxu0 0
      %2675 = vmatpush1.bf16.msra.mxu0 0
      %2676 = vmatprep.subr.bf16.mxu0 0
      %2677 = vmatpush1.bf16.msra.mxu0 0
      %2678 = vmatprep.subr.bf16.mxu0 0
      %2679 = vmatpush1.bf16.msra.mxu0 0
      %2680 = vmatprep.subr.bf16.mxu0 0
      %2681 = vmatpush1.bf16.msra.mxu0 0
      %2682 = vmatprep.subr.bf16.mxu0 0
      %2683 = vmatpush1.bf16.msra.mxu0 %v2660
      %2684 = vmatprep.subr.bf16.mxu0 0
      %2685 = vmatpush1.bf16.msra.mxu0 %v2657
      %2686 = vmatprep.subr.bf16.mxu0 0
      %2687 = vmatpush2.bf16.msra.mxu0 0
      %2688 = vmatprep.subr.bf16.mxu0 0
      %2689 = vmatpush2.bf16.msra.mxu0 0
      %2690 = vmatprep.subr.bf16.mxu0 0
      %2691 = vmatpush2.bf16.msra.mxu0 0
      %2692 = vmatprep.subr.bf16.mxu0 0
      %2693 = vmatpush2.bf16.msra.mxu0 0
      %2694 = vmatprep.subr.bf16.mxu0 0
      %2695 = vmatpush2.bf16.msra.mxu0 0
      %2696 = vmatprep.subr.bf16.mxu0 0
      %2697 = vmatpush2.bf16.msra.mxu0 0
      %2698 = vmatprep.subr.bf16.mxu0 0
      %2699 = vmatpush2.bf16.msra.mxu0 0
      %2700 = vmatprep.subr.bf16.mxu0 0
      %2701 = vmatpush2.bf16.msra.mxu0 0
      %2702 = vmatprep.mubr.bf16.mxu0 0
      %2703 = vmatmul.mubr.bf16.gmra.mxu0 %v2668
      %v2704 = vpop.f32.mrf.mxu0
      %v2705 = vadd.f32 0.0, %v2704
      %v2706 = vpop.f32.mrf.mxu0
      %v2707 = vpop.f32.mrf.mxu0
      %v2708 = vadd.f32 0.0, %v2707
      %v2709 = vpop.f32.mrf.mxu0
      %2710 = vdwg.mxu0
      %v2713 = vunpack.c.l.b16 %v2648
      %v2714 = vunpack.c.l.b16 %v2649
      %v2715 = vpack.c.b16 %v2714, %v2713
      %v2717 = vsel %vm1830, %v2715, 0
      %2719 = vmatprep.subr.bf16.mxu0 0
      %2720 = vmatpush1.bf16.msra.mxu0 0
      %2721 = vmatprep.subr.bf16.mxu0 0
      %2722 = vmatpush1.bf16.msra.mxu0 0
      %2723 = vmatprep.subr.bf16.mxu0 0
      %2724 = vmatpush1.bf16.msra.mxu0 0
      %2725 = vmatprep.subr.bf16.mxu0 0
      %2726 = vmatpush1.bf16.msra.mxu0 0
      %2727 = vmatprep.subr.bf16.mxu0 0
      %2728 = vmatpush1.bf16.msra.mxu0 0
      %2729 = vmatprep.subr.bf16.mxu0 0
      %2730 = vmatpush1.bf16.msra.mxu0 0
      %2731 = vmatprep.subr.bf16.mxu0 0
      %2732 = vmatpush1.bf16.msra.mxu0 %v2510
      %2733 = vmatprep.subr.bf16.mxu0 0
      %2734 = vmatpush1.bf16.msra.mxu0 %v2509
      %2735 = vmatprep.subr.bf16.mxu0 0
      %2736 = vmatpush2.bf16.msra.mxu0 0
      %2737 = vmatprep.subr.bf16.mxu0 0
      %2738 = vmatpush2.bf16.msra.mxu0 0
      %2739 = vmatprep.subr.bf16.mxu0 0
      %2740 = vmatpush2.bf16.msra.mxu0 0
      %2741 = vmatprep.subr.bf16.mxu0 0
      %2742 = vmatpush2.bf16.msra.mxu0 0
      %2743 = vmatprep.subr.bf16.mxu0 0
      %2744 = vmatpush2.bf16.msra.mxu0 0
      %2745 = vmatprep.subr.bf16.mxu0 0
      %2746 = vmatpush2.bf16.msra.mxu0 0
      %2747 = vmatprep.subr.bf16.mxu0 0
      %2748 = vmatpush2.bf16.msra.mxu0 0
      %2749 = vmatprep.subr.bf16.mxu0 0
      %2750 = vmatpush2.bf16.msra.mxu0 0
      %2751 = vmatprep.mubr.bf16.mxu0 0
      %2752 = vmatmul.mubr.bf16.gmra.mxu0 %v2717
      %v2753 = vpop.f32.mrf.mxu0
      %v2754 = vadd.f32 %v2705, %v2753
      %v2755 = vpop.f32.mrf.mxu0
      %v2756 = vpop.f32.mrf.mxu0
      %v2757 = vadd.f32 %v2708, %v2756
      %v2758 = vpop.f32.mrf.mxu0
      %2759 = vdwg.mxu0
      %v2760 = vadd.f32 %v2754, %v2632
      %v2761 = vadd.f32 %v2757, %v2637
      %vm2762 = vcmp.ge.f32.partialorder %v2760, 0.0
      %vm2763 = vcmp.ge.f32.partialorder %v2761, 0.0
      %v2764 = vmul.f32 %v2760, 0.5
      %v2765 = vmul.f32 %v2761, 0.5
      %v2766 = vsel %vm2762, %v2760, %v2764
      %v2767 = vsel %vm2763, %v2761, %v2765
      %v2768 = vpack.c.bf16 %v2646, %v2645
      %v2769 = vld [vmem:[%s16] sm:$0xf]
      %v2770 = vld [vmem:[%s16 + $0x4] sm:$0xf]
      %v2771 = vld [vmem:[%s16 + $0x8] sm:$0xf]
      %v2772 = vld [vmem:[%s16 + $0xc] sm:$0xf]
      %v2773 = vpack.c.bf16 %v2767, %v2766
      %v2774 = vld [vmem:[%s17] sm:$0xf]
      %v2775 = vld [vmem:[%s17 + $0x4] sm:$0xf]
      %v2776 = vld [vmem:[%s17 + $0x8] sm:$0xf]
      %v2777 = vld [vmem:[%s17 + $0xc] sm:$0xf]
      %v2782 = vunpack.c.l.b16 %v2774
      %v2783 = vunpack.c.l.b16 %v2775
      %v2784 = vunpack.c.l.b16 %v2776
      %v2785 = vunpack.c.l.b16 %v2777
      %v2786 = vpack.c.b16 %v2783, %v2782
      %v2787 = vpack.c.b16 %v2785, %v2784
      %v2791 = vsel %vm1830, %v2773, 0
      %2793 = vmatprep.subr.bf16.mxu0 0
      %2794 = vmatpush1.bf16.msra.mxu0 0
      %2795 = vmatprep.subr.bf16.mxu0 0
      %2796 = vmatpush1.bf16.msra.mxu0 0
      %2797 = vmatprep.subr.bf16.mxu0 0
      %2798 = vmatpush1.bf16.msra.mxu0 0
      %2799 = vmatprep.subr.bf16.mxu0 0
      %2800 = vmatpush1.bf16.msra.mxu0 0
      %2801 = vmatprep.subr.bf16.mxu0 0
      %2802 = vmatpush1.bf16.msra.mxu0 0
      %2803 = vmatprep.subr.bf16.mxu0 0
      %2804 = vmatpush1.bf16.msra.mxu0 0
      %2805 = vmatprep.subr.bf16.mxu0 0
      %2806 = vmatpush1.bf16.msra.mxu0 %v2787
      %2807 = vmatprep.subr.bf16.mxu0 0
      %2808 = vmatpush1.bf16.msra.mxu0 %v2786
      %2809 = vmatprep.subr.bf16.mxu0 0
      %2810 = vmatpush2.bf16.msra.mxu0 0
      %2811 = vmatprep.subr.bf16.mxu0 0
      %2812 = vmatpush2.bf16.msra.mxu0 0
      %2813 = vmatprep.subr.bf16.mxu0 0
      %2814 = vmatpush2.bf16.msra.mxu0 0
      %2815 = vmatprep.subr.bf16.mxu0 0
      %2816 = vmatpush2.bf16.msra.mxu0 0
      %2817 = vmatprep.subr.bf16.mxu0 0
      %2818 = vmatpush2.bf16.msra.mxu0 0
      %2819 = vmatprep.subr.bf16.mxu0 0
      %2820 = vmatpush2.bf16.msra.mxu0 0
      %2821 = vmatprep.subr.bf16.mxu0 0
      %2822 = vmatpush2.bf16.msra.mxu0 0
      %2823 = vmatprep.subr.bf16.mxu0 0
      %2824 = vmatpush2.bf16.msra.mxu0 0
      %2825 = vmatprep.mubr.bf16.mxu0 0
      %2826 = vmatmul.mubr.bf16.gmra.mxu0 %v2791
      %v2827 = vpop.f32.mrf.mxu0
      %v2828 = vadd.f32 0.0, %v2827
      %v2829 = vpop.f32.mrf.mxu0
      %v2830 = vpop.f32.mrf.mxu0
      %v2831 = vadd.f32 0.0, %v2830
      %v2832 = vpop.f32.mrf.mxu0
      %2833 = vdwg.mxu0
      %v2838 = vunpack.c.l.b16 %v2769
      %v2839 = vunpack.c.l.b16 %v2770
      %v2840 = vunpack.c.l.b16 %v2771
      %v2841 = vunpack.c.l.b16 %v2772
      %v2842 = vpack.c.b16 %v2839, %v2838
      %v2843 = vpack.c.b16 %v2841, %v2840
      %v2847 = vsel %vm1830, %v2768, 0
      %2849 = vmatprep.subr.bf16.mxu0 0
      %2850 = vmatpush1.bf16.msra.mxu0 0
      %2851 = vmatprep.subr.bf16.mxu0 0
      %2852 = vmatpush1.bf16.msra.mxu0 0
      %2853 = vmatprep.subr.bf16.mxu0 0
      %2854 = vmatpush1.bf16.msra.mxu0 0
      %2855 = vmatprep.subr.bf16.mxu0 0
      %2856 = vmatpush1.bf16.msra.mxu0 0
      %2857 = vmatprep.subr.bf16.mxu0 0
      %2858 = vmatpush1.bf16.msra.mxu0 0
      %2859 = vmatprep.subr.bf16.mxu0 0
      %2860 = vmatpush1.bf16.msra.mxu0 0
      %2861 = vmatprep.subr.bf16.mxu0 0
      %2862 = vmatpush1.bf16.msra.mxu0 %v2843
      %2863 = vmatprep.subr.bf16.mxu0 0
      %2864 = vmatpush1.bf16.msra.mxu0 %v2842
      %2865 = vmatprep.subr.bf16.mxu0 0
      %2866 = vmatpush2.bf16.msra.mxu0 0
      %2867 = vmatprep.subr.bf16.mxu0 0
      %2868 = vmatpush2.bf16.msra.mxu0 0
      %2869 = vmatprep.subr.bf16.mxu0 0
      %2870 = vmatpush2.bf16.msra.mxu0 0
      %2871 = vmatprep.subr.bf16.mxu0 0
      %2872 = vmatpush2.bf16.msra.mxu0 0
      %2873 = vmatprep.subr.bf16.mxu0 0
      %2874 = vmatpush2.bf16.msra.mxu0 0
      %2875 = vmatprep.subr.bf16.mxu0 0
      %2876 = vmatpush2.bf16.msra.mxu0 0
      %2877 = vmatprep.subr.bf16.mxu0 0
      %2878 = vmatpush2.bf16.msra.mxu0 0
      %2879 = vmatprep.subr.bf16.mxu0 0
      %2880 = vmatpush2.bf16.msra.mxu0 0
      %2881 = vmatprep.mubr.bf16.mxu0 0
      %2882 = vmatmul.mubr.bf16.gmra.mxu0 %v2847
      %v2883 = vpop.f32.mrf.mxu0
      %v2884 = vadd.f32 %v2828, %v2883
      %v2885 = vpop.f32.mrf.mxu0
      %v2886 = vpop.f32.mrf.mxu0
      %v2887 = vadd.f32 %v2831, %v2886
      %v2888 = vpop.f32.mrf.mxu0
      %2889 = vdwg.mxu0
      %v2890 = vpack.c.bf16 %v2887, %v2884
      %v2891 = vld [vmem:[%s19] sm:$0xff]
      %s2892 = scalar_lea.vmem %s18, 4
      %v2893 = vld [vmem:[%s2892] sm:$0xf]
      %s2894 = scalar_lea.vmem %s18, 12
      %v2895 = vld [vmem:[%s2894] sm:$0xf]
      %2897 = vrot.lane.b32.xlu0 %v2890, 8
      %v2898 = vpop.permute.xlu0 %2897
      %v2900 = vsel %vm810, 0, %v2898
      %v2903 = vsel %vm1488, %v2895, 0
      %2905 = vmatprep.subr.bf16.mxu0 0
      %2906 = vmatpush1.bf16.msra.mxu0 0
      %2907 = vmatprep.subr.bf16.mxu0 0
      %2908 = vmatpush1.bf16.msra.mxu0 0
      %2909 = vmatprep.subr.bf16.mxu0 0
      %2910 = vmatpush1.bf16.msra.mxu0 0
      %2911 = vmatprep.subr.bf16.mxu0 0
      %2912 = vmatpush1.bf16.msra.mxu0 0
      %2913 = vmatprep.subr.bf16.mxu0 0
      %2914 = vmatpush1.bf16.msra.mxu0 0
      %2915 = vmatprep.subr.bf16.mxu0 0
      %2916 = vmatpush1.bf16.msra.mxu0 0
      %2917 = vmatprep.subr.bf16.mxu0 0
      %2918 = vmatpush1.bf16.msra.mxu0 0
      %2919 = vmatprep.subr.bf16.mxu0 0
      %2920 = vmatpush1.bf16.msra.mxu0 %v2900
      %2921 = vmatprep.subr.bf16.mxu0 0
      %2922 = vmatpush2.bf16.msra.mxu0 0
      %2923 = vmatprep.subr.bf16.mxu0 0
      %2924 = vmatpush2.bf16.msra.mxu0 0
      %2925 = vmatprep.subr.bf16.mxu0 0
      %2926 = vmatpush2.bf16.msra.mxu0 0
      %2927 = vmatprep.subr.bf16.mxu0 0
      %2928 = vmatpush2.bf16.msra.mxu0 0
      %2929 = vmatprep.subr.bf16.mxu0 0
      %2930 = vmatpush2.bf16.msra.mxu0 0
      %2931 = vmatprep.subr.bf16.mxu0 0
      %2932 = vmatpush2.bf16.msra.mxu0 0
      %2933 = vmatprep.subr.bf16.mxu0 0
      %2934 = vmatpush2.bf16.msra.mxu0 0
      %2935 = vmatprep.subr.bf16.mxu0 0
      %2936 = vmatpush2.bf16.msra.mxu0 0
      %2937 = vmatprep.mubr.bf16.mxu0 0
      %2938 = vmatmul.mubr.bf16.gmra.mxu0 %v2903
      %v2939 = vpop.f32.mrf.mxu0
      %v2940 = vadd.f32 0.0, %v2939
      %v2941 = vpop.f32.mrf.mxu0
      %v2942 = vpop.f32.mrf.mxu0
      %v2943 = vpop.f32.mrf.mxu0
      %2944 = vdwg.mxu0
      %v2946 = vsel %vm1488, %v2893, 0
      %2948 = vmatprep.subr.bf16.mxu0 0
      %2949 = vmatpush1.bf16.msra.mxu0 0
      %2950 = vmatprep.subr.bf16.mxu0 0
      %2951 = vmatpush1.bf16.msra.mxu0 0
      %2952 = vmatprep.subr.bf16.mxu0 0
      %2953 = vmatpush1.bf16.msra.mxu0 0
      %2954 = vmatprep.subr.bf16.mxu0 0
      %2955 = vmatpush1.bf16.msra.mxu0 0
      %2956 = vmatprep.subr.bf16.mxu0 0
      %2957 = vmatpush1.bf16.msra.mxu0 0
      %2958 = vmatprep.subr.bf16.mxu0 0
      %2959 = vmatpush1.bf16.msra.mxu0 0
      %2960 = vmatprep.subr.bf16.mxu0 0
      %2961 = vmatpush1.bf16.msra.mxu0 0
      %2962 = vmatprep.subr.bf16.mxu0 0
      %2963 = vmatpush1.bf16.msra.mxu0 %v2890
      %2964 = vmatprep.subr.bf16.mxu0 0
      %2965 = vmatpush2.bf16.msra.mxu0 0
      %2966 = vmatprep.subr.bf16.mxu0 0
      %2967 = vmatpush2.bf16.msra.mxu0 0
      %2968 = vmatprep.subr.bf16.mxu0 0
      %2969 = vmatpush2.bf16.msra.mxu0 0
      %2970 = vmatprep.subr.bf16.mxu0 0
      %2971 = vmatpush2.bf16.msra.mxu0 0
      %2972 = vmatprep.subr.bf16.mxu0 0
      %2973 = vmatpush2.bf16.msra.mxu0 0
      %2974 = vmatprep.subr.bf16.mxu0 0
      %2975 = vmatpush2.bf16.msra.mxu0 0
      %2976 = vmatprep.subr.bf16.mxu0 0
      %2977 = vmatpush2.bf16.msra.mxu0 0
      %2978 = vmatprep.subr.bf16.mxu0 0
      %2979 = vmatpush2.bf16.msra.mxu0 0
      %2980 = vmatprep.mubr.bf16.mxu0 0
      %2981 = vmatmul.mubr.bf16.gmra.mxu0 %v2946
      %v2982 = vpop.f32.mrf.mxu0
      %v2983 = vadd.f32 %v2940, %v2982
      %v2984 = vpop.f32.mrf.mxu0
      %v2985 = vpop.f32.mrf.mxu0
      %v2986 = vpop.f32.mrf.mxu0
      %2987 = vdwg.mxu0
      %2989 = vset.pattern.permute.xlu0 0
      %2990 = vperm.xlu0 %2989, %v2891
      %v2991 = vpop.permute.xlu0 %2990
      %v2993 = vadd.f32 %v2983, %v2991
      %vm2994 = vcmp.ge.f32.partialorder %v2993, 0.0
      %v2995 = vmul.f32 %v2993, 0.5
      %v2996 = vsel %vm2994, %v2993, %v2995
      %s2997 = scalar_lea.vmem %s18, 8
      %v2998 = vld [vmem:[%s2997] sm:$0xf]
      %v2999 = vld [vmem:[%s18] sm:$0xf]
      %3000 = vrot.lane.b32.xlu0 %v2890, 120
      %v3001 = vpop.permute.xlu0 %3000
      %v3003 = vsel %vm1616, %v3001, 0
      %v3006 = vsel %vm1488, %v2999, 0
      %3008 = vmatprep.subr.bf16.mxu0 0
      %3009 = vmatpush1.bf16.msra.mxu0 0
      %3010 = vmatprep.subr.bf16.mxu0 0
      %3011 = vmatpush1.bf16.msra.mxu0 0
      %3012 = vmatprep.subr.bf16.mxu0 0
      %3013 = vmatpush1.bf16.msra.mxu0 0
      %3014 = vmatprep.subr.bf16.mxu0 0
      %3015 = vmatpush1.bf16.msra.mxu0 0
      %3016 = vmatprep.subr.bf16.mxu0 0
      %3017 = vmatpush1.bf16.msra.mxu0 0
      %3018 = vmatprep.subr.bf16.mxu0 0
      %3019 = vmatpush1.bf16.msra.mxu0 0
      %3020 = vmatprep.subr.bf16.mxu0 0
      %3021 = vmatpush1.bf16.msra.mxu0 0
      %3022 = vmatprep.subr.bf16.mxu0 0
      %3023 = vmatpush1.bf16.msra.mxu0 %v3003
      %3024 = vmatprep.subr.bf16.mxu0 0
      %3025 = vmatpush2.bf16.msra.mxu0 0
      %3026 = vmatprep.subr.bf16.mxu0 0
      %3027 = vmatpush2.bf16.msra.mxu0 0
      %3028 = vmatprep.subr.bf16.mxu0 0
      %3029 = vmatpush2.bf16.msra.mxu0 0
      %3030 = vmatprep.subr.bf16.mxu0 0
      %3031 = vmatpush2.bf16.msra.mxu0 0
      %3032 = vmatprep.subr.bf16.mxu0 0
      %3033 = vmatpush2.bf16.msra.mxu0 0
      %3034 = vmatprep.subr.bf16.mxu0 0
      %3035 = vmatpush2.bf16.msra.mxu0 0
      %3036 = vmatprep.subr.bf16.mxu0 0
      %3037 = vmatpush2.bf16.msra.mxu0 0
      %3038 = vmatprep.subr.bf16.mxu0 0
      %3039 = vmatpush2.bf16.msra.mxu0 0
      %3040 = vmatprep.mubr.bf16.mxu0 0
      %3041 = vmatmul.mubr.bf16.gmra.mxu0 %v3006
      %v3042 = vpop.f32.mrf.mxu0
      %v3043 = vadd.f32 0.0, %v3042
      %v3044 = vpop.f32.mrf.mxu0
      %v3045 = vpop.f32.mrf.mxu0
      %v3046 = vpop.f32.mrf.mxu0
      %3047 = vdwg.mxu0
      %v3049 = vsel %vm1488, %v2998, 0
      %3051 = vmatprep.subr.bf16.mxu0 0
      %3052 = vmatpush1.bf16.msra.mxu0 0
      %3053 = vmatprep.subr.bf16.mxu0 0
      %3054 = vmatpush1.bf16.msra.mxu0 0
      %3055 = vmatprep.subr.bf16.mxu0 0
      %3056 = vmatpush1.bf16.msra.mxu0 0
      %3057 = vmatprep.subr.bf16.mxu0 0
      %3058 = vmatpush1.bf16.msra.mxu0 0
      %3059 = vmatprep.subr.bf16.mxu0 0
      %3060 = vmatpush1.bf16.msra.mxu0 0
      %3061 = vmatprep.subr.bf16.mxu0 0
      %3062 = vmatpush1.bf16.msra.mxu0 0
      %3063 = vmatprep.subr.bf16.mxu0 0
      %3064 = vmatpush1.bf16.msra.mxu0 0
      %3065 = vmatprep.subr.bf16.mxu0 0
      %3066 = vmatpush1.bf16.msra.mxu0 %v2890
      %3067 = vmatprep.subr.bf16.mxu0 0
      %3068 = vmatpush2.bf16.msra.mxu0 0
      %3069 = vmatprep.subr.bf16.mxu0 0
      %3070 = vmatpush2.bf16.msra.mxu0 0
      %3071 = vmatprep.subr.bf16.mxu0 0
      %3072 = vmatpush2.bf16.msra.mxu0 0
      %3073 = vmatprep.subr.bf16.mxu0 0
      %3074 = vmatpush2.bf16.msra.mxu0 0
      %3075 = vmatprep.subr.bf16.mxu0 0
      %3076 = vmatpush2.bf16.msra.mxu0 0
      %3077 = vmatprep.subr.bf16.mxu0 0
      %3078 = vmatpush2.bf16.msra.mxu0 0
      %3079 = vmatprep.subr.bf16.mxu0 0
      %3080 = vmatpush2.bf16.msra.mxu0 0
      %3081 = vmatprep.subr.bf16.mxu0 0
      %3082 = vmatpush2.bf16.msra.mxu0 0
      %3083 = vmatprep.mubr.bf16.mxu0 0
      %3084 = vmatmul.mubr.bf16.gmra.mxu0 %v3049
      %v3085 = vpop.f32.mrf.mxu0
      %v3086 = vadd.f32 %v3043, %v3085
      %v3087 = vpop.f32.mrf.mxu0
      %v3088 = vpop.f32.mrf.mxu0
      %v3089 = vpop.f32.mrf.mxu0
      %3090 = vdwg.mxu0
      %v3091 = vadd.f32 %v3086, %v2991
      %vm3092 = vcmp.ge.f32.partialorder %v3091, 0.0
      %v3093 = vmul.f32 %v3091, 0.5
      %v3094 = vsel %vm3092, %v3091, %v3093
      %v3095 = vpack.c.bf16 %v2996, %v2996
      %v3096 = vld [vmem:[%s20] sm:$0xf]
      %v3097 = vld [vmem:[%s20 + $0x4] sm:$0xf]
      %v3098 = vld [vmem:[%s20 + $0x8] sm:$0xf]
      %v3099 = vld [vmem:[%s20 + $0xc] sm:$0xf]
      %v3100 = vld [vmem:[%s20 + $0x10] sm:$0xf]
      %v3101 = vld [vmem:[%s20 + $0x14] sm:$0xf]
      %v3102 = vld [vmem:[%s20 + $0x18] sm:$0xf]
      %v3103 = vld [vmem:[%s20 + $0x1c] sm:$0xf]
      %v3104 = vpack.c.bf16 %v3094, %v3094
      %v3105 = vld [vmem:[%s21] sm:$0xf]
      %v3106 = vld [vmem:[%s21 + $0x4] sm:$0xf]
      %v3107 = vld [vmem:[%s21 + $0x8] sm:$0xf]
      %v3108 = vld [vmem:[%s21 + $0xc] sm:$0xf]
      %v3109 = vld [vmem:[%s21 + $0x10] sm:$0xf]
      %v3110 = vld [vmem:[%s21 + $0x14] sm:$0xf]
      %v3111 = vld [vmem:[%s21 + $0x18] sm:$0xf]
      %v3112 = vld [vmem:[%s21 + $0x1c] sm:$0xf]
      %v3121 = vunpack.c.l.b16 %v3105
      %v3122 = vunpack.c.l.b16 %v3106
      %v3123 = vunpack.c.l.b16 %v3107
      %v3124 = vunpack.c.l.b16 %v3108
      %v3125 = vunpack.c.l.b16 %v3109
      %v3126 = vunpack.c.l.b16 %v3110
      %v3127 = vunpack.c.l.b16 %v3111
      %v3128 = vunpack.c.l.b16 %v3112
      %v3129 = vpack.c.b16 %v3122, %v3121
      %v3130 = vpack.c.b16 %v3124, %v3123
      %v3131 = vpack.c.b16 %v3126, %v3125
      %v3132 = vpack.c.b16 %v3128, %v3127
      %v3138 = vsel %vm1763, %v3104, 0
      %3140 = vmatprep.subr.bf16.mxu0 0
      %3141 = vmatpush1.bf16.msra.mxu0 0
      %3142 = vmatprep.subr.bf16.mxu0 0
      %3143 = vmatpush1.bf16.msra.mxu0 0
      %3144 = vmatprep.subr.bf16.mxu0 0
      %3145 = vmatpush1.bf16.msra.mxu0 0
      %3146 = vmatprep.subr.bf16.mxu0 0
      %3147 = vmatpush1.bf16.msra.mxu0 0
      %3148 = vmatprep.subr.bf16.mxu0 0
      %3149 = vmatpush1.bf16.msra.mxu0 %v3132
      %3150 = vmatprep.subr.bf16.mxu0 0
      %3151 = vmatpush1.bf16.msra.mxu0 %v3131
      %3152 = vmatprep.subr.bf16.mxu0 0
      %3153 = vmatpush1.bf16.msra.mxu0 %v3130
      %3154 = vmatprep.subr.bf16.mxu0 0
      %3155 = vmatpush1.bf16.msra.mxu0 %v3129
      %3156 = vmatprep.subr.bf16.mxu0 0
      %3157 = vmatpush2.bf16.msra.mxu0 0
      %3158 = vmatprep.subr.bf16.mxu0 0
      %3159 = vmatpush2.bf16.msra.mxu0 0
      %3160 = vmatprep.subr.bf16.mxu0 0
      %3161 = vmatpush2.bf16.msra.mxu0 0
      %3162 = vmatprep.subr.bf16.mxu0 0
      %3163 = vmatpush2.bf16.msra.mxu0 0
      %3164 = vmatprep.subr.bf16.mxu0 0
      %3165 = vmatpush2.bf16.msra.mxu0 0
      %3166 = vmatprep.subr.bf16.mxu0 0
      %3167 = vmatpush2.bf16.msra.mxu0 0
      %3168 = vmatprep.subr.bf16.mxu0 0
      %3169 = vmatpush2.bf16.msra.mxu0 0
      %3170 = vmatprep.subr.bf16.mxu0 0
      %3171 = vmatpush2.bf16.msra.mxu0 0
      %3172 = vmatprep.mubr.bf16.mxu0 0
      %3173 = vmatmul.mubr.bf16.gmra.mxu0 %v3138
      %v3174 = vpop.f32.mrf.mxu0
      %v3175 = vadd.f32 0.0, %v3174
      %v3176 = vpop.f32.mrf.mxu0
      %v3177 = vpop.f32.mrf.mxu0
      %v3178 = vpop.f32.mrf.mxu0
      %3179 = vdwg.mxu0
      %v3188 = vunpack.c.l.b16 %v3096
      %v3189 = vunpack.c.l.b16 %v3097
      %v3190 = vunpack.c.l.b16 %v3098
      %v3191 = vunpack.c.l.b16 %v3099
      %v3192 = vunpack.c.l.b16 %v3100
      %v3193 = vunpack.c.l.b16 %v3101
      %v3194 = vunpack.c.l.b16 %v3102
      %v3195 = vunpack.c.l.b16 %v3103
      %v3196 = vpack.c.b16 %v3189, %v3188
      %v3197 = vpack.c.b16 %v3191, %v3190
      %v3198 = vpack.c.b16 %v3193, %v3192
      %v3199 = vpack.c.b16 %v3195, %v3194
      %v3205 = vsel %vm1763, %v3095, 0
      %3207 = vmatprep.subr.bf16.mxu0 0
      %3208 = vmatpush1.bf16.msra.mxu0 0
      %3209 = vmatprep.subr.bf16.mxu0 0
      %3210 = vmatpush1.bf16.msra.mxu0 0
      %3211 = vmatprep.subr.bf16.mxu0 0
      %3212 = vmatpush1.bf16.msra.mxu0 0
      %3213 = vmatprep.subr.bf16.mxu0 0
      %3214 = vmatpush1.bf16.msra.mxu0 0
      %3215 = vmatprep.subr.bf16.mxu0 0
      %3216 = vmatpush1.bf16.msra.mxu0 %v3199
      %3217 = vmatprep.subr.bf16.mxu0 0
      %3218 = vmatpush1.bf16.msra.mxu0 %v3198
      %3219 = vmatprep.subr.bf16.mxu0 0
      %3220 = vmatpush1.bf16.msra.mxu0 %v3197
      %3221 = vmatprep.subr.bf16.mxu0 0
      %3222 = vmatpush1.bf16.msra.mxu0 %v3196
      %3223 = vmatprep.subr.bf16.mxu0 0
      %3224 = vmatpush2.bf16.msra.mxu0 0
      %3225 = vmatprep.subr.bf16.mxu0 0
      %3226 = vmatpush2.bf16.msra.mxu0 0
      %3227 = vmatprep.subr.bf16.mxu0 0
      %3228 = vmatpush2.bf16.msra.mxu0 0
      %3229 = vmatprep.subr.bf16.mxu0 0
      %3230 = vmatpush2.bf16.msra.mxu0 0
      %3231 = vmatprep.subr.bf16.mxu0 0
      %3232 = vmatpush2.bf16.msra.mxu0 0
      %3233 = vmatprep.subr.bf16.mxu0 0
      %3234 = vmatpush2.bf16.msra.mxu0 0
      %3235 = vmatprep.subr.bf16.mxu0 0
      %3236 = vmatpush2.bf16.msra.mxu0 0
      %3237 = vmatprep.subr.bf16.mxu0 0
      %3238 = vmatpush2.bf16.msra.mxu0 0
      %3239 = vmatprep.mubr.bf16.mxu0 0
      %3240 = vmatmul.mubr.bf16.gmra.mxu0 %v3205
      %v3241 = vpop.f32.mrf.mxu0
      %v3242 = vadd.f32 %v3175, %v3241
      %v3243 = vpop.f32.mrf.mxu0
      %v3244 = vpop.f32.mrf.mxu0
      %v3245 = vpop.f32.mrf.mxu0
      %3246 = vdwg.mxu0
      %v3247 = vpack.c.bf16 %v3242, %v3242
      %v3248 = vld [vmem:[%s23] sm:$0xf]
      %s3249 = scalar_lea.vmem %s22, 2
      %v3250 = vld [vmem:[%s3249] sm:$0x3]
      %s3251 = scalar_lea.vmem %s22, 6
      %v3252 = vld [vmem:[%s3251] sm:$0x3]
      %3254 = vrot.lane.b32.xlu0 %v3247, 8
      %v3255 = vpop.permute.xlu0 %3254
      %v3257 = vsel %vm810, 0, %v3255
      %v3259 = vsel %vm810, %v3252, 0
      %v3261 = vsel %vm1180, %v3257, 0
      %3263 = vmatprep.subr.bf16.mxu0 0
      %3264 = vmatpush1.bf16.msra.mxu0 0
      %3265 = vmatprep.subr.bf16.mxu0 0
      %3266 = vmatpush1.bf16.msra.mxu0 0
      %3267 = vmatprep.subr.bf16.mxu0 0
      %3268 = vmatpush1.bf16.msra.mxu0 0
      %3269 = vmatprep.subr.bf16.mxu0 0
      %3270 = vmatpush1.bf16.msra.mxu0 0
      %3271 = vmatprep.subr.bf16.mxu0 0
      %3272 = vmatpush1.bf16.msra.mxu0 0
      %3273 = vmatprep.subr.bf16.mxu0 0
      %3274 = vmatpush1.bf16.msra.mxu0 0
      %3275 = vmatprep.subr.bf16.mxu0 0
      %3276 = vmatpush1.bf16.msra.mxu0 0
      %3277 = vmatprep.subr.bf16.mxu0 0
      %3278 = vmatpush1.bf16.msra.mxu0 %v3261
      %3279 = vmatprep.subr.bf16.mxu0 0
      %3280 = vmatpush2.bf16.msra.mxu0 0
      %3281 = vmatprep.subr.bf16.mxu0 0
      %3282 = vmatpush2.bf16.msra.mxu0 0
      %3283 = vmatprep.subr.bf16.mxu0 0
      %3284 = vmatpush2.bf16.msra.mxu0 0
      %3285 = vmatprep.subr.bf16.mxu0 0
      %3286 = vmatpush2.bf16.msra.mxu0 0
      %3287 = vmatprep.subr.bf16.mxu0 0
      %3288 = vmatpush2.bf16.msra.mxu0 0
      %3289 = vmatprep.subr.bf16.mxu0 0
      %3290 = vmatpush2.bf16.msra.mxu0 0
      %3291 = vmatprep.subr.bf16.mxu0 0
      %3292 = vmatpush2.bf16.msra.mxu0 0
      %3293 = vmatprep.subr.bf16.mxu0 0
      %3294 = vmatpush2.bf16.msra.mxu0 0
      %3295 = vmatprep.mubr.bf16.mxu0 0
      %3296 = vmatmul.mubr.bf16.gmra.mxu0 %v3259
      %v3297 = vpop.f32.mrf.mxu0
      %v3298 = vadd.f32 0.0, %v3297
      %v3299 = vpop.f32.mrf.mxu0
      %v3300 = vpop.f32.mrf.mxu0
      %v3301 = vpop.f32.mrf.mxu0
      %3302 = vdwg.mxu0
      %v3304 = vsel %vm810, %v3250, 0
      %v3307 = vsel %vm1180, %v3247, 0
      %3309 = vmatprep.subr.bf16.mxu0 0
      %3310 = vmatpush1.bf16.msra.mxu0 0
      %3311 = vmatprep.subr.bf16.mxu0 0
      %3312 = vmatpush1.bf16.msra.mxu0 0
      %3313 = vmatprep.subr.bf16.mxu0 0
      %3314 = vmatpush1.bf16.msra.mxu0 0
      %3315 = vmatprep.subr.bf16.mxu0 0
      %3316 = vmatpush1.bf16.msra.mxu0 0
      %3317 = vmatprep.subr.bf16.mxu0 0
      %3318 = vmatpush1.bf16.msra.mxu0 0
      %3319 = vmatprep.subr.bf16.mxu0 0
      %3320 = vmatpush1.bf16.msra.mxu0 0
      %3321 = vmatprep.subr.bf16.mxu0 0
      %3322 = vmatpush1.bf16.msra.mxu0 0
      %3323 = vmatprep.subr.bf16.mxu0 0
      %3324 = vmatpush1.bf16.msra.mxu0 %v3307
      %3325 = vmatprep.subr.bf16.mxu0 0
      %3326 = vmatpush2.bf16.msra.mxu0 0
      %3327 = vmatprep.subr.bf16.mxu0 0
      %3328 = vmatpush2.bf16.msra.mxu0 0
      %3329 = vmatprep.subr.bf16.mxu0 0
      %3330 = vmatpush2.bf16.msra.mxu0 0
      %3331 = vmatprep.subr.bf16.mxu0 0
      %3332 = vmatpush2.bf16.msra.mxu0 0
      %3333 = vmatprep.subr.bf16.mxu0 0
      %3334 = vmatpush2.bf16.msra.mxu0 0
      %3335 = vmatprep.subr.bf16.mxu0 0
      %3336 = vmatpush2.bf16.msra.mxu0 0
      %3337 = vmatprep.subr.bf16.mxu0 0
      %3338 = vmatpush2.bf16.msra.mxu0 0
      %3339 = vmatprep.subr.bf16.mxu0 0
      %3340 = vmatpush2.bf16.msra.mxu0 0
      %3341 = vmatprep.mubr.bf16.mxu0 0
      %3342 = vmatmul.mubr.bf16.gmra.mxu0 %v3304
      %v3343 = vpop.f32.mrf.mxu0
      %v3344 = vadd.f32 %v3298, %v3343
      %v3345 = vpop.f32.mrf.mxu0
      %v3346 = vpop.f32.mrf.mxu0
      %v3347 = vpop.f32.mrf.mxu0
      %3348 = vdwg.mxu0
      %3350 = vset.pattern.permute.xlu0 0
      %3351 = vperm.xlu0 %3350, %v3248
      %v3352 = vpop.permute.xlu0 %3351
      %v3354 = vadd.f32 %v3344, %v3352
      %vm3355 = vcmp.ge.f32.partialorder %v3354, 0.0
      %v3356 = vmul.f32 %v3354, 0.5
      %v3357 = vsel %vm3355, %v3354, %v3356
      %s3358 = scalar_lea.vmem %s22, 4
      %v3359 = vld [vmem:[%s3358] sm:$0x3]
      %v3360 = vld [vmem:[%s22] sm:$0x3]
      %3361 = vrot.lane.b32.xlu0 %v3247, 120
      %v3362 = vpop.permute.xlu0 %3361
      %v3364 = vsel %vm923, %v3362, 0
      %v3366 = vsel %vm810, %v3360, 0
      %v3368 = vsel %vm1180, %v3364, 0
      %3370 = vmatprep.subr.bf16.mxu0 0
      %3371 = vmatpush1.bf16.msra.mxu0 0
      %3372 = vmatprep.subr.bf16.mxu0 0
      %3373 = vmatpush1.bf16.msra.mxu0 0
      %3374 = vmatprep.subr.bf16.mxu0 0
      %3375 = vmatpush1.bf16.msra.mxu0 0
      %3376 = vmatprep.subr.bf16.mxu0 0
      %3377 = vmatpush1.bf16.msra.mxu0 0
      %3378 = vmatprep.subr.bf16.mxu0 0
      %3379 = vmatpush1.bf16.msra.mxu0 0
      %3380 = vmatprep.subr.bf16.mxu0 0
      %3381 = vmatpush1.bf16.msra.mxu0 0
      %3382 = vmatprep.subr.bf16.mxu0 0
      %3383 = vmatpush1.bf16.msra.mxu0 0
      %3384 = vmatprep.subr.bf16.mxu0 0
      %3385 = vmatpush1.bf16.msra.mxu0 %v3368
      %3386 = vmatprep.subr.bf16.mxu0 0
      %3387 = vmatpush2.bf16.msra.mxu0 0
      %3388 = vmatprep.subr.bf16.mxu0 0
      %3389 = vmatpush2.bf16.msra.mxu0 0
      %3390 = vmatprep.subr.bf16.mxu0 0
      %3391 = vmatpush2.bf16.msra.mxu0 0
      %3392 = vmatprep.subr.bf16.mxu0 0
      %3393 = vmatpush2.bf16.msra.mxu0 0
      %3394 = vmatprep.subr.bf16.mxu0 0
      %3395 = vmatpush2.bf16.msra.mxu0 0
      %3396 = vmatprep.subr.bf16.mxu0 0
      %3397 = vmatpush2.bf16.msra.mxu0 0
      %3398 = vmatprep.subr.bf16.mxu0 0
      %3399 = vmatpush2.bf16.msra.mxu0 0
      %3400 = vmatprep.subr.bf16.mxu0 0
      %3401 = vmatpush2.bf16.msra.mxu0 0
      %3402 = vmatprep.mubr.bf16.mxu0 0
      %3403 = vmatmul.mubr.bf16.gmra.mxu0 %v3366
      %v3404 = vpop.f32.mrf.mxu0
      %v3405 = vadd.f32 0.0, %v3404
      %v3406 = vpop.f32.mrf.mxu0
      %v3407 = vpop.f32.mrf.mxu0
      %v3408 = vpop.f32.mrf.mxu0
      %3409 = vdwg.mxu0
      %v3411 = vsel %vm810, %v3359, 0
      %3413 = vmatprep.subr.bf16.mxu0 0
      %3414 = vmatpush1.bf16.msra.mxu0 0
      %3415 = vmatprep.subr.bf16.mxu0 0
      %3416 = vmatpush1.bf16.msra.mxu0 0
      %3417 = vmatprep.subr.bf16.mxu0 0
      %3418 = vmatpush1.bf16.msra.mxu0 0
      %3419 = vmatprep.subr.bf16.mxu0 0
      %3420 = vmatpush1.bf16.msra.mxu0 0
      %3421 = vmatprep.subr.bf16.mxu0 0
      %3422 = vmatpush1.bf16.msra.mxu0 0
      %3423 = vmatprep.subr.bf16.mxu0 0
      %3424 = vmatpush1.bf16.msra.mxu0 0
      %3425 = vmatprep.subr.bf16.mxu0 0
      %3426 = vmatpush1.bf16.msra.mxu0 0
      %3427 = vmatprep.subr.bf16.mxu0 0
      %3428 = vmatpush1.bf16.msra.mxu0 %v3307
      %3429 = vmatprep.subr.bf16.mxu0 0
      %3430 = vmatpush2.bf16.msra.mxu0 0
      %3431 = vmatprep.subr.bf16.mxu0 0
      %3432 = vmatpush2.bf16.msra.mxu0 0
      %3433 = vmatprep.subr.bf16.mxu0 0
      %3434 = vmatpush2.bf16.msra.mxu0 0
      %3435 = vmatprep.subr.bf16.mxu0 0
      %3436 = vmatpush2.bf16.msra.mxu0 0
      %3437 = vmatprep.subr.bf16.mxu0 0
      %3438 = vmatpush2.bf16.msra.mxu0 0
      %3439 = vmatprep.subr.bf16.mxu0 0
      %3440 = vmatpush2.bf16.msra.mxu0 0
      %3441 = vmatprep.subr.bf16.mxu0 0
      %3442 = vmatpush2.bf16.msra.mxu0 0
      %3443 = vmatprep.subr.bf16.mxu0 0
      %3444 = vmatpush2.bf16.msra.mxu0 0
      %3445 = vmatprep.mubr.bf16.mxu0 0
      %3446 = vmatmul.mubr.bf16.gmra.mxu0 %v3411
      %v3447 = vpop.f32.mrf.mxu0
      %v3448 = vadd.f32 %v3405, %v3447
      %v3449 = vpop.f32.mrf.mxu0
      %v3450 = vpop.f32.mrf.mxu0
      %v3451 = vpop.f32.mrf.mxu0
      %3452 = vdwg.mxu0
      %v3453 = vadd.f32 %v3448, %v3352
      %vm3454 = vcmp.ge.f32.partialorder %v3453, 0.0
      %v3455 = vmul.f32 %v3453, 0.5
      %v3456 = vsel %vm3454, %v3453, %v3455
      %v3457 = vpack.c.bf16 %v3357, %v3357
      %v3458 = vld [vmem:[%s24] sm:$0xff]
      %v3459 = vld [vmem:[%s24 + $0x8] sm:$0xff]
      %v3460 = vld [vmem:[%s24 + $0x10] sm:$0xff]
      %v3461 = vld [vmem:[%s24 + $0x18] sm:$0xff]
      %v3462 = vld [vmem:[%s24 + $0x20] sm:$0xff]
      %v3463 = vld [vmem:[%s24 + $0x28] sm:$0xff]
      %v3464 = vld [vmem:[%s24 + $0x30] sm:$0xff]
      %v3465 = vld [vmem:[%s24 + $0x38] sm:$0xff]
      %v3466 = vld [vmem:[%s24 + $0x40] sm:$0xff]
      %v3467 = vld [vmem:[%s24 + $0x48] sm:$0xff]
      %v3468 = vld [vmem:[%s24 + $0x50] sm:$0xff]
      %v3469 = vld [vmem:[%s24 + $0x58] sm:$0xff]
      %v3470 = vld [vmem:[%s24 + $0x60] sm:$0xff]
      %v3471 = vld [vmem:[%s24 + $0x68] sm:$0xff]
      %v3472 = vld [vmem:[%s24 + $0x70] sm:$0xff]
      %v3473 = vld [vmem:[%s24 + $0x78] sm:$0xff]
      %v3474 = vpack.c.bf16 %v3456, %v3456
      %v3475 = vld [vmem:[%s25] sm:$0xff]
      %v3476 = vld [vmem:[%s25 + $0x8] sm:$0xff]
      %v3477 = vld [vmem:[%s25 + $0x10] sm:$0xff]
      %v3478 = vld [vmem:[%s25 + $0x18] sm:$0xff]
      %v3479 = vld [vmem:[%s25 + $0x20] sm:$0xff]
      %v3480 = vld [vmem:[%s25 + $0x28] sm:$0xff]
      %v3481 = vld [vmem:[%s25 + $0x30] sm:$0xff]
      %v3482 = vld [vmem:[%s25 + $0x38] sm:$0xff]
      %v3483 = vld [vmem:[%s25 + $0x40] sm:$0xff]
      %v3484 = vld [vmem:[%s25 + $0x48] sm:$0xff]
      %v3485 = vld [vmem:[%s25 + $0x50] sm:$0xff]
      %v3486 = vld [vmem:[%s25 + $0x58] sm:$0xff]
      %v3487 = vld [vmem:[%s25 + $0x60] sm:$0xff]
      %v3488 = vld [vmem:[%s25 + $0x68] sm:$0xff]
      %v3489 = vld [vmem:[%s25 + $0x70] sm:$0xff]
      %v3490 = vld [vmem:[%s25 + $0x78] sm:$0xff]
      %v3507 = vunpack.c.l.b16 %v3475
      %v3508 = vunpack.c.h.b16 %v3475
      %v3509 = vunpack.c.l.b16 %v3476
      %v3510 = vunpack.c.h.b16 %v3476
      %v3511 = vunpack.c.l.b16 %v3477
      %v3512 = vunpack.c.h.b16 %v3477
      %v3513 = vunpack.c.l.b16 %v3478
      %v3514 = vunpack.c.h.b16 %v3478
      %v3515 = vunpack.c.l.b16 %v3479
      %v3516 = vunpack.c.h.b16 %v3479
      %v3517 = vunpack.c.l.b16 %v3480
      %v3518 = vunpack.c.h.b16 %v3480
      %v3519 = vunpack.c.l.b16 %v3481
      %v3520 = vunpack.c.h.b16 %v3481
      %v3521 = vunpack.c.l.b16 %v3482
      %v3522 = vunpack.c.h.b16 %v3482
      %v3523 = vunpack.c.l.b16 %v3483
      %v3524 = vunpack.c.h.b16 %v3483
      %v3525 = vunpack.c.l.b16 %v3484
      %v3526 = vunpack.c.h.b16 %v3484
      %v3527 = vunpack.c.l.b16 %v3485
      %v3528 = vunpack.c.h.b16 %v3485
      %v3529 = vunpack.c.l.b16 %v3486
      %v3530 = vunpack.c.h.b16 %v3486
      %v3531 = vunpack.c.l.b16 %v3487
      %v3532 = vunpack.c.h.b16 %v3487
      %v3533 = vunpack.c.l.b16 %v3488
      %v3534 = vunpack.c.h.b16 %v3488
      %v3535 = vunpack.c.l.b16 %v3489
      %v3536 = vunpack.c.h.b16 %v3489
      %v3537 = vunpack.c.l.b16 %v3490
      %v3538 = vunpack.c.h.b16 %v3490
      %v3539 = vpack.c.b16 %v3509, %v3507
      %v3540 = vpack.c.b16 %v3510, %v3508
      %v3541 = vpack.c.b16 %v3513, %v3511
      %v3542 = vpack.c.b16 %v3514, %v3512
      %v3543 = vpack.c.b16 %v3517, %v3515
      %v3544 = vpack.c.b16 %v3518, %v3516
      %v3545 = vpack.c.b16 %v3521, %v3519
      %v3546 = vpack.c.b16 %v3522, %v3520
      %v3547 = vpack.c.b16 %v3525, %v3523
      %v3548 = vpack.c.b16 %v3526, %v3524
      %v3549 = vpack.c.b16 %v3529, %v3527
      %v3550 = vpack.c.b16 %v3530, %v3528
      %v3551 = vpack.c.b16 %v3533, %v3531
      %v3552 = vpack.c.b16 %v3534, %v3532
      %v3553 = vpack.c.b16 %v3537, %v3535
      %v3554 = vpack.c.b16 %v3538, %v3536
      %3571 = vmatprep.subr.bf16.mxu0 %v3554
      %3572 = vmatpush1.bf16.msra.mxu0 %v3553
      %3573 = vmatprep.subr.bf16.mxu0 %v3552
      %3574 = vmatpush1.bf16.msra.mxu0 %v3551
      %3575 = vmatprep.subr.bf16.mxu0 %v3550
      %3576 = vmatpush1.bf16.msra.mxu0 %v3549
      %3577 = vmatprep.subr.bf16.mxu0 %v3548
      %3578 = vmatpush1.bf16.msra.mxu0 %v3547
      %3579 = vmatprep.subr.bf16.mxu0 %v3546
      %3580 = vmatpush1.bf16.msra.mxu0 %v3545
      %3581 = vmatprep.subr.bf16.mxu0 %v3544
      %3582 = vmatpush1.bf16.msra.mxu0 %v3543
      %3583 = vmatprep.subr.bf16.mxu0 %v3542
      %3584 = vmatpush1.bf16.msra.mxu0 %v3541
      %3585 = vmatprep.subr.bf16.mxu0 %v3540
      %3586 = vmatpush1.bf16.msra.mxu0 %v3539
      %3587 = vmatprep.subr.bf16.mxu0 0
      %3588 = vmatpush2.bf16.msra.mxu0 0
      %3589 = vmatprep.subr.bf16.mxu0 0
      %3590 = vmatpush2.bf16.msra.mxu0 0
      %3591 = vmatprep.subr.bf16.mxu0 0
      %3592 = vmatpush2.bf16.msra.mxu0 0
      %3593 = vmatprep.subr.bf16.mxu0 0
      %3594 = vmatpush2.bf16.msra.mxu0 0
      %3595 = vmatprep.subr.bf16.mxu0 0
      %3596 = vmatpush2.bf16.msra.mxu0 0
      %3597 = vmatprep.subr.bf16.mxu0 0
      %3598 = vmatpush2.bf16.msra.mxu0 0
      %3599 = vmatprep.subr.bf16.mxu0 0
      %3600 = vmatpush2.bf16.msra.mxu0 0
      %3601 = vmatprep.subr.bf16.mxu0 0
      %3602 = vmatpush2.bf16.msra.mxu0 0
      %3603 = vmatprep.mubr.bf16.mxu0 0
      %3604 = vmatmul.mubr.bf16.gmra.mxu0 %v3474
      %v3605 = vpop.f32.mrf.mxu0
      %v3606 = vadd.f32 0.0, %v3605
      %v3607 = vpop.f32.mrf.mxu0
      %v3608 = vadd.f32 0.0, %v3607
      %v3609 = vpop.f32.mrf.mxu0
      %v3610 = vpop.f32.mrf.mxu0
      %3611 = vdwg.mxu0
      %v3628 = vunpack.c.l.b16 %v3458
      %v3629 = vunpack.c.h.b16 %v3458
      %v3630 = vunpack.c.l.b16 %v3459
      %v3631 = vunpack.c.h.b16 %v3459
      %v3632 = vunpack.c.l.b16 %v3460
      %v3633 = vunpack.c.h.b16 %v3460
      %v3634 = vunpack.c.l.b16 %v3461
      %v3635 = vunpack.c.h.b16 %v3461
      %v3636 = vunpack.c.l.b16 %v3462
      %v3637 = vunpack.c.h.b16 %v3462
      %v3638 = vunpack.c.l.b16 %v3463
      %v3639 = vunpack.c.h.b16 %v3463
      %v3640 = vunpack.c.l.b16 %v3464
      %v3641 = vunpack.c.h.b16 %v3464
      %v3642 = vunpack.c.l.b16 %v3465
      %v3643 = vunpack.c.h.b16 %v3465
      %v3644 = vunpack.c.l.b16 %v3466
      %v3645 = vunpack.c.h.b16 %v3466
      %v3646 = vunpack.c.l.b16 %v3467
      %v3647 = vunpack.c.h.b16 %v3467
      %v3648 = vunpack.c.l.b16 %v3468
      %v3649 = vunpack.c.h.b16 %v3468
      %v3650 = vunpack.c.l.b16 %v3469
      %v3651 = vunpack.c.h.b16 %v3469
      %v3652 = vunpack.c.l.b16 %v3470
      %v3653 = vunpack.c.h.b16 %v3470
      %v3654 = vunpack.c.l.b16 %v3471
      %v3655 = vunpack.c.h.b16 %v3471
      %v3656 = vunpack.c.l.b16 %v3472
      %v3657 = vunpack.c.h.b16 %v3472
      %v3658 = vunpack.c.l.b16 %v3473
      %v3659 = vunpack.c.h.b16 %v3473
      %v3660 = vpack.c.b16 %v3630, %v3628
      %v3661 = vpack.c.b16 %v3631, %v3629
      %v3662 = vpack.c.b16 %v3634, %v3632
      %v3663 = vpack.c.b16 %v3635, %v3633
      %v3664 = vpack.c.b16 %v3638, %v3636
      %v3665 = vpack.c.b16 %v3639, %v3637
      %v3666 = vpack.c.b16 %v3642, %v3640
      %v3667 = vpack.c.b16 %v3643, %v3641
      %v3668 = vpack.c.b16 %v3646, %v3644
      %v3669 = vpack.c.b16 %v3647, %v3645
      %v3670 = vpack.c.b16 %v3650, %v3648
      %v3671 = vpack.c.b16 %v3651, %v3649
      %v3672 = vpack.c.b16 %v3654, %v3652
      %v3673 = vpack.c.b16 %v3655, %v3653
      %v3674 = vpack.c.b16 %v3658, %v3656
      %v3675 = vpack.c.b16 %v3659, %v3657
      %3692 = vmatprep.subr.bf16.mxu0 %v3675
      %3693 = vmatpush1.bf16.msra.mxu0 %v3674
      %3694 = vmatprep.subr.bf16.mxu0 %v3673
      %3695 = vmatpush1.bf16.msra.mxu0 %v3672
      %3696 = vmatprep.subr.bf16.mxu0 %v3671
      %3697 = vmatpush1.bf16.msra.mxu0 %v3670
      %3698 = vmatprep.subr.bf16.mxu0 %v3669
      %3699 = vmatpush1.bf16.msra.mxu0 %v3668
      %3700 = vmatprep.subr.bf16.mxu0 %v3667
      %3701 = vmatpush1.bf16.msra.mxu0 %v3666
      %3702 = vmatprep.subr.bf16.mxu0 %v3665
      %3703 = vmatpush1.bf16.msra.mxu0 %v3664
      %3704 = vmatprep.subr.bf16.mxu0 %v3663
      %3705 = vmatpush1.bf16.msra.mxu0 %v3662
      %3706 = vmatprep.subr.bf16.mxu0 %v3661
      %3707 = vmatpush1.bf16.msra.mxu0 %v3660
      %3708 = vmatprep.subr.bf16.mxu0 0
      %3709 = vmatpush2.bf16.msra.mxu0 0
      %3710 = vmatprep.subr.bf16.mxu0 0
      %3711 = vmatpush2.bf16.msra.mxu0 0
      %3712 = vmatprep.subr.bf16.mxu0 0
      %3713 = vmatpush2.bf16.msra.mxu0 0
      %3714 = vmatprep.subr.bf16.mxu0 0
      %3715 = vmatpush2.bf16.msra.mxu0 0
      %3716 = vmatprep.subr.bf16.mxu0 0
      %3717 = vmatpush2.bf16.msra.mxu0 0
      %3718 = vmatprep.subr.bf16.mxu0 0
      %3719 = vmatpush2.bf16.msra.mxu0 0
      %3720 = vmatprep.subr.bf16.mxu0 0
      %3721 = vmatpush2.bf16.msra.mxu0 0
      %3722 = vmatprep.subr.bf16.mxu0 0
      %3723 = vmatpush2.bf16.msra.mxu0 0
      %3724 = vmatprep.mubr.bf16.mxu0 0
      %3725 = vmatmul.mubr.bf16.gmra.mxu0 %v3457
      %v3726 = vpop.f32.mrf.mxu0
      %v3727 = vadd.f32 %v3606, %v3726
      %v3728 = vpop.f32.mrf.mxu0
      %v3729 = vadd.f32 %v3608, %v3728
      %v3730 = vpop.f32.mrf.mxu0
      %v3731 = vpop.f32.mrf.mxu0
      %3732 = vdwg.mxu0
      %v3735 = vcombine.low %v3727, %v3729
      %3737 = vst [vmem:[%s791] sm:$0xff] %v3735
      %p3738 = scmp.lt.s32.totalorder %s37, 1
      %s3739 = scalar_select %p3738, %s37, 1
      %s3740 = smul.addr %s3739, 2
      %s3741 = smul.addr %s3740, 4
      %s3742 = scalar_lea.vmem %s26, %s3741
      // Predicated region
      $region125: #{_lambda_.1} parent=123 // pred_check
        %p3743 = pneg %p606
      $region126: #{_lambda_.1} parent=123 // pred_check_branch
        %3745 = sbr.rel (%p3743) target = $region128
      $region127: #{_lambda_.1} parent=123 // pred_region
        _
      $region128: #{_lambda_.1} parent=123 // pred_fallthru
        _
    $region124: #{_lambda_.1} parent=5 // pred_fallthru
      _
    %p3746 = scmp.le.s32.totalorder 2, %s32
    // Predicated region
    $region129: #{_lambda_.1} parent=5 // pred_check
      %p3747 = pneg %p3746
    $region130: #{_lambda_.1} parent=5 // pred_check_branch
      %3749 = sbr.rel (%p3747) target = $region132
    $region131: #{_lambda_.1} parent=5 // pred_region
      %s3750 = ssub.s32 %s32, 2
      // Predicated region
      $region133: #{_lambda_.1} parent=131 // pred_check
        %p3751 = pneg %p612
      $region134: #{_lambda_.1} parent=131 // pred_check_branch
        %3753 = sbr.rel (%p3751) target = $region136
      $region135: #{_lambda_.1} parent=131 // pred_region
        %p3754 = scmp.lt.s32.totalorder %s38, 1
        %s3755 = scalar_select %p3754, %s38, 1
        %s3756 = smul.addr %s3755, 2
        %s3757 = smul.addr %s3756, 4
        %s3758 = scalar_lea.vmem %s26, %s3757
      $region136: #{_lambda_.1} parent=131 // pred_fallthru
        _
    $region132: #{_lambda_.1} parent=5 // pred_fallthru
      _
  $region6: #{_lambda_.1} parent=0 // loop_footer
    %s36 = sadd.s32 1, %s32
  $region7: #{_lambda_.1} parent=0 // loop_footer_branch
    %31 = sbr.rel target = $region3
  $region8: #{_lambda_.1} parent=0 // loop_exit
    _

</llo_original>
